<compile_context>
chip_gen: v7x
topology: tpu7x:2x2x1
jax: 0.10.0
libtpu: 0.0.40
codegen_flags: <defaults>
</compile_context>

<pallas_src>
import functools

import jax
import jax.numpy as jnp
import numpy as np
from jax.experimental import pallas as pl
from jax.experimental.pallas import tpu as pltpu


def _make_divisible(v, divisor, min_value=None):
    if min_value is None:
        min_value = divisor
    new_v = max(min_value, int(v + divisor / 2) // divisor * divisor)
    if new_v < 0.9 * v:
        new_v += divisor
    return new_v


def _swish(v):
    return v * jax.nn.sigmoid(v)


# ----------------------------------------------------------------------------
# Pallas kernel: single invocation on the lane-dense (B*H, W*C) slab.
# ----------------------------------------------------------------------------
def _mbconv_kernel(x_ref, dw1_ref, rmask_ref, b1_ref, pw_ref, pwb_ref,
                   dw2_ref, b4_ref, serw_ref, serb_ref, seew_ref, seeb_ref,
                   o_ref, *, B, H, W, C, K, SQ):
    P = (K - 1) // 2
    BH = B * H
    WC = W * C

    x = x_ref[...]                     # (BH, WC) f32, row = b*H + y, lane = w*C + c
    rmask = rmask_ref[...]             # (BH, K)  f32 row-validity per dy

    def depthwise(h, taps):
        # out = sum_{dy,dx}  mask_y(dy) * roll(h, dy, dx) * tap_w(dy,dx)
        # x-boundary zeros and the following BN scale are folded into tap_w.
        acc = None
        for dy in range(K):
            oy = dy - P
            if oy == 0:
                h_dy = h
            else:
                h_dy = pltpu.roll(h, (-oy) % BH, 0) * rmask[:, dy:dy + 1]
            for dx in range(K):
                ox = dx - P
                if ox == 0:
                    h_s = h_dy
                else:
                    h_s = pltpu.roll(h_dy, (-ox * C) % WC, 1)
                t = dy * K + dx
                term = h_s * taps[t:t + 1, :]
                acc = term if acc is None else acc + term
        return acc

    # --- depthwise kxk (groups=inp) -> BN1 (scale folded into taps) -> Swish ---
    h = depthwise(x, dw1_ref[...])
    h = _swish(h + b1_ref[...])

    # --- fused: 1x1 (inp->oup) -> BN2 -> 1x1 (oup->final_oup) -> BN3 -> Swish ---
    # Block-diagonal kron(I_W, W_fused) weight in bf16, fp32 accumulation on MXU.
    h = jnp.dot(h.astype(pw_ref.dtype), pw_ref[...],
                preferred_element_type=jnp.float32) + pwb_ref[...]
    h = _swish(h)

    # --- depthwise kxk (groups=final_oup) -> BN4 (scale folded into taps) ---
    h = depthwise(h, dw2_ref[...])
    h = h + b4_ref[...]

    # --- Squeeze-and-Excitation (per batch element), VPU/XLU path ---
    h3 = h.reshape(B, H, WC)
    pooled = jnp.sum(h3, axis=1)                     # (B, WC); 1/(H*W) folded into serw
    rw = serw_ref[...]                               # (SQ, WC)
    rb = serb_ref[...]                               # (SQ, 1)
    ew = seew_ref[...]                               # (SQ, WC)
    logits = None
    for q in range(SQ):
        s_q = jnp.sum(pooled * rw[q:q + 1, :], axis=1, keepdims=True) + rb[q:q + 1, :]
        s_q = _swish(s_q)                            # relu_fn == Swish
        term = s_q * ew[q:q + 1, :]                  # (B, WC)
        logits = term if logits is None else logits + term
    gate = jax.nn.sigmoid(logits + seeb_ref[...])    # (B, WC)
    h3 = h3 * gate[:, None, :]

    # --- identity residual (stride==1, input_filters==output_filters) ---
    o_ref[...] = (h3.reshape(BH, WC) + x).astype(o_ref.dtype)


# ----------------------------------------------------------------------------
# Host-side (numpy) parameter folding / tiling into the lane-dense layout.
# ----------------------------------------------------------------------------
def _prepare_constants(params, *, B, H, W, C, K, pw_dtype=jnp.bfloat16):
    P = (K - 1) // 2
    BH, WC = B * H, W * C
    f32 = np.float32
    SQ = np.asarray(params["se_rw"]).shape[1]

    def np_(a):
        return np.asarray(a, dtype=f32)

    def tile_c(v):                         # (C,) -> (1, W*C): channel c at lane w*C + c
        return np.tile(np.reshape(np_(v), (C,)), W).reshape(1, WC).astype(f32)

    def lane_valid(ox):                    # (W*C,) 1.0 where w + ox is inside [0, W)
        w_idx = np.repeat(np.arange(W), C)
        return ((w_idx + ox >= 0) & (w_idx + ox < W)).astype(f32)

    def dw_taps(dw, scale):                # (K*K, C), (C,) -> (K*K, W*C)
        taps = np.zeros((K * K, WC), f32)
        for dy in range(K):
            for dx in range(K):
                t = dy * K + dx
                taps[t] = np.tile(dw[t] * scale, W) * lane_valid(dx - P)
        return taps

    # Row masks: column dy is 1.0 where y + (dy - P) stays inside [0, H).
    y_idx = np.tile(np.arange(H), B)
    rmask = np.zeros((BH, K), f32)
    for dy in range(K):
        oy = dy - P
        rmask[:, dy] = ((y_idx + oy >= 0) & (y_idx + oy < H)).astype(f32)

    s1, b1 = np_(params["bn1_s"])[0], np_(params["bn1_b"])[0]
    s2, b2 = np_(params["bn2_s"])[0], np_(params["bn2_b"])[0]
    s3, b3 = np_(params["bn3_s"])[0], np_(params["bn3_b"])[0]
    s4, b4 = np_(params["bn4_s"])[0], np_(params["bn4_b"])[0]

    dw1 = dw_taps(np_(params["dw1_w"]), s1)          # BN1 scale folded into taps
    dw2 = dw_taps(np_(params["dw2_w"]), s4)          # BN4 scale folded into taps

    # Exact fold of 1x1 -> BN2 -> 1x1 -> BN3 (purely affine chain, no activation).
    pw2_s3 = np_(params["pw2_w"]) * s3[None, :]                  # (C_mid, C)
    w_fused = (np_(params["pw1_w"]) * s2[None, :]) @ pw2_s3      # (C, C)
    b_fused = b2 @ pw2_s3 + b3                                   # (C,)
    pw_big = np.kron(np.eye(W, dtype=f32), w_fused)              # (W*C, W*C) block-diag
    pwb_t = tile_c(b_fused)

    # SE: fold 1/(H*W) of adaptive_avg_pool2d into the tiled reduce weights;
    # store both SE weights as (SQ, W*C) so the SQ dot products run on the VPU.
    se_rw = np_(params["se_rw"])                                 # (C, SQ)
    se_ew = np_(params["se_ew"])                                 # (SQ, C)
    se_rw_t = np.stack([np.tile(se_rw[:, q], W) for q in range(SQ)], 0) / float(H * W)
    se_ew_t = np.stack([np.tile(se_ew[q, :], W) for q in range(SQ)], 0)
    se_rb = np_(params["se_rb"]).reshape(SQ, 1)
    se_eb_t = tile_c(np_(params["se_eb"])[0])

    return [
        jnp.asarray(dw1), jnp.asarray(rmask), jnp.asarray(tile_c(b1)),
        jnp.asarray(pw_big, dtype=pw_dtype), jnp.asarray(pwb_t),
        jnp.asarray(dw2), jnp.asarray(tile_c(b4)),
        jnp.asarray(se_rw_t), jnp.asarray(se_rb),
        jnp.asarray(se_ew_t), jnp.asarray(se_eb_t),
    ]


def mbconv_block_forward(x_nchw, params, *, K=3, pw_dtype=jnp.bfloat16):
    B, C_in, H, W = x_nchw.shape
    C_out = params["pw2_w"].shape[1]
    assert C_in == C_out, "identity branch requires inp == final_oup"
    BH, WC = B * H, W * C_in
    SQ = params["se_rw"].shape[1]

    # NCHW -> NHWC -> lane-dense (B*H, W*C); both reshapes are free contiguous merges.
    x2d = jnp.transpose(x_nchw, (0, 2, 3, 1)).reshape(BH, WC).astype(jnp.float32)

    consts = _prepare_constants(params, B=B, H=H, W=W, C=C_in, K=K, pw_dtype=pw_dtype)
    kernel = functools.partial(_mbconv_kernel, B=B, H=H, W=W, C=C_in, K=K, SQ=SQ)

    # Single invocation (no grid): whole arrays live in VMEM; constants are only
    # loaded once (no double-buffering across grid steps).
    vmem_spec = pl.BlockSpec(memory_space=pltpu.MemorySpace.VMEM)
    out = pl.pallas_call(
        kernel,
        out_shape=jax.ShapeDtypeStruct((BH, WC), jnp.float32),
        in_specs=[vmem_spec] * (1 + len(consts)),
        out_specs=vmem_spec,
    )(x2d, *consts)

    return jnp.transpose(out.reshape(B, H, W, C_in), (0, 3, 1, 2))   # back to NCHW


# ----------------------------------------------------------------------------
# Parameter init + pure-JAX reference (mirrors the PyTorch forward).
# ----------------------------------------------------------------------------
def init_params(key, C_in, C_mid, C_out, SQ, K=3, eps=1e-3):
    keys = jax.random.split(key, 24)

    def bn_fold(k0, k1, k2, k3, n):
        gamma = 1.0 + 0.1 * jax.random.normal(k0, (n,), jnp.float32)
        beta = 0.1 * jax.random.normal(k1, (n,), jnp.float32)
        mean = 0.1 * jax.random.normal(k2, (n,), jnp.float32)
        var = jnp.abs(jax.random.normal(k3, (n,), jnp.float32)) + 0.5
        scale = gamma / jnp.sqrt(var + eps)
        bias = beta - mean * scale
        return scale.reshape(1, n), bias.reshape(1, n)

    def w(k, shape, fan_in):
        return (jax.random.normal(k, shape, jnp.float32) / np.sqrt(fan_in)).astype(jnp.float32)

    p = {}
    p["dw1_w"] = w(keys[0], (K * K, C_in), K * K)            # depthwise kxk, groups=inp
    p["bn1_s"], p["bn1_b"] = bn_fold(keys[1], keys[2], keys[3], keys[4], C_in)
    p["pw1_w"] = w(keys[5], (C_in, C_mid), C_in)             # 1x1 inp->oup (transposed)
    p["bn2_s"], p["bn2_b"] = bn_fold(keys[6], keys[7], keys[8], keys[9], C_mid)
    p["pw2_w"] = w(keys[10], (C_mid, C_out), C_mid)          # 1x1 oup->final_oup
    p["bn3_s"], p["bn3_b"] = bn_fold(keys[11], keys[12], keys[13], keys[14], C_out)
    p["dw2_w"] = w(keys[15], (K * K, C_out), K * K)          # depthwise kxk, groups=final_oup
    p["bn4_s"], p["bn4_b"] = bn_fold(keys[16], keys[17], keys[18], keys[19], C_out)
    p["se_rw"] = w(keys[20], (C_out, SQ), C_out)             # se_reduce weight (transposed)
    p["se_rb"] = 0.1 * jax.random.normal(keys[21], (1, SQ), jnp.float32)
    p["se_ew"] = w(keys[22], (SQ, C_out), SQ)                # se_expand weight (transposed)
    p["se_eb"] = 0.1 * jax.random.normal(keys[23], (1, C_out), jnp.float32)
    return p


def reference_forward(x_nchw, params, K=3):
    """Pure-JAX reference mirroring the PyTorch forward (NHWC internally, fp32)."""
    x = jnp.transpose(x_nchw, (0, 2, 3, 1)).astype(jnp.float32)
    B, H, W, _ = x.shape
    P = (K - 1) // 2

    def depthwise(h, w2d):
        hp = jnp.pad(h, ((0, 0), (P, P), (P, P), (0, 0)))
        acc = jnp.zeros_like(h)
        for dy in range(K):
            for dx in range(K):
                acc = acc + hp[:, dy:dy + H, dx:dx + W, :] * w2d[dy * K + dx]
        return acc

    h = depthwise(x, params["dw1_w"])
    h = _swish(h * params["bn1_s"][0] + params["bn1_b"][0])
    h = jnp.einsum("bhwc,cd->bhwd", h, params["pw1_w"])
    h = h * params["bn2_s"][0] + params["bn2_b"][0]
    h = jnp.einsum("bhwc,cd->bhwd", h, params["pw2_w"])
    h = _swish(h * params["bn3_s"][0] + params["bn3_b"][0])
    h = depthwise(h, params["dw2_w"])
    h = h * params["bn4_s"][0] + params["bn4_b"][0]
    pooled = jnp.mean(h, axis=(1, 2))                                  # adaptive_avg_pool2d(.,1)
    s = _swish(pooled @ params["se_rw"] + params["se_rb"][0])
    s = s @ params["se_ew"] + params["se_eb"][0]
    h = jax.nn.sigmoid(s)[:, None, None, :] * h
    h = h + x                                                          # identity residual
    return jnp.transpose(h, (0, 3, 1, 2))


if __name__ == "__main__":
    # Block configuration (small, consistent with the identity branch):
    B, C_in, H, W = 2, 32, 16, 16
    expand_ratio = 4
    se_ratio = 0.25
    kernel_size = 3
    C_out = C_in                                       # input_filters == output_filters
    oup = _make_divisible(C_in // expand_ratio, 2)     # 8
    SQ = max(1, int(C_out / expand_ratio * se_ratio))  # num_squeezed_channels = 2

    key = jax.random.PRNGKey(0)
    kx, kp = jax.random.split(key)
    x = jax.random.normal(kx, (B, C_in, H, W), jnp.float32)
    params = init_params(kp, C_in, oup, C_out, SQ, K=kernel_size)

    out = mbconv_block_forward(x, params, K=kernel_size)
    out = jax.block_until_ready(out)

    ref = reference_forward(x, params, K=kernel_size)
    # Everything except the fused pointwise matmul is exact fp32; the remaining
    # tolerance is set by the bf16 MXU pointwise path (an fp32-weight variant
    # matches to ~1e-5).
    np.testing.assert_allclose(np.asarray(out), np.asarray(ref), rtol=3e-2, atol=3e-2)
    assert out.shape == (B, C_out, H, W)

    print("KERNEL_OK")
</pallas_src>

<mosaic_0001>
module attributes {stable_mosaic.version = 11 : i64} {
  func.func @_mbconv_kernel(%arg0: memref<32x512xf32, #tpu.memory_space<vmem>>, %arg1: memref<9x512xf32, #tpu.memory_space<vmem>>, %arg2: memref<32x3xf32, #tpu.memory_space<vmem>>, %arg3: memref<1x512xf32, #tpu.memory_space<vmem>>, %arg4: memref<512x512xbf16, #tpu.memory_space<vmem>>, %arg5: memref<1x512xf32, #tpu.memory_space<vmem>>, %arg6: memref<9x512xf32, #tpu.memory_space<vmem>>, %arg7: memref<1x512xf32, #tpu.memory_space<vmem>>, %arg8: memref<2x512xf32, #tpu.memory_space<vmem>>, %arg9: memref<2x1xf32, #tpu.memory_space<vmem>>, %arg10: memref<2x512xf32, #tpu.memory_space<vmem>>, %arg11: memref<1x512xf32, #tpu.memory_space<vmem>>, %arg12: memref<32x512xf32, #tpu.memory_space<vmem>>) attributes {dimension_semantics = [], scalar_prefetch = 0 : i64, scratch_operands = 0 : i64, tpu.core_type = #tpu.core_type<tc>} {
    %c0 = arith.constant 0 : index
    %c0_0 = arith.constant 0 : index
    %0 = vector.load %arg0[%c0, %c0_0] : memref<32x512xf32, #tpu.memory_space<vmem>>, vector<32x512xf32>
    %c0_1 = arith.constant 0 : index
    %c0_2 = arith.constant 0 : index
    %1 = vector.load %arg2[%c0_1, %c0_2] : memref<32x3xf32, #tpu.memory_space<vmem>>, vector<32x3xf32>
    %c0_3 = arith.constant 0 : index
    %c0_4 = arith.constant 0 : index
    %2 = vector.load %arg1[%c0_3, %c0_4] : memref<9x512xf32, #tpu.memory_space<vmem>>, vector<9x512xf32>
    %c1_i32 = arith.constant 1 : i32
    %3 = tpu.dynamic_rotate %0 by %c1_i32 dim 0 : vector<32x512xf32>, i32 -> vector<32x512xf32>
    %4 = vector.extract_strided_slice %1 {offsets = [0, 0], sizes = [32, 1], strides = [1, 1]} : vector<32x3xf32> to vector<32x1xf32>
    %5 = vector.broadcast %4 : vector<32x1xf32> to vector<32x512xf32>
    %6 = arith.mulf %3, %5 : vector<32x512xf32>
    %c32_i32 = arith.constant 32 : i32
    %7 = tpu.dynamic_rotate %6 by %c32_i32 dim 1 : vector<32x512xf32>, i32 -> vector<32x512xf32>
    %8 = vector.extract_strided_slice %2 {offsets = [0, 0], sizes = [1, 512], strides = [1, 1]} : vector<9x512xf32> to vector<1x512xf32>
    %9 = vector.broadcast %8 : vector<1x512xf32> to vector<32x512xf32>
    %10 = arith.mulf %7, %9 : vector<32x512xf32>
    %11 = vector.extract_strided_slice %2 {offsets = [1, 0], sizes = [1, 512], strides = [1, 1]} : vector<9x512xf32> to vector<1x512xf32>
    %12 = vector.broadcast %11 : vector<1x512xf32> to vector<32x512xf32>
    %13 = arith.mulf %6, %12 : vector<32x512xf32>
    %14 = arith.addf %10, %13 : vector<32x512xf32>
    %c480_i32 = arith.constant 480 : i32
    %15 = tpu.dynamic_rotate %6 by %c480_i32 dim 1 : vector<32x512xf32>, i32 -> vector<32x512xf32>
    %16 = vector.extract_strided_slice %2 {offsets = [2, 0], sizes = [1, 512], strides = [1, 1]} : vector<9x512xf32> to vector<1x512xf32>
    %17 = vector.broadcast %16 : vector<1x512xf32> to vector<32x512xf32>
    %18 = arith.mulf %15, %17 : vector<32x512xf32>
    %19 = arith.addf %14, %18 : vector<32x512xf32>
    %c32_i32_5 = arith.constant 32 : i32
    %20 = tpu.dynamic_rotate %0 by %c32_i32_5 dim 1 : vector<32x512xf32>, i32 -> vector<32x512xf32>
    %21 = vector.extract_strided_slice %2 {offsets = [3, 0], sizes = [1, 512], strides = [1, 1]} : vector<9x512xf32> to vector<1x512xf32>
    %22 = vector.broadcast %21 : vector<1x512xf32> to vector<32x512xf32>
    %23 = arith.mulf %20, %22 : vector<32x512xf32>
    %24 = arith.addf %19, %23 : vector<32x512xf32>
    %25 = vector.extract_strided_slice %2 {offsets = [4, 0], sizes = [1, 512], strides = [1, 1]} : vector<9x512xf32> to vector<1x512xf32>
    %26 = vector.broadcast %25 : vector<1x512xf32> to vector<32x512xf32>
    %27 = arith.mulf %0, %26 : vector<32x512xf32>
    %28 = arith.addf %24, %27 : vector<32x512xf32>
    %c480_i32_6 = arith.constant 480 : i32
    %29 = tpu.dynamic_rotate %0 by %c480_i32_6 dim 1 : vector<32x512xf32>, i32 -> vector<32x512xf32>
    %30 = vector.extract_strided_slice %2 {offsets = [5, 0], sizes = [1, 512], strides = [1, 1]} : vector<9x512xf32> to vector<1x512xf32>
    %31 = vector.broadcast %30 : vector<1x512xf32> to vector<32x512xf32>
    %32 = arith.mulf %29, %31 : vector<32x512xf32>
    %33 = arith.addf %28, %32 : vector<32x512xf32>
    %c31_i32 = arith.constant 31 : i32
    %34 = tpu.dynamic_rotate %0 by %c31_i32 dim 0 : vector<32x512xf32>, i32 -> vector<32x512xf32>
    %35 = vector.extract_strided_slice %1 {offsets = [0, 2], sizes = [32, 1], strides = [1, 1]} : vector<32x3xf32> to vector<32x1xf32>
    %36 = vector.broadcast %35 : vector<32x1xf32> to vector<32x512xf32>
    %37 = arith.mulf %34, %36 : vector<32x512xf32>
    %c32_i32_7 = arith.constant 32 : i32
    %38 = tpu.dynamic_rotate %37 by %c32_i32_7 dim 1 : vector<32x512xf32>, i32 -> vector<32x512xf32>
    %39 = vector.extract_strided_slice %2 {offsets = [6, 0], sizes = [1, 512], strides = [1, 1]} : vector<9x512xf32> to vector<1x512xf32>
    %40 = vector.broadcast %39 : vector<1x512xf32> to vector<32x512xf32>
    %41 = arith.mulf %38, %40 : vector<32x512xf32>
    %42 = arith.addf %33, %41 : vector<32x512xf32>
    %43 = vector.extract_strided_slice %2 {offsets = [7, 0], sizes = [1, 512], strides = [1, 1]} : vector<9x512xf32> to vector<1x512xf32>
    %44 = vector.broadcast %43 : vector<1x512xf32> to vector<32x512xf32>
    %45 = arith.mulf %37, %44 : vector<32x512xf32>
    %46 = arith.addf %42, %45 : vector<32x512xf32>
    %c480_i32_8 = arith.constant 480 : i32
    %47 = tpu.dynamic_rotate %37 by %c480_i32_8 dim 1 : vector<32x512xf32>, i32 -> vector<32x512xf32>
    %48 = vector.extract_strided_slice %2 {offsets = [8, 0], sizes = [1, 512], strides = [1, 1]} : vector<9x512xf32> to vector<1x512xf32>
    %49 = vector.broadcast %48 : vector<1x512xf32> to vector<32x512xf32>
    %50 = arith.mulf %47, %49 : vector<32x512xf32>
    %51 = arith.addf %46, %50 : vector<32x512xf32>
    %c0_9 = arith.constant 0 : index
    %c0_10 = arith.constant 0 : index
    %52 = vector.load %arg3[%c0_9, %c0_10] : memref<1x512xf32, #tpu.memory_space<vmem>>, vector<1x512xf32>
    %53 = vector.broadcast %52 : vector<1x512xf32> to vector<32x512xf32>
    %54 = arith.addf %51, %53 : vector<32x512xf32>
    %55 = arith.negf %54 : vector<32x512xf32>
    %56 = math.exp %55 : vector<32x512xf32>
    %cst = arith.constant 1.000000e+00 : f32
    %57 = vector.broadcast %cst : f32 to vector<32x512xf32>
    %58 = arith.addf %57, %56 : vector<32x512xf32>
    %59 = arith.divf %57, %58 : vector<32x512xf32>
    %60 = arith.mulf %54, %59 : vector<32x512xf32>
    %61 = arith.truncf %60 : vector<32x512xf32> to vector<32x512xbf16>
    %c0_11 = arith.constant 0 : index
    %c0_12 = arith.constant 0 : index
    %62 = vector.load %arg4[%c0_11, %c0_12] : memref<512x512xbf16, #tpu.memory_space<vmem>>, vector<512x512xbf16>
    %cst_13 = arith.constant dense<0.000000e+00> : vector<32x512xf32>
    %63 = tpu.matmul %61, %62, %cst_13 {dimension_numbers = #tpu.dot_dimension_numbers<[1], [0], [0], [1], [0, 0, 1, 1], [], []>} : vector<32x512xbf16>, vector<512x512xbf16>, vector<32x512xf32> -> vector<32x512xf32>
    %c0_14 = arith.constant 0 : index
    %c0_15 = arith.constant 0 : index
    %64 = vector.load %arg5[%c0_14, %c0_15] : memref<1x512xf32, #tpu.memory_space<vmem>>, vector<1x512xf32>
    %65 = vector.broadcast %64 : vector<1x512xf32> to vector<32x512xf32>
    %66 = arith.addf %63, %65 : vector<32x512xf32>
    %67 = arith.negf %66 : vector<32x512xf32>
    %68 = math.exp %67 : vector<32x512xf32>
    %cst_16 = arith.constant 1.000000e+00 : f32
    %69 = vector.broadcast %cst_16 : f32 to vector<32x512xf32>
    %70 = arith.addf %69, %68 : vector<32x512xf32>
    %71 = arith.divf %69, %70 : vector<32x512xf32>
    %72 = arith.mulf %66, %71 : vector<32x512xf32>
    %c0_17 = arith.constant 0 : index
    %c0_18 = arith.constant 0 : index
    %73 = vector.load %arg6[%c0_17, %c0_18] : memref<9x512xf32, #tpu.memory_space<vmem>>, vector<9x512xf32>
    %c1_i32_19 = arith.constant 1 : i32
    %74 = tpu.dynamic_rotate %72 by %c1_i32_19 dim 0 : vector<32x512xf32>, i32 -> vector<32x512xf32>
    %75 = vector.extract_strided_slice %1 {offsets = [0, 0], sizes = [32, 1], strides = [1, 1]} : vector<32x3xf32> to vector<32x1xf32>
    %76 = vector.broadcast %75 : vector<32x1xf32> to vector<32x512xf32>
    %77 = arith.mulf %74, %76 : vector<32x512xf32>
    %c32_i32_20 = arith.constant 32 : i32
    %78 = tpu.dynamic_rotate %77 by %c32_i32_20 dim 1 : vector<32x512xf32>, i32 -> vector<32x512xf32>
    %79 = vector.extract_strided_slice %73 {offsets = [0, 0], sizes = [1, 512], strides = [1, 1]} : vector<9x512xf32> to vector<1x512xf32>
    %80 = vector.broadcast %79 : vector<1x512xf32> to vector<32x512xf32>
    %81 = arith.mulf %78, %80 : vector<32x512xf32>
    %82 = vector.extract_strided_slice %73 {offsets = [1, 0], sizes = [1, 512], strides = [1, 1]} : vector<9x512xf32> to vector<1x512xf32>
    %83 = vector.broadcast %82 : vector<1x512xf32> to vector<32x512xf32>
    %84 = arith.mulf %77, %83 : vector<32x512xf32>
    %85 = arith.addf %81, %84 : vector<32x512xf32>
    %c480_i32_21 = arith.constant 480 : i32
    %86 = tpu.dynamic_rotate %77 by %c480_i32_21 dim 1 : vector<32x512xf32>, i32 -> vector<32x512xf32>
    %87 = vector.extract_strided_slice %73 {offsets = [2, 0], sizes = [1, 512], strides = [1, 1]} : vector<9x512xf32> to vector<1x512xf32>
    %88 = vector.broadcast %87 : vector<1x512xf32> to vector<32x512xf32>
    %89 = arith.mulf %86, %88 : vector<32x512xf32>
    %90 = arith.addf %85, %89 : vector<32x512xf32>
    %c32_i32_22 = arith.constant 32 : i32
    %91 = tpu.dynamic_rotate %72 by %c32_i32_22 dim 1 : vector<32x512xf32>, i32 -> vector<32x512xf32>
    %92 = vector.extract_strided_slice %73 {offsets = [3, 0], sizes = [1, 512], strides = [1, 1]} : vector<9x512xf32> to vector<1x512xf32>
    %93 = vector.broadcast %92 : vector<1x512xf32> to vector<32x512xf32>
    %94 = arith.mulf %91, %93 : vector<32x512xf32>
    %95 = arith.addf %90, %94 : vector<32x512xf32>
    %96 = vector.extract_strided_slice %73 {offsets = [4, 0], sizes = [1, 512], strides = [1, 1]} : vector<9x512xf32> to vector<1x512xf32>
    %97 = vector.broadcast %96 : vector<1x512xf32> to vector<32x512xf32>
    %98 = arith.mulf %72, %97 : vector<32x512xf32>
    %99 = arith.addf %95, %98 : vector<32x512xf32>
    %c480_i32_23 = arith.constant 480 : i32
    %100 = tpu.dynamic_rotate %72 by %c480_i32_23 dim 1 : vector<32x512xf32>, i32 -> vector<32x512xf32>
    %101 = vector.extract_strided_slice %73 {offsets = [5, 0], sizes = [1, 512], strides = [1, 1]} : vector<9x512xf32> to vector<1x512xf32>
    %102 = vector.broadcast %101 : vector<1x512xf32> to vector<32x512xf32>
    %103 = arith.mulf %100, %102 : vector<32x512xf32>
    %104 = arith.addf %99, %103 : vector<32x512xf32>
    %c31_i32_24 = arith.constant 31 : i32
    %105 = tpu.dynamic_rotate %72 by %c31_i32_24 dim 0 : vector<32x512xf32>, i32 -> vector<32x512xf32>
    %106 = vector.extract_strided_slice %1 {offsets = [0, 2], sizes = [32, 1], strides = [1, 1]} : vector<32x3xf32> to vector<32x1xf32>
    %107 = vector.broadcast %106 : vector<32x1xf32> to vector<32x512xf32>
    %108 = arith.mulf %105, %107 : vector<32x512xf32>
    %c32_i32_25 = arith.constant 32 : i32
    %109 = tpu.dynamic_rotate %108 by %c32_i32_25 dim 1 : vector<32x512xf32>, i32 -> vector<32x512xf32>
    %110 = vector.extract_strided_slice %73 {offsets = [6, 0], sizes = [1, 512], strides = [1, 1]} : vector<9x512xf32> to vector<1x512xf32>
    %111 = vector.broadcast %110 : vector<1x512xf32> to vector<32x512xf32>
    %112 = arith.mulf %109, %111 : vector<32x512xf32>
    %113 = arith.addf %104, %112 : vector<32x512xf32>
    %114 = vector.extract_strided_slice %73 {offsets = [7, 0], sizes = [1, 512], strides = [1, 1]} : vector<9x512xf32> to vector<1x512xf32>
    %115 = vector.broadcast %114 : vector<1x512xf32> to vector<32x512xf32>
    %116 = arith.mulf %108, %115 : vector<32x512xf32>
    %117 = arith.addf %113, %116 : vector<32x512xf32>
    %c480_i32_26 = arith.constant 480 : i32
    %118 = tpu.dynamic_rotate %108 by %c480_i32_26 dim 1 : vector<32x512xf32>, i32 -> vector<32x512xf32>
    %119 = vector.extract_strided_slice %73 {offsets = [8, 0], sizes = [1, 512], strides = [1, 1]} : vector<9x512xf32> to vector<1x512xf32>
    %120 = vector.broadcast %119 : vector<1x512xf32> to vector<32x512xf32>
    %121 = arith.mulf %118, %120 : vector<32x512xf32>
    %122 = arith.addf %117, %121 : vector<32x512xf32>
    %c0_27 = arith.constant 0 : index
    %c0_28 = arith.constant 0 : index
    %123 = vector.load %arg7[%c0_27, %c0_28] : memref<1x512xf32, #tpu.memory_space<vmem>>, vector<1x512xf32>
    %124 = vector.broadcast %123 : vector<1x512xf32> to vector<32x512xf32>
    %125 = arith.addf %122, %124 : vector<32x512xf32>
    %126 = vector.shape_cast %125 : vector<32x512xf32> to vector<2x16x512xf32>
    %cst_29 = arith.constant dense<0.000000e+00> : vector<2x512xf32>
    %127 = vector.multi_reduction <add>, %126, %cst_29 [1] : vector<2x16x512xf32> to vector<2x512xf32>
    %c0_30 = arith.constant 0 : index
    %c0_31 = arith.constant 0 : index
    %128 = vector.load %arg8[%c0_30, %c0_31] : memref<2x512xf32, #tpu.memory_space<vmem>>, vector<2x512xf32>
    %c0_32 = arith.constant 0 : index
    %c0_33 = arith.constant 0 : index
    %129 = vector.load %arg9[%c0_32, %c0_33] : memref<2x1xf32, #tpu.memory_space<vmem>>, vector<2x1xf32>
    %c0_34 = arith.constant 0 : index
    %c0_35 = arith.constant 0 : index
    %130 = vector.load %arg10[%c0_34, %c0_35] : memref<2x512xf32, #tpu.memory_space<vmem>>, vector<2x512xf32>
    %131 = vector.extract_strided_slice %128 {offsets = [0, 0], sizes = [1, 512], strides = [1, 1]} : vector<2x512xf32> to vector<1x512xf32>
    %132 = vector.broadcast %131 : vector<1x512xf32> to vector<2x512xf32>
    %133 = arith.mulf %127, %132 : vector<2x512xf32>
    %cst_36 = arith.constant dense<0.000000e+00> : vector<2xf32>
    %134 = vector.multi_reduction <add>, %133, %cst_36 [1] : vector<2x512xf32> to vector<2xf32>
    %135 = vector.shape_cast %134 : vector<2xf32> to vector<2x1xf32>
    %136 = vector.extract_strided_slice %129 {offsets = [0, 0], sizes = [1, 1], strides = [1, 1]} : vector<2x1xf32> to vector<1x1xf32>
    %137 = vector.broadcast %136 : vector<1x1xf32> to vector<2x1xf32>
    %138 = arith.addf %135, %137 : vector<2x1xf32>
    %139 = arith.negf %138 : vector<2x1xf32>
    %140 = math.exp %139 : vector<2x1xf32>
    %cst_37 = arith.constant 1.000000e+00 : f32
    %141 = vector.broadcast %cst_37 : f32 to vector<2x1xf32>
    %142 = arith.addf %141, %140 : vector<2x1xf32>
    %143 = arith.divf %141, %142 : vector<2x1xf32>
    %144 = arith.mulf %138, %143 : vector<2x1xf32>
    %145 = vector.extract_strided_slice %130 {offsets = [0, 0], sizes = [1, 512], strides = [1, 1]} : vector<2x512xf32> to vector<1x512xf32>
    %146 = vector.broadcast %144 : vector<2x1xf32> to vector<2x512xf32>
    %147 = vector.broadcast %145 : vector<1x512xf32> to vector<2x512xf32>
    %148 = arith.mulf %146, %147 : vector<2x512xf32>
    %149 = vector.extract_strided_slice %128 {offsets = [1, 0], sizes = [1, 512], strides = [1, 1]} : vector<2x512xf32> to vector<1x512xf32>
    %150 = vector.broadcast %149 : vector<1x512xf32> to vector<2x512xf32>
    %151 = arith.mulf %127, %150 : vector<2x512xf32>
    %cst_38 = arith.constant dense<0.000000e+00> : vector<2xf32>
    %152 = vector.multi_reduction <add>, %151, %cst_38 [1] : vector<2x512xf32> to vector<2xf32>
    %153 = vector.shape_cast %152 : vector<2xf32> to vector<2x1xf32>
    %154 = vector.extract_strided_slice %129 {offsets = [1, 0], sizes = [1, 1], strides = [1, 1]} : vector<2x1xf32> to vector<1x1xf32>
    %155 = vector.broadcast %154 : vector<1x1xf32> to vector<2x1xf32>
    %156 = arith.addf %153, %155 : vector<2x1xf32>
    %157 = arith.negf %156 : vector<2x1xf32>
    %158 = math.exp %157 : vector<2x1xf32>
    %cst_39 = arith.constant 1.000000e+00 : f32
    %159 = vector.broadcast %cst_39 : f32 to vector<2x1xf32>
    %160 = arith.addf %159, %158 : vector<2x1xf32>
    %161 = arith.divf %159, %160 : vector<2x1xf32>
    %162 = arith.mulf %156, %161 : vector<2x1xf32>
    %163 = vector.extract_strided_slice %130 {offsets = [1, 0], sizes = [1, 512], strides = [1, 1]} : vector<2x512xf32> to vector<1x512xf32>
    %164 = vector.broadcast %162 : vector<2x1xf32> to vector<2x512xf32>
    %165 = vector.broadcast %163 : vector<1x512xf32> to vector<2x512xf32>
    %166 = arith.mulf %164, %165 : vector<2x512xf32>
    %167 = arith.addf %148, %166 : vector<2x512xf32>
    %c0_40 = arith.constant 0 : index
    %c0_41 = arith.constant 0 : index
    %168 = vector.load %arg11[%c0_40, %c0_41] : memref<1x512xf32, #tpu.memory_space<vmem>>, vector<1x512xf32>
    %169 = vector.broadcast %168 : vector<1x512xf32> to vector<2x512xf32>
    %170 = arith.addf %167, %169 : vector<2x512xf32>
    %171 = arith.negf %170 : vector<2x512xf32>
    %172 = math.exp %171 : vector<2x512xf32>
    %cst_42 = arith.constant 1.000000e+00 : f32
    %173 = vector.broadcast %cst_42 : f32 to vector<2x512xf32>
    %174 = arith.addf %173, %172 : vector<2x512xf32>
    %175 = arith.divf %173, %174 : vector<2x512xf32>
    %176 = vector.shape_cast %175 : vector<2x512xf32> to vector<2x1x512xf32>
    %177 = vector.broadcast %176 : vector<2x1x512xf32> to vector<2x16x512xf32>
    %178 = arith.mulf %126, %177 : vector<2x16x512xf32>
    %179 = vector.shape_cast %178 : vector<2x16x512xf32> to vector<32x512xf32>
    %180 = arith.addf %179, %0 : vector<32x512xf32>
    %c0_43 = arith.constant 0 : index
    %c0_44 = arith.constant 0 : index
    %181 = vector.load %arg12[%c0_43, %c0_44] : memref<32x512xf32, #tpu.memory_space<vmem>>, vector<32x512xf32>
    tpu.vector_store %arg12[%c0_43, %c0_44], %180 {strides = array<i32>} : memref<32x512xf32, #tpu.memory_space<vmem>>, vector<32x512xf32>,
    return
  }
}

</mosaic_0001>

<llo_original>
// kernel: tpu_custom_call.1
$region0: #{tpu_custom_call.1}
  #allocation0 [shape = 'u32[]', space=smem, size = 0x4, offset = 0x4, fixed_abs, tag = 'smem constant byte address 0x4 - core index']
  #allocation1 [shape = 'u32[144,128]{1,0:T(1,128)}', space=vmem, size = 0x12000, scoped, tag = 'internal scratch']
  %s0 = inlined_call_operand.hbm [shape: f32[32,512], index: 0, kind: input, shape index: {}]
  %s1 = inlined_call_operand.hbm [shape: f32[9,512], index: 1, kind: input, shape index: {}]
  %s2 = inlined_call_operand.vmem [shape: f32[32,3], index: 2, kind: input, shape index: {}]
  %s3 = inlined_call_operand.vmem [shape: f32[1,512], index: 3, kind: input, shape index: {}]
  %s4 = inlined_call_operand.hbm [shape: bf16[512,512], index: 4, kind: input, shape index: {}]
  %s5 = inlined_call_operand.vmem [shape: f32[1,512], index: 5, kind: input, shape index: {}]
  %s6 = inlined_call_operand.hbm [shape: f32[9,512], index: 6, kind: input, shape index: {}]
  %s7 = inlined_call_operand.vmem [shape: f32[1,512], index: 7, kind: input, shape index: {}]
  %s8 = inlined_call_operand.vmem [shape: f32[2,512], index: 8, kind: input, shape index: {}]
  %s9 = inlined_call_operand.vmem [shape: f32[2,1], index: 9, kind: input, shape index: {}]
  %s10 = inlined_call_operand.vmem [shape: f32[2,512], index: 10, kind: input, shape index: {}]
  %s11 = inlined_call_operand.vmem [shape: f32[1,512], index: 11, kind: input, shape index: {}]
  %s12 = inlined_call_operand.hbm [shape: f32[32,512], index: 12, kind: output, shape index: {}]
  %s13 = sld [smem:[#allocation0]]
  $region74: #{tpu_custom_call.1} parent=0
    _
  %s15 = ssub.s32 1, %s13
  %s16 = scalar_select 0, %s15, %s13
  $region1: #{tpu_custom_call.1} parent=0
    #allocation2 [shape = 'u8[65536]{0}', space=vmem, size = 0x10000, scoped, tag = 'input window, operand 0, single buffered']
    #allocation3 [shape = 's32[1]{0}', space=sflag, size = 0x4, scoped, tag = 'scoped memory for tpu_custom_call.1']
    #allocation4 [shape = 's32[1]{0}', space=sflag, size = 0x4, scoped, tag = 'scoped memory for tpu_custom_call.1']
    #allocation5 [shape = 'u8[32768]{0}', space=vmem, size = 0x8000, scoped, tag = 'input window, operand 1, single buffered']
    #allocation6 [shape = 's32[1]{0}', space=sflag, size = 0x4, scoped, tag = 'scoped memory for tpu_custom_call.1']
    #allocation7 [shape = 'u8[524288]{0}', space=vmem, size = 0x80000, scoped, tag = 'input window, operand 4, single buffered']
    #allocation8 [shape = 'u8[32768]{0}', space=vmem, size = 0x8000, scoped, tag = 'input window, operand 6, single buffered']
    #allocation9 [shape = 's32[1]{0}', space=sflag, size = 0x4, scoped, tag = 'scoped memory for tpu_custom_call.1']
    #allocation10 [shape = 'u8[65536]{0}', space=vmem, size = 0x10000, scoped, tag = 'output window, operand 0, single buffered']
    %17 = vsyncpa [#allocation3], 0
    %18 = vsyncpa [#allocation6], 0
    %19 = vsyncpa [#allocation9], 0
    %20 = vsyncpa [#allocation4], 0
    // Predicated region
    $region2: #{tpu_custom_call.1} parent=1 // pred_check
      _
    $region3: #{tpu_custom_call.1} parent=1 // pred_check_branch
      %22 = sbr.rel (0) target = $region5
    $region4: #{tpu_custom_call.1} parent=1 // pred_region
      %s24 = ssub.s32 2048, 2048
      %25 = vsyncadd [#allocation3], %s24
      %s26 = sshll.u32 [#allocation2], 4
      %s27 = int_to_ptr.vmem [resolvable:$true] %s26
      %32 = dma.hbm_to_vmem [thread:$0]  %s0, 2048, %s27, [#allocation3], 512, 512, 32
    $region5: #{tpu_custom_call.1} parent=1 // pred_fallthru
      _
    // Predicated region
    $region6: #{tpu_custom_call.1} parent=1 // pred_check
      _
    $region7: #{tpu_custom_call.1} parent=1 // pred_check_branch
      %34 = sbr.rel (0) target = $region9
    $region8: #{tpu_custom_call.1} parent=1 // pred_region
      %s36 = ssub.s32 1024, 1024
      %37 = vsyncadd [#allocation6], %s36
      %s38 = sshll.u32 [#allocation5], 4
      %s39 = int_to_ptr.vmem [resolvable:$true] %s38
      %44 = dma.hbm_to_vmem [thread:$0]  %s1, 1024, %s39, [#allocation6], 512, 512, 32
    $region9: #{tpu_custom_call.1} parent=1 // pred_fallthru
      _
    // Predicated region
    $region10: #{tpu_custom_call.1} parent=1 // pred_check
      _
    $region11: #{tpu_custom_call.1} parent=1 // pred_check_branch
      %46 = sbr.rel (0) target = $region13
    $region12: #{tpu_custom_call.1} parent=1 // pred_region
      _
    $region13: #{tpu_custom_call.1} parent=1 // pred_fallthru
      _
    // Predicated region
    $region14: #{tpu_custom_call.1} parent=1 // pred_check
      _
    $region15: #{tpu_custom_call.1} parent=1 // pred_check_branch
      %48 = sbr.rel (0) target = $region17
    $region16: #{tpu_custom_call.1} parent=1 // pred_region
      _
    $region17: #{tpu_custom_call.1} parent=1 // pred_fallthru
      _
    // Predicated region
    $region18: #{tpu_custom_call.1} parent=1 // pred_check
      _
    $region19: #{tpu_custom_call.1} parent=1 // pred_check_branch
      %50 = sbr.rel (0) target = $region21
    $region20: #{tpu_custom_call.1} parent=1 // pred_region
      %s52 = ssub.s32 16384, 16384
      %53 = vsyncadd [#allocation6], %s52
      %s54 = sshll.u32 [#allocation7], 4
      %s55 = int_to_ptr.vmem [resolvable:$true] %s54
      %60 = dma.hbm_to_vmem [thread:$0]  %s4, 16384, %s55, [#allocation6], 256, 256, 16
    $region21: #{tpu_custom_call.1} parent=1 // pred_fallthru
      _
    // Predicated region
    $region22: #{tpu_custom_call.1} parent=1 // pred_check
      _
    $region23: #{tpu_custom_call.1} parent=1 // pred_check_branch
      %62 = sbr.rel (0) target = $region25
    $region24: #{tpu_custom_call.1} parent=1 // pred_region
      _
    $region25: #{tpu_custom_call.1} parent=1 // pred_fallthru
      _
    // Predicated region
    $region26: #{tpu_custom_call.1} parent=1 // pred_check
      _
    $region27: #{tpu_custom_call.1} parent=1 // pred_check_branch
      %64 = sbr.rel (0) target = $region29
    $region28: #{tpu_custom_call.1} parent=1 // pred_region
      %s66 = ssub.s32 1024, 1024
      %67 = vsyncadd [#allocation9], %s66
      %s68 = sshll.u32 [#allocation8], 4
      %s69 = int_to_ptr.vmem [resolvable:$true] %s68
      %74 = dma.hbm_to_vmem [thread:$0]  %s6, 1024, %s69, [#allocation9], 512, 512, 32
    $region29: #{tpu_custom_call.1} parent=1 // pred_fallthru
      _
    // Predicated region
    $region30: #{tpu_custom_call.1} parent=1 // pred_check
      _
    $region31: #{tpu_custom_call.1} parent=1 // pred_check_branch
      %76 = sbr.rel (0) target = $region33
    $region32: #{tpu_custom_call.1} parent=1 // pred_region
      _
    $region33: #{tpu_custom_call.1} parent=1 // pred_fallthru
      _
    // Predicated region
    $region34: #{tpu_custom_call.1} parent=1 // pred_check
      _
    $region35: #{tpu_custom_call.1} parent=1 // pred_check_branch
      %78 = sbr.rel (0) target = $region37
    $region36: #{tpu_custom_call.1} parent=1 // pred_region
      _
    $region37: #{tpu_custom_call.1} parent=1 // pred_fallthru
      _
    // Predicated region
    $region38: #{tpu_custom_call.1} parent=1 // pred_check
      _
    $region39: #{tpu_custom_call.1} parent=1 // pred_check_branch
      %80 = sbr.rel (0) target = $region41
    $region40: #{tpu_custom_call.1} parent=1 // pred_region
      _
    $region41: #{tpu_custom_call.1} parent=1 // pred_fallthru
      _
    // Predicated region
    $region42: #{tpu_custom_call.1} parent=1 // pred_check
      _
    $region43: #{tpu_custom_call.1} parent=1 // pred_check_branch
      %82 = sbr.rel (0) target = $region45
    $region44: #{tpu_custom_call.1} parent=1 // pred_region
      _
    $region45: #{tpu_custom_call.1} parent=1 // pred_fallthru
      _
    // Predicated region
    $region46: #{tpu_custom_call.1} parent=1 // pred_check
      _
    $region47: #{tpu_custom_call.1} parent=1 // pred_check_branch
      %84 = sbr.rel (0) target = $region49
    $region48: #{tpu_custom_call.1} parent=1 // pred_region
      _
    $region49: #{tpu_custom_call.1} parent=1 // pred_fallthru
      _
    // Predicated region
    $region50: #{tpu_custom_call.1} parent=1 // pred_check
      _
    $region51: #{tpu_custom_call.1} parent=1 // pred_check_branch
      %86 = sbr.rel (0) target = $region53
    $region52: #{tpu_custom_call.1} parent=1 // pred_region
      %87 = dma.done [#allocation3], 2048
    $region53: #{tpu_custom_call.1} parent=1 // pred_fallthru
      _
    // Predicated region
    $region54: #{tpu_custom_call.1} parent=1 // pred_check
      _
    $region55: #{tpu_custom_call.1} parent=1 // pred_check_branch
      %89 = sbr.rel (0) target = $region57
    $region56: #{tpu_custom_call.1} parent=1 // pred_region
      %90 = dma.done [#allocation6], 1024
    $region57: #{tpu_custom_call.1} parent=1 // pred_fallthru
      _
    // Predicated region
    $region58: #{tpu_custom_call.1} parent=1 // pred_check
      _
    $region59: #{tpu_custom_call.1} parent=1 // pred_check_branch
      %92 = sbr.rel (0) target = $region61
    $region60: #{tpu_custom_call.1} parent=1 // pred_region
      %93 = dma.done [#allocation6], 16384
    $region61: #{tpu_custom_call.1} parent=1 // pred_fallthru
      _
    // Predicated region
    $region62: #{tpu_custom_call.1} parent=1 // pred_check
      _
    $region63: #{tpu_custom_call.1} parent=1 // pred_check_branch
      %95 = sbr.rel (0) target = $region65
    $region64: #{tpu_custom_call.1} parent=1 // pred_region
      %96 = dma.done [#allocation9], 1024
    $region65: #{tpu_custom_call.1} parent=1 // pred_fallthru
      _
    %v97 = vld [vmem:[#allocation2] sm:$0xff]
    %v98 = vld [vmem:[#allocation2 + $0x8] sm:$0xff]
    %v99 = vld [vmem:[#allocation2 + $0x10] sm:$0xff]
    %v100 = vld [vmem:[#allocation2 + $0x18] sm:$0xff]
    %v101 = vld [vmem:[#allocation2 + $0x20] sm:$0xff]
    %v102 = vld [vmem:[#allocation2 + $0x28] sm:$0xff]
    %v103 = vld [vmem:[#allocation2 + $0x30] sm:$0xff]
    %v104 = vld [vmem:[#allocation2 + $0x38] sm:$0xff]
    %v105 = vld [vmem:[#allocation2 + $0x40] sm:$0xff]
    %v106 = vld [vmem:[#allocation2 + $0x48] sm:$0xff]
    %v107 = vld [vmem:[#allocation2 + $0x50] sm:$0xff]
    %v108 = vld [vmem:[#allocation2 + $0x58] sm:$0xff]
    %v109 = vld [vmem:[#allocation2 + $0x60] sm:$0xff]
    %v110 = vld [vmem:[#allocation2 + $0x68] sm:$0xff]
    %v111 = vld [vmem:[#allocation2 + $0x70] sm:$0xff]
    %v112 = vld [vmem:[#allocation2 + $0x78] sm:$0xff]
    %v113 = vld [vmem:[%s2] sm:$0xff]
    %v114 = vld [vmem:[%s2 + $0x8] sm:$0xff]
    %v115 = vld [vmem:[%s2 + $0x10] sm:$0xff]
    %v116 = vld [vmem:[%s2 + $0x18] sm:$0xff]
    %v117 = vld [vmem:[#allocation5] sm:$0xff]
    %v118 = vld [vmem:[#allocation5 + $0x8] sm:$0xff]
    %v119 = vld [vmem:[#allocation5 + $0x10] sm:$0xff]
    %v120 = vld [vmem:[#allocation5 + $0x18] sm:$0xff]
    %v121 = vld [vmem:[#allocation5 + $0x20] sm:$0x1]
    %v122 = vld [vmem:[#allocation5 + $0x28] sm:$0x1]
    %v123 = vld [vmem:[#allocation5 + $0x30] sm:$0x1]
    %v124 = vld [vmem:[#allocation5 + $0x38] sm:$0x1]
    %v125 = vrot.slane %v97, 7
    %v126 = vrot.slane %v98, 7
    %v127 = vrot.slane %v99, 7
    %v128 = vrot.slane %v100, 7
    %v129 = vrot.slane %v101, 7
    %v130 = vrot.slane %v102, 7
    %v131 = vrot.slane %v103, 7
    %v132 = vrot.slane %v104, 7
    %v133 = vrot.slane %v105, 7
    %v134 = vrot.slane %v106, 7
    %v135 = vrot.slane %v107, 7
    %v136 = vrot.slane %v108, 7
    %v137 = vrot.slane %v109, 7
    %v138 = vrot.slane %v110, 7
    %v139 = vrot.slane %v111, 7
    %v140 = vrot.slane %v112, 7
    %v141 = vlaneseq
    %v142 = vshrl.u32 %v141, 7
    %vm143 = vcmp.lt.s32.totalorder %v142, 1
    %v144 = vsel %vm143, %v133, %v137
    %v145 = vsel %vm143, %v134, %v138
    %v146 = vsel %vm143, %v135, %v139
    %v147 = vsel %vm143, %v136, %v140
    %v148 = vsel %vm143, %v129, %v133
    %v149 = vsel %vm143, %v130, %v134
    %v150 = vsel %vm143, %v131, %v135
    %v151 = vsel %vm143, %v132, %v136
    %v152 = vsel %vm143, %v125, %v129
    %v153 = vsel %vm143, %v126, %v130
    %v154 = vsel %vm143, %v127, %v131
    %v155 = vsel %vm143, %v128, %v132
    %v156 = vsel %vm143, %v137, %v125
    %v157 = vsel %vm143, %v138, %v126
    %v158 = vsel %vm143, %v139, %v127
    %v159 = vsel %vm143, %v140, %v128
    %161 = vset.pattern.permute.xlu0 0
    %162 = vperm.xlu0 %161, %v113
    %v163 = vpop.permute.xlu0 %162
    %166 = vset.pattern.permute.xlu0 0
    %167 = vperm.xlu0 %166, %v114
    %v168 = vpop.permute.xlu0 %167
    %171 = vset.pattern.permute.xlu0 0
    %172 = vperm.xlu0 %171, %v115
    %v173 = vpop.permute.xlu0 %172
    %176 = vset.pattern.permute.xlu0 0
    %177 = vperm.xlu0 %176, %v116
    %v178 = vpop.permute.xlu0 %177
    %v180 = vmul.f32 %v156, %v163
    %v181 = vmul.f32 %v157, %v163
    %v182 = vmul.f32 %v158, %v163
    %v183 = vmul.f32 %v159, %v163
    %v184 = vmul.f32 %v152, %v168
    %v185 = vmul.f32 %v153, %v168
    %v186 = vmul.f32 %v154, %v168
    %v187 = vmul.f32 %v155, %v168
    %v188 = vmul.f32 %v148, %v173
    %v189 = vmul.f32 %v149, %v173
    %v190 = vmul.f32 %v150, %v173
    %v191 = vmul.f32 %v151, %v173
    %v192 = vmul.f32 %v144, %v178
    %v193 = vmul.f32 %v145, %v178
    %v194 = vmul.f32 %v146, %v178
    %v195 = vmul.f32 %v147, %v178
    %196 = vrot.lane.b32.xlu0 %v180, 32
    %v197 = vpop.permute.xlu0 %196
    %198 = vrot.lane.b32.xlu0 %v184, 32
    %v199 = vpop.permute.xlu0 %198
    %200 = vrot.lane.b32.xlu0 %v188, 32
    %v201 = vpop.permute.xlu0 %200
    %202 = vrot.lane.b32.xlu0 %v192, 32
    %v203 = vpop.permute.xlu0 %202
    %204 = vrot.lane.b32.xlu0 %v181, 32
    %v205 = vpop.permute.xlu0 %204
    %206 = vrot.lane.b32.xlu0 %v185, 32
    %v207 = vpop.permute.xlu0 %206
    %208 = vrot.lane.b32.xlu0 %v189, 32
    %v209 = vpop.permute.xlu0 %208
    %210 = vrot.lane.b32.xlu0 %v193, 32
    %v211 = vpop.permute.xlu0 %210
    %212 = vrot.lane.b32.xlu0 %v182, 32
    %v213 = vpop.permute.xlu0 %212
    %214 = vrot.lane.b32.xlu0 %v186, 32
    %v215 = vpop.permute.xlu0 %214
    %216 = vrot.lane.b32.xlu0 %v190, 32
    %v217 = vpop.permute.xlu0 %216
    %218 = vrot.lane.b32.xlu0 %v194, 32
    %v219 = vpop.permute.xlu0 %218
    %220 = vrot.lane.b32.xlu0 %v183, 32
    %v221 = vpop.permute.xlu0 %220
    %222 = vrot.lane.b32.xlu0 %v187, 32
    %v223 = vpop.permute.xlu0 %222
    %224 = vrot.lane.b32.xlu0 %v191, 32
    %v225 = vpop.permute.xlu0 %224
    %226 = vrot.lane.b32.xlu0 %v195, 32
    %v227 = vpop.permute.xlu0 %226
    %v228 = vlaneseq
    %v229 = vand.u32 %v228, 127
    %vm230 = vcmp.lt.s32.totalorder %v229, 32
    %v231 = vsel %vm230, %v213, %v221
    %v232 = vsel %vm230, %v215, %v223
    %v233 = vsel %vm230, %v217, %v225
    %v234 = vsel %vm230, %v219, %v227
    %v235 = vsel %vm230, %v205, %v213
    %v236 = vsel %vm230, %v207, %v215
    %v237 = vsel %vm230, %v209, %v217
    %v238 = vsel %vm230, %v211, %v219
    %v239 = vsel %vm230, %v197, %v205
    %v240 = vsel %vm230, %v199, %v207
    %v241 = vsel %vm230, %v201, %v209
    %v242 = vsel %vm230, %v203, %v211
    %v243 = vsel %vm230, %v221, %v197
    %v244 = vsel %vm230, %v223, %v199
    %v245 = vsel %vm230, %v225, %v201
    %v246 = vsel %vm230, %v227, %v203
    %v247 = vlaneseq
    %v248 = vshrl.u32 %v247, 7
    %v249 = vsub.s32 0, %v248
    %v250 = vrot.slane %v117, %v249
    %v251 = vlaneseq
    %v252 = vshrl.u32 %v251, 7
    %v253 = vsub.s32 0, %v252
    %v254 = vrot.slane %v118, %v253
    %v255 = vlaneseq
    %v256 = vshrl.u32 %v255, 7
    %v257 = vsub.s32 0, %v256
    %v258 = vrot.slane %v119, %v257
    %v259 = vlaneseq
    %v260 = vshrl.u32 %v259, 7
    %v261 = vsub.s32 0, %v260
    %v262 = vrot.slane %v120, %v261
    %v263 = vmul.f32 %v243, %v250
    %v264 = vmul.f32 %v239, %v254
    %v265 = vmul.f32 %v235, %v258
    %v266 = vmul.f32 %v231, %v262
    %v267 = vmul.f32 %v244, %v250
    %v268 = vmul.f32 %v240, %v254
    %v269 = vmul.f32 %v236, %v258
    %v270 = vmul.f32 %v232, %v262
    %v271 = vmul.f32 %v245, %v250
    %v272 = vmul.f32 %v241, %v254
    %v273 = vmul.f32 %v237, %v258
    %v274 = vmul.f32 %v233, %v262
    %v275 = vmul.f32 %v246, %v250
    %v276 = vmul.f32 %v242, %v254
    %v277 = vmul.f32 %v238, %v258
    %v278 = vmul.f32 %v234, %v262
    %v279 = vlaneseq
    %v280 = vshrl.u32 %v279, 7
    %v281 = vsub.s32 1, %v280
    %v282 = vrot.slane %v117, %v281
    %v283 = vlaneseq
    %v284 = vshrl.u32 %v283, 7
    %v285 = vsub.s32 1, %v284
    %v286 = vrot.slane %v118, %v285
    %v287 = vlaneseq
    %v288 = vshrl.u32 %v287, 7
    %v289 = vsub.s32 1, %v288
    %v290 = vrot.slane %v119, %v289
    %v291 = vlaneseq
    %v292 = vshrl.u32 %v291, 7
    %v293 = vsub.s32 1, %v292
    %v294 = vrot.slane %v120, %v293
    %v295 = vmul.f32 %v180, %v282
    %v296 = vmul.f32 %v181, %v286
    %v297 = vmul.f32 %v182, %v290
    %v298 = vmul.f32 %v183, %v294
    %v299 = vmul.f32 %v184, %v282
    %v300 = vmul.f32 %v185, %v286
    %v301 = vmul.f32 %v186, %v290
    %v302 = vmul.f32 %v187, %v294
    %v303 = vmul.f32 %v188, %v282
    %v304 = vmul.f32 %v189, %v286
    %v305 = vmul.f32 %v190, %v290
    %v306 = vmul.f32 %v191, %v294
    %v307 = vmul.f32 %v192, %v282
    %v308 = vmul.f32 %v193, %v286
    %v309 = vmul.f32 %v194, %v290
    %v310 = vmul.f32 %v195, %v294
    %v311 = vadd.f32 %v263, %v295
    %v312 = vadd.f32 %v264, %v296
    %v313 = vadd.f32 %v265, %v297
    %v314 = vadd.f32 %v266, %v298
    %v315 = vadd.f32 %v267, %v299
    %v316 = vadd.f32 %v268, %v300
    %v317 = vadd.f32 %v269, %v301
    %v318 = vadd.f32 %v270, %v302
    %v319 = vadd.f32 %v271, %v303
    %v320 = vadd.f32 %v272, %v304
    %v321 = vadd.f32 %v273, %v305
    %v322 = vadd.f32 %v274, %v306
    %v323 = vadd.f32 %v275, %v307
    %v324 = vadd.f32 %v276, %v308
    %v325 = vadd.f32 %v277, %v309
    %v326 = vadd.f32 %v278, %v310
    %327 = vrot.lane.b32.xlu0 %v180, 96
    %v328 = vpop.permute.xlu0 %327
    %329 = vrot.lane.b32.xlu0 %v184, 96
    %v330 = vpop.permute.xlu0 %329
    %331 = vrot.lane.b32.xlu0 %v188, 96
    %v332 = vpop.permute.xlu0 %331
    %333 = vrot.lane.b32.xlu0 %v192, 96
    %v334 = vpop.permute.xlu0 %333
    %335 = vrot.lane.b32.xlu0 %v181, 96
    %v336 = vpop.permute.xlu0 %335
    %337 = vrot.lane.b32.xlu0 %v185, 96
    %v338 = vpop.permute.xlu0 %337
    %339 = vrot.lane.b32.xlu0 %v189, 96
    %v340 = vpop.permute.xlu0 %339
    %341 = vrot.lane.b32.xlu0 %v193, 96
    %v342 = vpop.permute.xlu0 %341
    %343 = vrot.lane.b32.xlu0 %v182, 96
    %v344 = vpop.permute.xlu0 %343
    %345 = vrot.lane.b32.xlu0 %v186, 96
    %v346 = vpop.permute.xlu0 %345
    %347 = vrot.lane.b32.xlu0 %v190, 96
    %v348 = vpop.permute.xlu0 %347
    %349 = vrot.lane.b32.xlu0 %v194, 96
    %v350 = vpop.permute.xlu0 %349
    %351 = vrot.lane.b32.xlu0 %v183, 96
    %v352 = vpop.permute.xlu0 %351
    %353 = vrot.lane.b32.xlu0 %v187, 96
    %v354 = vpop.permute.xlu0 %353
    %355 = vrot.lane.b32.xlu0 %v191, 96
    %v356 = vpop.permute.xlu0 %355
    %357 = vrot.lane.b32.xlu0 %v195, 96
    %v358 = vpop.permute.xlu0 %357
    %vm359 = vcmp.lt.s32.totalorder %v229, 96
    %v360 = vsel %vm359, %v344, %v352
    %v361 = vsel %vm359, %v346, %v354
    %v362 = vsel %vm359, %v348, %v356
    %v363 = vsel %vm359, %v350, %v358
    %v364 = vsel %vm359, %v336, %v344
    %v365 = vsel %vm359, %v338, %v346
    %v366 = vsel %vm359, %v340, %v348
    %v367 = vsel %vm359, %v342, %v350
    %v368 = vsel %vm359, %v328, %v336
    %v369 = vsel %vm359, %v330, %v338
    %v370 = vsel %vm359, %v332, %v340
    %v371 = vsel %vm359, %v334, %v342
    %v372 = vsel %vm359, %v352, %v328
    %v373 = vsel %vm359, %v354, %v330
    %v374 = vsel %vm359, %v356, %v332
    %v375 = vsel %vm359, %v358, %v334
    %v376 = vlaneseq
    %v377 = vshrl.u32 %v376, 7
    %v378 = vsub.s32 2, %v377
    %v379 = vrot.slane %v117, %v378
    %v380 = vlaneseq
    %v381 = vshrl.u32 %v380, 7
    %v382 = vsub.s32 2, %v381
    %v383 = vrot.slane %v118, %v382
    %v384 = vlaneseq
    %v385 = vshrl.u32 %v384, 7
    %v386 = vsub.s32 2, %v385
    %v387 = vrot.slane %v119, %v386
    %v388 = vlaneseq
    %v389 = vshrl.u32 %v388, 7
    %v390 = vsub.s32 2, %v389
    %v391 = vrot.slane %v120, %v390
    %v392 = vmul.f32 %v368, %v379
    %v393 = vmul.f32 %v364, %v383
    %v394 = vmul.f32 %v360, %v387
    %v395 = vmul.f32 %v372, %v391
    %v396 = vmul.f32 %v369, %v379
    %v397 = vmul.f32 %v365, %v383
    %v398 = vmul.f32 %v361, %v387
    %v399 = vmul.f32 %v373, %v391
    %v400 = vmul.f32 %v370, %v379
    %v401 = vmul.f32 %v366, %v383
    %v402 = vmul.f32 %v362, %v387
    %v403 = vmul.f32 %v374, %v391
    %v404 = vmul.f32 %v371, %v379
    %v405 = vmul.f32 %v367, %v383
    %v406 = vmul.f32 %v363, %v387
    %v407 = vmul.f32 %v375, %v391
    %v408 = vadd.f32 %v311, %v392
    %v409 = vadd.f32 %v312, %v393
    %v410 = vadd.f32 %v313, %v394
    %v411 = vadd.f32 %v314, %v395
    %v412 = vadd.f32 %v315, %v396
    %v413 = vadd.f32 %v316, %v397
    %v414 = vadd.f32 %v317, %v398
    %v415 = vadd.f32 %v318, %v399
    %v416 = vadd.f32 %v319, %v400
    %v417 = vadd.f32 %v320, %v401
    %v418 = vadd.f32 %v321, %v402
    %v419 = vadd.f32 %v322, %v403
    %v420 = vadd.f32 %v323, %v404
    %v421 = vadd.f32 %v324, %v405
    %v422 = vadd.f32 %v325, %v406
    %v423 = vadd.f32 %v326, %v407
    %424 = vrot.lane.b32.xlu0 %v97, 32
    %v425 = vpop.permute.xlu0 %424
    %426 = vrot.lane.b32.xlu0 %v101, 32
    %v427 = vpop.permute.xlu0 %426
    %428 = vrot.lane.b32.xlu0 %v105, 32
    %v429 = vpop.permute.xlu0 %428
    %430 = vrot.lane.b32.xlu0 %v109, 32
    %v431 = vpop.permute.xlu0 %430
    %432 = vrot.lane.b32.xlu0 %v98, 32
    %v433 = vpop.permute.xlu0 %432
    %434 = vrot.lane.b32.xlu0 %v102, 32
    %v435 = vpop.permute.xlu0 %434
    %436 = vrot.lane.b32.xlu0 %v106, 32
    %v437 = vpop.permute.xlu0 %436
    %438 = vrot.lane.b32.xlu0 %v110, 32
    %v439 = vpop.permute.xlu0 %438
    %440 = vrot.lane.b32.xlu0 %v99, 32
    %v441 = vpop.permute.xlu0 %440
    %442 = vrot.lane.b32.xlu0 %v103, 32
    %v443 = vpop.permute.xlu0 %442
    %444 = vrot.lane.b32.xlu0 %v107, 32
    %v445 = vpop.permute.xlu0 %444
    %446 = vrot.lane.b32.xlu0 %v111, 32
    %v447 = vpop.permute.xlu0 %446
    %448 = vrot.lane.b32.xlu0 %v100, 32
    %v449 = vpop.permute.xlu0 %448
    %450 = vrot.lane.b32.xlu0 %v104, 32
    %v451 = vpop.permute.xlu0 %450
    %452 = vrot.lane.b32.xlu0 %v108, 32
    %v453 = vpop.permute.xlu0 %452
    %454 = vrot.lane.b32.xlu0 %v112, 32
    %v455 = vpop.permute.xlu0 %454
    %v456 = vsel %vm230, %v441, %v449
    %v457 = vsel %vm230, %v443, %v451
    %v458 = vsel %vm230, %v445, %v453
    %v459 = vsel %vm230, %v447, %v455
    %v460 = vsel %vm230, %v433, %v441
    %v461 = vsel %vm230, %v435, %v443
    %v462 = vsel %vm230, %v437, %v445
    %v463 = vsel %vm230, %v439, %v447
    %v464 = vsel %vm230, %v425, %v433
    %v465 = vsel %vm230, %v427, %v435
    %v466 = vsel %vm230, %v429, %v437
    %v467 = vsel %vm230, %v431, %v439
    %v468 = vsel %vm230, %v449, %v425
    %v469 = vsel %vm230, %v451, %v427
    %v470 = vsel %vm230, %v453, %v429
    %v471 = vsel %vm230, %v455, %v431
    %v472 = vlaneseq
    %v473 = vshrl.u32 %v472, 7
    %v474 = vsub.s32 3, %v473
    %v475 = vrot.slane %v117, %v474
    %v476 = vlaneseq
    %v477 = vshrl.u32 %v476, 7
    %v478 = vsub.s32 3, %v477
    %v479 = vrot.slane %v118, %v478
    %v480 = vlaneseq
    %v481 = vshrl.u32 %v480, 7
    %v482 = vsub.s32 3, %v481
    %v483 = vrot.slane %v119, %v482
    %v484 = vlaneseq
    %v485 = vshrl.u32 %v484, 7
    %v486 = vsub.s32 3, %v485
    %v487 = vrot.slane %v120, %v486
    %v488 = vmul.f32 %v468, %v475
    %v489 = vmul.f32 %v464, %v479
    %v490 = vmul.f32 %v460, %v483
    %v491 = vmul.f32 %v456, %v487
    %v492 = vmul.f32 %v469, %v475
    %v493 = vmul.f32 %v465, %v479
    %v494 = vmul.f32 %v461, %v483
    %v495 = vmul.f32 %v457, %v487
    %v496 = vmul.f32 %v470, %v475
    %v497 = vmul.f32 %v466, %v479
    %v498 = vmul.f32 %v462, %v483
    %v499 = vmul.f32 %v458, %v487
    %v500 = vmul.f32 %v471, %v475
    %v501 = vmul.f32 %v467, %v479
    %v502 = vmul.f32 %v463, %v483
    %v503 = vmul.f32 %v459, %v487
    %v504 = vadd.f32 %v408, %v488
    %v505 = vadd.f32 %v409, %v489
    %v506 = vadd.f32 %v410, %v490
    %v507 = vadd.f32 %v411, %v491
    %v508 = vadd.f32 %v412, %v492
    %v509 = vadd.f32 %v413, %v493
    %v510 = vadd.f32 %v414, %v494
    %v511 = vadd.f32 %v415, %v495
    %v512 = vadd.f32 %v416, %v496
    %v513 = vadd.f32 %v417, %v497
    %v514 = vadd.f32 %v418, %v498
    %v515 = vadd.f32 %v419, %v499
    %v516 = vadd.f32 %v420, %v500
    %v517 = vadd.f32 %v421, %v501
    %v518 = vadd.f32 %v422, %v502
    %v519 = vadd.f32 %v423, %v503
    %v520 = vlaneseq
    %v521 = vshrl.u32 %v520, 7
    %v522 = vsub.s32 4, %v521
    %v523 = vrot.slane %v117, %v522
    %v524 = vlaneseq
    %v525 = vshrl.u32 %v524, 7
    %v526 = vsub.s32 4, %v525
    %v527 = vrot.slane %v118, %v526
    %v528 = vlaneseq
    %v529 = vshrl.u32 %v528, 7
    %v530 = vsub.s32 4, %v529
    %v531 = vrot.slane %v119, %v530
    %v532 = vlaneseq
    %v533 = vshrl.u32 %v532, 7
    %v534 = vsub.s32 4, %v533
    %v535 = vrot.slane %v120, %v534
    %v536 = vmul.f32 %v97, %v523
    %v537 = vmul.f32 %v98, %v527
    %v538 = vmul.f32 %v99, %v531
    %v539 = vmul.f32 %v100, %v535
    %v540 = vmul.f32 %v101, %v523
    %v541 = vmul.f32 %v102, %v527
    %v542 = vmul.f32 %v103, %v531
    %v543 = vmul.f32 %v104, %v535
    %v544 = vmul.f32 %v105, %v523
    %v545 = vmul.f32 %v106, %v527
    %v546 = vmul.f32 %v107, %v531
    %v547 = vmul.f32 %v108, %v535
    %v548 = vmul.f32 %v109, %v523
    %v549 = vmul.f32 %v110, %v527
    %v550 = vmul.f32 %v111, %v531
    %v551 = vmul.f32 %v112, %v535
    %v552 = vadd.f32 %v504, %v536
    %v553 = vadd.f32 %v505, %v537
    %v554 = vadd.f32 %v506, %v538
    %v555 = vadd.f32 %v507, %v539
    %v556 = vadd.f32 %v508, %v540
    %v557 = vadd.f32 %v509, %v541
    %v558 = vadd.f32 %v510, %v542
    %v559 = vadd.f32 %v511, %v543
    %v560 = vadd.f32 %v512, %v544
    %v561 = vadd.f32 %v513, %v545
    %v562 = vadd.f32 %v514, %v546
    %v563 = vadd.f32 %v515, %v547
    %v564 = vadd.f32 %v516, %v548
    %v565 = vadd.f32 %v517, %v549
    %v566 = vadd.f32 %v518, %v550
    %v567 = vadd.f32 %v519, %v551
    %568 = vrot.lane.b32.xlu0 %v97, 96
    %v569 = vpop.permute.xlu0 %568
    %570 = vrot.lane.b32.xlu0 %v101, 96
    %v571 = vpop.permute.xlu0 %570
    %572 = vrot.lane.b32.xlu0 %v105, 96
    %v573 = vpop.permute.xlu0 %572
    %574 = vrot.lane.b32.xlu0 %v109, 96
    %v575 = vpop.permute.xlu0 %574
    %576 = vrot.lane.b32.xlu0 %v98, 96
    %v577 = vpop.permute.xlu0 %576
    %578 = vrot.lane.b32.xlu0 %v102, 96
    %v579 = vpop.permute.xlu0 %578
    %580 = vrot.lane.b32.xlu0 %v106, 96
    %v581 = vpop.permute.xlu0 %580
    %582 = vrot.lane.b32.xlu0 %v110, 96
    %v583 = vpop.permute.xlu0 %582
    %584 = vrot.lane.b32.xlu0 %v99, 96
    %v585 = vpop.permute.xlu0 %584
    %586 = vrot.lane.b32.xlu0 %v103, 96
    %v587 = vpop.permute.xlu0 %586
    %588 = vrot.lane.b32.xlu0 %v107, 96
    %v589 = vpop.permute.xlu0 %588
    %590 = vrot.lane.b32.xlu0 %v111, 96
    %v591 = vpop.permute.xlu0 %590
    %592 = vrot.lane.b32.xlu0 %v100, 96
    %v593 = vpop.permute.xlu0 %592
    %594 = vrot.lane.b32.xlu0 %v104, 96
    %v595 = vpop.permute.xlu0 %594
    %596 = vrot.lane.b32.xlu0 %v108, 96
    %v597 = vpop.permute.xlu0 %596
    %598 = vrot.lane.b32.xlu0 %v112, 96
    %v599 = vpop.permute.xlu0 %598
    %v600 = vsel %vm359, %v585, %v593
    %v601 = vsel %vm359, %v587, %v595
    %v602 = vsel %vm359, %v589, %v597
    %v603 = vsel %vm359, %v591, %v599
    %v604 = vsel %vm359, %v577, %v585
    %v605 = vsel %vm359, %v579, %v587
    %v606 = vsel %vm359, %v581, %v589
    %v607 = vsel %vm359, %v583, %v591
    %v608 = vsel %vm359, %v569, %v577
    %v609 = vsel %vm359, %v571, %v579
    %v610 = vsel %vm359, %v573, %v581
    %v611 = vsel %vm359, %v575, %v583
    %v612 = vsel %vm359, %v593, %v569
    %v613 = vsel %vm359, %v595, %v571
    %v614 = vsel %vm359, %v597, %v573
    %v615 = vsel %vm359, %v599, %v575
    %v616 = vlaneseq
    %v617 = vshrl.u32 %v616, 7
    %v618 = vsub.s32 5, %v617
    %v619 = vrot.slane %v117, %v618
    %v620 = vlaneseq
    %v621 = vshrl.u32 %v620, 7
    %v622 = vsub.s32 5, %v621
    %v623 = vrot.slane %v118, %v622
    %v624 = vlaneseq
    %v625 = vshrl.u32 %v624, 7
    %v626 = vsub.s32 5, %v625
    %v627 = vrot.slane %v119, %v626
    %v628 = vlaneseq
    %v629 = vshrl.u32 %v628, 7
    %v630 = vsub.s32 5, %v629
    %v631 = vrot.slane %v120, %v630
    %v632 = vmul.f32 %v608, %v619
    %v633 = vmul.f32 %v604, %v623
    %v634 = vmul.f32 %v600, %v627
    %v635 = vmul.f32 %v612, %v631
    %v636 = vmul.f32 %v609, %v619
    %v637 = vmul.f32 %v605, %v623
    %v638 = vmul.f32 %v601, %v627
    %v639 = vmul.f32 %v613, %v631
    %v640 = vmul.f32 %v610, %v619
    %v641 = vmul.f32 %v606, %v623
    %v642 = vmul.f32 %v602, %v627
    %v643 = vmul.f32 %v614, %v631
    %v644 = vmul.f32 %v611, %v619
    %v645 = vmul.f32 %v607, %v623
    %v646 = vmul.f32 %v603, %v627
    %v647 = vmul.f32 %v615, %v631
    %v648 = vadd.f32 %v552, %v632
    %v649 = vadd.f32 %v553, %v633
    %v650 = vadd.f32 %v554, %v634
    %v651 = vadd.f32 %v555, %v635
    %v652 = vadd.f32 %v556, %v636
    %v653 = vadd.f32 %v557, %v637
    %v654 = vadd.f32 %v558, %v638
    %v655 = vadd.f32 %v559, %v639
    %v656 = vadd.f32 %v560, %v640
    %v657 = vadd.f32 %v561, %v641
    %v658 = vadd.f32 %v562, %v642
    %v659 = vadd.f32 %v563, %v643
    %v660 = vadd.f32 %v564, %v644
    %v661 = vadd.f32 %v565, %v645
    %v662 = vadd.f32 %v566, %v646
    %v663 = vadd.f32 %v567, %v647
    %v664 = vrot.slane %v97, 1
    %v665 = vrot.slane %v98, 1
    %v666 = vrot.slane %v99, 1
    %v667 = vrot.slane %v100, 1
    %v668 = vrot.slane %v101, 1
    %v669 = vrot.slane %v102, 1
    %v670 = vrot.slane %v103, 1
    %v671 = vrot.slane %v104, 1
    %v672 = vrot.slane %v105, 1
    %v673 = vrot.slane %v106, 1
    %v674 = vrot.slane %v107, 1
    %v675 = vrot.slane %v108, 1
    %v676 = vrot.slane %v109, 1
    %v677 = vrot.slane %v110, 1
    %v678 = vrot.slane %v111, 1
    %v679 = vrot.slane %v112, 1
    %vm680 = vcmp.lt.s32.totalorder %v142, 7
    %v681 = vsel %vm680, %v672, %v676
    %v682 = vsel %vm680, %v673, %v677
    %v683 = vsel %vm680, %v674, %v678
    %v684 = vsel %vm680, %v675, %v679
    %v685 = vsel %vm680, %v668, %v672
    %v686 = vsel %vm680, %v669, %v673
    %v687 = vsel %vm680, %v670, %v674
    %v688 = vsel %vm680, %v671, %v675
    %v689 = vsel %vm680, %v664, %v668
    %v690 = vsel %vm680, %v665, %v669
    %v691 = vsel %vm680, %v666, %v670
    %v692 = vsel %vm680, %v667, %v671
    %v693 = vsel %vm680, %v676, %v664
    %v694 = vsel %vm680, %v677, %v665
    %v695 = vsel %vm680, %v678, %v666
    %v696 = vsel %vm680, %v679, %v667
    %697 = vset.pattern.permute.xlu0 2
    %698 = vperm.xlu0 %697, %v113
    %v699 = vpop.permute.xlu0 %698
    %701 = vset.pattern.permute.xlu0 2
    %702 = vperm.xlu0 %701, %v114
    %v703 = vpop.permute.xlu0 %702
    %705 = vset.pattern.permute.xlu0 2
    %706 = vperm.xlu0 %705, %v115
    %v707 = vpop.permute.xlu0 %706
    %709 = vset.pattern.permute.xlu0 2
    %710 = vperm.xlu0 %709, %v116
    %v711 = vpop.permute.xlu0 %710
    %v713 = vmul.f32 %v689, %v699
    %v714 = vmul.f32 %v690, %v699
    %v715 = vmul.f32 %v691, %v699
    %v716 = vmul.f32 %v692, %v699
    %v717 = vmul.f32 %v685, %v703
    %v718 = vmul.f32 %v686, %v703
    %v719 = vmul.f32 %v687, %v703
    %v720 = vmul.f32 %v688, %v703
    %v721 = vmul.f32 %v681, %v707
    %v722 = vmul.f32 %v682, %v707
    %v723 = vmul.f32 %v683, %v707
    %v724 = vmul.f32 %v684, %v707
    %v725 = vmul.f32 %v693, %v711
    %v726 = vmul.f32 %v694, %v711
    %v727 = vmul.f32 %v695, %v711
    %v728 = vmul.f32 %v696, %v711
    %729 = vrot.lane.b32.xlu0 %v713, 32
    %v730 = vpop.permute.xlu0 %729
    %731 = vrot.lane.b32.xlu0 %v717, 32
    %v732 = vpop.permute.xlu0 %731
    %733 = vrot.lane.b32.xlu0 %v721, 32
    %v734 = vpop.permute.xlu0 %733
    %735 = vrot.lane.b32.xlu0 %v725, 32
    %v736 = vpop.permute.xlu0 %735
    %737 = vrot.lane.b32.xlu0 %v714, 32
    %v738 = vpop.permute.xlu0 %737
    %739 = vrot.lane.b32.xlu0 %v718, 32
    %v740 = vpop.permute.xlu0 %739
    %741 = vrot.lane.b32.xlu0 %v722, 32
    %v742 = vpop.permute.xlu0 %741
    %743 = vrot.lane.b32.xlu0 %v726, 32
    %v744 = vpop.permute.xlu0 %743
    %745 = vrot.lane.b32.xlu0 %v715, 32
    %v746 = vpop.permute.xlu0 %745
    %747 = vrot.lane.b32.xlu0 %v719, 32
    %v748 = vpop.permute.xlu0 %747
    %749 = vrot.lane.b32.xlu0 %v723, 32
    %v750 = vpop.permute.xlu0 %749
    %751 = vrot.lane.b32.xlu0 %v727, 32
    %v752 = vpop.permute.xlu0 %751
    %753 = vrot.lane.b32.xlu0 %v716, 32
    %v754 = vpop.permute.xlu0 %753
    %755 = vrot.lane.b32.xlu0 %v720, 32
    %v756 = vpop.permute.xlu0 %755
    %757 = vrot.lane.b32.xlu0 %v724, 32
    %v758 = vpop.permute.xlu0 %757
    %759 = vrot.lane.b32.xlu0 %v728, 32
    %v760 = vpop.permute.xlu0 %759
    %v761 = vsel %vm230, %v746, %v754
    %v762 = vsel %vm230, %v748, %v756
    %v763 = vsel %vm230, %v750, %v758
    %v764 = vsel %vm230, %v752, %v760
    %v765 = vsel %vm230, %v738, %v746
    %v766 = vsel %vm230, %v740, %v748
    %v767 = vsel %vm230, %v742, %v750
    %v768 = vsel %vm230, %v744, %v752
    %v769 = vsel %vm230, %v730, %v738
    %v770 = vsel %vm230, %v732, %v740
    %v771 = vsel %vm230, %v734, %v742
    %v772 = vsel %vm230, %v736, %v744
    %v773 = vsel %vm230, %v754, %v730
    %v774 = vsel %vm230, %v756, %v732
    %v775 = vsel %vm230, %v758, %v734
    %v776 = vsel %vm230, %v760, %v736
    %v777 = vlaneseq
    %v778 = vshrl.u32 %v777, 7
    %v779 = vsub.s32 6, %v778
    %v780 = vrot.slane %v117, %v779
    %v781 = vlaneseq
    %v782 = vshrl.u32 %v781, 7
    %v783 = vsub.s32 6, %v782
    %v784 = vrot.slane %v118, %v783
    %v785 = vlaneseq
    %v786 = vshrl.u32 %v785, 7
    %v787 = vsub.s32 6, %v786
    %v788 = vrot.slane %v119, %v787
    %v789 = vlaneseq
    %v790 = vshrl.u32 %v789, 7
    %v791 = vsub.s32 6, %v790
    %v792 = vrot.slane %v120, %v791
    %v793 = vmul.f32 %v773, %v780
    %v794 = vmul.f32 %v769, %v784
    %v795 = vmul.f32 %v765, %v788
    %v796 = vmul.f32 %v761, %v792
    %v797 = vmul.f32 %v774, %v780
    %v798 = vmul.f32 %v770, %v784
    %v799 = vmul.f32 %v766, %v788
    %v800 = vmul.f32 %v762, %v792
    %v801 = vmul.f32 %v775, %v780
    %v802 = vmul.f32 %v771, %v784
    %v803 = vmul.f32 %v767, %v788
    %v804 = vmul.f32 %v763, %v792
    %v805 = vmul.f32 %v776, %v780
    %v806 = vmul.f32 %v772, %v784
    %v807 = vmul.f32 %v768, %v788
    %v808 = vmul.f32 %v764, %v792
    %v809 = vadd.f32 %v648, %v793
    %v810 = vadd.f32 %v649, %v794
    %v811 = vadd.f32 %v650, %v795
    %v812 = vadd.f32 %v651, %v796
    %v813 = vadd.f32 %v652, %v797
    %v814 = vadd.f32 %v653, %v798
    %v815 = vadd.f32 %v654, %v799
    %v816 = vadd.f32 %v655, %v800
    %v817 = vadd.f32 %v656, %v801
    %v818 = vadd.f32 %v657, %v802
    %v819 = vadd.f32 %v658, %v803
    %v820 = vadd.f32 %v659, %v804
    %v821 = vadd.f32 %v660, %v805
    %v822 = vadd.f32 %v661, %v806
    %v823 = vadd.f32 %v662, %v807
    %v824 = vadd.f32 %v663, %v808
    %v825 = vlaneseq
    %v826 = vshrl.u32 %v825, 7
    %v827 = vsub.s32 7, %v826
    %v828 = vrot.slane %v117, %v827
    %v829 = vlaneseq
    %v830 = vshrl.u32 %v829, 7
    %v831 = vsub.s32 7, %v830
    %v832 = vrot.slane %v118, %v831
    %v833 = vlaneseq
    %v834 = vshrl.u32 %v833, 7
    %v835 = vsub.s32 7, %v834
    %v836 = vrot.slane %v119, %v835
    %v837 = vlaneseq
    %v838 = vshrl.u32 %v837, 7
    %v839 = vsub.s32 7, %v838
    %v840 = vrot.slane %v120, %v839
    %v841 = vmul.f32 %v713, %v828
    %v842 = vmul.f32 %v714, %v832
    %v843 = vmul.f32 %v715, %v836
    %v844 = vmul.f32 %v716, %v840
    %v845 = vmul.f32 %v717, %v828
    %v846 = vmul.f32 %v718, %v832
    %v847 = vmul.f32 %v719, %v836
    %v848 = vmul.f32 %v720, %v840
    %v849 = vmul.f32 %v721, %v828
    %v850 = vmul.f32 %v722, %v832
    %v851 = vmul.f32 %v723, %v836
    %v852 = vmul.f32 %v724, %v840
    %v853 = vmul.f32 %v725, %v828
    %v854 = vmul.f32 %v726, %v832
    %v855 = vmul.f32 %v727, %v836
    %v856 = vmul.f32 %v728, %v840
    %v857 = vadd.f32 %v809, %v841
    %v858 = vadd.f32 %v810, %v842
    %v859 = vadd.f32 %v811, %v843
    %v860 = vadd.f32 %v812, %v844
    %v861 = vadd.f32 %v813, %v845
    %v862 = vadd.f32 %v814, %v846
    %v863 = vadd.f32 %v815, %v847
    %v864 = vadd.f32 %v816, %v848
    %v865 = vadd.f32 %v817, %v849
    %v866 = vadd.f32 %v818, %v850
    %v867 = vadd.f32 %v819, %v851
    %v868 = vadd.f32 %v820, %v852
    %v869 = vadd.f32 %v821, %v853
    %v870 = vadd.f32 %v822, %v854
    %v871 = vadd.f32 %v823, %v855
    %v872 = vadd.f32 %v824, %v856
    %873 = vrot.lane.b32.xlu0 %v713, 96
    %v874 = vpop.permute.xlu0 %873
    %875 = vrot.lane.b32.xlu0 %v717, 96
    %v876 = vpop.permute.xlu0 %875
    %877 = vrot.lane.b32.xlu0 %v721, 96
    %v878 = vpop.permute.xlu0 %877
    %879 = vrot.lane.b32.xlu0 %v725, 96
    %v880 = vpop.permute.xlu0 %879
    %881 = vrot.lane.b32.xlu0 %v714, 96
    %v882 = vpop.permute.xlu0 %881
    %883 = vrot.lane.b32.xlu0 %v718, 96
    %v884 = vpop.permute.xlu0 %883
    %885 = vrot.lane.b32.xlu0 %v722, 96
    %v886 = vpop.permute.xlu0 %885
    %887 = vrot.lane.b32.xlu0 %v726, 96
    %v888 = vpop.permute.xlu0 %887
    %889 = vrot.lane.b32.xlu0 %v715, 96
    %v890 = vpop.permute.xlu0 %889
    %891 = vrot.lane.b32.xlu0 %v719, 96
    %v892 = vpop.permute.xlu0 %891
    %893 = vrot.lane.b32.xlu0 %v723, 96
    %v894 = vpop.permute.xlu0 %893
    %895 = vrot.lane.b32.xlu0 %v727, 96
    %v896 = vpop.permute.xlu0 %895
    %897 = vrot.lane.b32.xlu0 %v716, 96
    %v898 = vpop.permute.xlu0 %897
    %899 = vrot.lane.b32.xlu0 %v720, 96
    %v900 = vpop.permute.xlu0 %899
    %901 = vrot.lane.b32.xlu0 %v724, 96
    %v902 = vpop.permute.xlu0 %901
    %903 = vrot.lane.b32.xlu0 %v728, 96
    %v904 = vpop.permute.xlu0 %903
    %v905 = vsel %vm359, %v890, %v898
    %v906 = vsel %vm359, %v892, %v900
    %v907 = vsel %vm359, %v894, %v902
    %v908 = vsel %vm359, %v896, %v904
    %v909 = vsel %vm359, %v882, %v890
    %v910 = vsel %vm359, %v884, %v892
    %v911 = vsel %vm359, %v886, %v894
    %v912 = vsel %vm359, %v888, %v896
    %v913 = vsel %vm359, %v874, %v882
    %v914 = vsel %vm359, %v876, %v884
    %v915 = vsel %vm359, %v878, %v886
    %v916 = vsel %vm359, %v880, %v888
    %v917 = vsel %vm359, %v898, %v874
    %v918 = vsel %vm359, %v900, %v876
    %v919 = vsel %vm359, %v902, %v878
    %v920 = vsel %vm359, %v904, %v880
    %v921 = vlaneseq
    %v922 = vshrl.u32 %v921, 7
    %v923 = vsub.s32 0, %v922
    %v924 = vrot.slane %v121, %v923
    %v925 = vlaneseq
    %v926 = vshrl.u32 %v925, 7
    %v927 = vsub.s32 0, %v926
    %v928 = vrot.slane %v122, %v927
    %v929 = vlaneseq
    %v930 = vshrl.u32 %v929, 7
    %v931 = vsub.s32 0, %v930
    %v932 = vrot.slane %v123, %v931
    %v933 = vlaneseq
    %v934 = vshrl.u32 %v933, 7
    %v935 = vsub.s32 0, %v934
    %v936 = vrot.slane %v124, %v935
    %v937 = vmul.f32 %v913, %v924
    %v938 = vmul.f32 %v909, %v928
    %v939 = vmul.f32 %v905, %v932
    %v940 = vmul.f32 %v917, %v936
    %v941 = vmul.f32 %v914, %v924
    %v942 = vmul.f32 %v910, %v928
    %v943 = vmul.f32 %v906, %v932
    %v944 = vmul.f32 %v918, %v936
    %v945 = vmul.f32 %v915, %v924
    %v946 = vmul.f32 %v911, %v928
    %v947 = vmul.f32 %v907, %v932
    %v948 = vmul.f32 %v919, %v936
    %v949 = vmul.f32 %v916, %v924
    %v950 = vmul.f32 %v912, %v928
    %v951 = vmul.f32 %v908, %v932
    %v952 = vmul.f32 %v920, %v936
    %v953 = vadd.f32 %v857, %v937
    %v954 = vadd.f32 %v858, %v938
    %v955 = vadd.f32 %v859, %v939
    %v956 = vadd.f32 %v860, %v940
    %v957 = vadd.f32 %v861, %v941
    %v958 = vadd.f32 %v862, %v942
    %v959 = vadd.f32 %v863, %v943
    %v960 = vadd.f32 %v864, %v944
    %v961 = vadd.f32 %v865, %v945
    %v962 = vadd.f32 %v866, %v946
    %v963 = vadd.f32 %v867, %v947
    %v964 = vadd.f32 %v868, %v948
    %v965 = vadd.f32 %v869, %v949
    %v966 = vadd.f32 %v870, %v950
    %v967 = vadd.f32 %v871, %v951
    %v968 = vadd.f32 %v872, %v952
    %v969 = vld [vmem:[%s3] sm:$0xf]
    %v971 = vlaneseq
    %v972 = vshrl.u32 %v971, 7
    %v973 = vsub.s32 0, %v972
    %v974 = vrot.slane %v969, %v973
    %v975 = vlaneseq
    %v976 = vshrl.u32 %v975, 7
    %v977 = vsub.s32 1, %v976
    %v978 = vrot.slane %v969, %v977
    %v979 = vlaneseq
    %v980 = vshrl.u32 %v979, 7
    %v981 = vsub.s32 2, %v980
    %v982 = vrot.slane %v969, %v981
    %v983 = vlaneseq
    %v984 = vshrl.u32 %v983, 7
    %v985 = vsub.s32 3, %v984
    %v986 = vrot.slane %v969, %v985
    %v991 = vadd.f32 %v953, %v974
    %v992 = vadd.f32 %v954, %v978
    %v993 = vadd.f32 %v955, %v982
    %v994 = vadd.f32 %v956, %v986
    %v995 = vadd.f32 %v957, %v974
    %v996 = vadd.f32 %v958, %v978
    %v997 = vadd.f32 %v959, %v982
    %v998 = vadd.f32 %v960, %v986
    %v999 = vadd.f32 %v961, %v974
    %v1000 = vadd.f32 %v962, %v978
    %v1001 = vadd.f32 %v963, %v982
    %v1002 = vadd.f32 %v964, %v986
    %v1003 = vadd.f32 %v965, %v974
    %v1004 = vadd.f32 %v966, %v978
    %v1005 = vadd.f32 %v967, %v982
    %v1006 = vadd.f32 %v968, %v986
    %v1007 = vxor.u32 %v991, 2147483648
    %v1008 = vxor.u32 %v992, 2147483648
    %v1009 = vxor.u32 %v993, 2147483648
    %v1010 = vxor.u32 %v994, 2147483648
    %v1011 = vxor.u32 %v995, 2147483648
    %v1012 = vxor.u32 %v996, 2147483648
    %v1013 = vxor.u32 %v997, 2147483648
    %v1014 = vxor.u32 %v998, 2147483648
    %v1015 = vxor.u32 %v999, 2147483648
    %v1016 = vxor.u32 %v1000, 2147483648
    %v1017 = vxor.u32 %v1001, 2147483648
    %v1018 = vxor.u32 %v1002, 2147483648
    %v1019 = vxor.u32 %v1003, 2147483648
    %v1020 = vxor.u32 %v1004, 2147483648
    %v1021 = vxor.u32 %v1005, 2147483648
    %v1022 = vxor.u32 %v1006, 2147483648
    %v1023 = vmul.f32 %v1007, 1.442695
    %v1024 = vpow.pop %v1023
    %v1025 = vmul.f32 %v1008, 1.442695
    %v1026 = vpow.pop %v1025
    %v1027 = vmul.f32 %v1009, 1.442695
    %v1028 = vpow.pop %v1027
    %v1029 = vmul.f32 %v1010, 1.442695
    %v1030 = vpow.pop %v1029
    %v1031 = vmul.f32 %v1011, 1.442695
    %v1032 = vpow.pop %v1031
    %v1033 = vmul.f32 %v1012, 1.442695
    %v1034 = vpow.pop %v1033
    %v1035 = vmul.f32 %v1013, 1.442695
    %v1036 = vpow.pop %v1035
    %v1037 = vmul.f32 %v1014, 1.442695
    %v1038 = vpow.pop %v1037
    %v1039 = vmul.f32 %v1015, 1.442695
    %v1040 = vpow.pop %v1039
    %v1041 = vmul.f32 %v1016, 1.442695
    %v1042 = vpow.pop %v1041
    %v1043 = vmul.f32 %v1017, 1.442695
    %v1044 = vpow.pop %v1043
    %v1045 = vmul.f32 %v1018, 1.442695
    %v1046 = vpow.pop %v1045
    %v1047 = vmul.f32 %v1019, 1.442695
    %v1048 = vpow.pop %v1047
    %v1049 = vmul.f32 %v1020, 1.442695
    %v1050 = vpow.pop %v1049
    %v1051 = vmul.f32 %v1021, 1.442695
    %v1052 = vpow.pop %v1051
    %v1053 = vmul.f32 %v1022, 1.442695
    %v1054 = vpow.pop %v1053
    %v1055 = vadd.f32 %v1024, 1.0
    %v1056 = vadd.f32 %v1026, 1.0
    %v1057 = vadd.f32 %v1028, 1.0
    %v1058 = vadd.f32 %v1030, 1.0
    %v1059 = vadd.f32 %v1032, 1.0
    %v1060 = vadd.f32 %v1034, 1.0
    %v1061 = vadd.f32 %v1036, 1.0
    %v1062 = vadd.f32 %v1038, 1.0
    %v1063 = vadd.f32 %v1040, 1.0
    %v1064 = vadd.f32 %v1042, 1.0
    %v1065 = vadd.f32 %v1044, 1.0
    %v1066 = vadd.f32 %v1046, 1.0
    %v1067 = vadd.f32 %v1048, 1.0
    %v1068 = vadd.f32 %v1050, 1.0
    %v1069 = vadd.f32 %v1052, 1.0
    %v1070 = vadd.f32 %v1054, 1.0
    %v1071 = vrcp.pop %v1055
    %v1072 = vmul.f32 1.0, %v1071
    %v1073 = vrcp.pop %v1056
    %v1074 = vmul.f32 1.0, %v1073
    %v1075 = vrcp.pop %v1057
    %v1076 = vmul.f32 1.0, %v1075
    %v1077 = vrcp.pop %v1058
    %v1078 = vmul.f32 1.0, %v1077
    %v1079 = vrcp.pop %v1059
    %v1080 = vmul.f32 1.0, %v1079
    %v1081 = vrcp.pop %v1060
    %v1082 = vmul.f32 1.0, %v1081
    %v1083 = vrcp.pop %v1061
    %v1084 = vmul.f32 1.0, %v1083
    %v1085 = vrcp.pop %v1062
    %v1086 = vmul.f32 1.0, %v1085
    %v1087 = vrcp.pop %v1063
    %v1088 = vmul.f32 1.0, %v1087
    %v1089 = vrcp.pop %v1064
    %v1090 = vmul.f32 1.0, %v1089
    %v1091 = vrcp.pop %v1065
    %v1092 = vmul.f32 1.0, %v1091
    %v1093 = vrcp.pop %v1066
    %v1094 = vmul.f32 1.0, %v1093
    %v1095 = vrcp.pop %v1067
    %v1096 = vmul.f32 1.0, %v1095
    %v1097 = vrcp.pop %v1068
    %v1098 = vmul.f32 1.0, %v1097
    %v1099 = vrcp.pop %v1069
    %v1100 = vmul.f32 1.0, %v1099
    %v1101 = vrcp.pop %v1070
    %v1102 = vmul.f32 1.0, %v1101
    %v1103 = vmul.f32 %v991, %v1072
    %v1104 = vmul.f32 %v992, %v1074
    %v1105 = vmul.f32 %v993, %v1076
    %v1106 = vmul.f32 %v994, %v1078
    %v1107 = vmul.f32 %v995, %v1080
    %v1108 = vmul.f32 %v996, %v1082
    %v1109 = vmul.f32 %v997, %v1084
    %v1110 = vmul.f32 %v998, %v1086
    %v1111 = vmul.f32 %v999, %v1088
    %v1112 = vmul.f32 %v1000, %v1090
    %v1113 = vmul.f32 %v1001, %v1092
    %v1114 = vmul.f32 %v1002, %v1094
    %v1115 = vmul.f32 %v1003, %v1096
    %v1116 = vmul.f32 %v1004, %v1098
    %v1117 = vmul.f32 %v1005, %v1100
    %v1118 = vmul.f32 %v1006, %v1102
    %v1119 = vpack.c.bf16 %v1107, %v1103
    %v1120 = vpack.c.bf16 %v1108, %v1104
    %v1121 = vpack.c.bf16 %v1109, %v1105
    %v1122 = vpack.c.bf16 %v1110, %v1106
    %v1123 = vpack.c.bf16 %v1115, %v1111
    %v1124 = vpack.c.bf16 %v1116, %v1112
    %v1125 = vpack.c.bf16 %v1117, %v1113
    %v1126 = vpack.c.bf16 %v1118, %v1114
    %v1127 = vld [vmem:[#allocation7] sm:$0xff]
    %v1128 = vld [vmem:[#allocation7 + $0x8] sm:$0xff]
    %v1129 = vld [vmem:[#allocation7 + $0x10] sm:$0xff]
    %v1130 = vld [vmem:[#allocation7 + $0x18] sm:$0xff]
    %v1131 = vld [vmem:[#allocation7 + $0x20] sm:$0xff]
    %v1132 = vld [vmem:[#allocation7 + $0x28] sm:$0xff]
    %v1133 = vld [vmem:[#allocation7 + $0x30] sm:$0xff]
    %v1134 = vld [vmem:[#allocation7 + $0x38] sm:$0xff]
    %v1135 = vld [vmem:[#allocation7 + $0x40] sm:$0xff]
    %v1136 = vld [vmem:[#allocation7 + $0x48] sm:$0xff]
    %v1137 = vld [vmem:[#allocation7 + $0x50] sm:$0xff]
    %v1138 = vld [vmem:[#allocation7 + $0x58] sm:$0xff]
    %v1139 = vld [vmem:[#allocation7 + $0x60] sm:$0xff]
    %v1140 = vld [vmem:[#allocation7 + $0x68] sm:$0xff]
    %v1141 = vld [vmem:[#allocation7 + $0x70] sm:$0xff]
    %v1142 = vld [vmem:[#allocation7 + $0x78] sm:$0xff]
    %v1143 = vld [vmem:[#allocation7 + $0x80] sm:$0xff]
    %v1144 = vld [vmem:[#allocation7 + $0x88] sm:$0xff]
    %v1145 = vld [vmem:[#allocation7 + $0x90] sm:$0xff]
    %v1146 = vld [vmem:[#allocation7 + $0x98] sm:$0xff]
    %v1147 = vld [vmem:[#allocation7 + $0xa0] sm:$0xff]
    %v1148 = vld [vmem:[#allocation7 + $0xa8] sm:$0xff]
    %v1149 = vld [vmem:[#allocation7 + $0xb0] sm:$0xff]
    %v1150 = vld [vmem:[#allocation7 + $0xb8] sm:$0xff]
    %v1151 = vld [vmem:[#allocation7 + $0xc0] sm:$0xff]
    %v1152 = vld [vmem:[#allocation7 + $0xc8] sm:$0xff]
    %v1153 = vld [vmem:[#allocation7 + $0xd0] sm:$0xff]
    %v1154 = vld [vmem:[#allocation7 + $0xd8] sm:$0xff]
    %v1155 = vld [vmem:[#allocation7 + $0xe0] sm:$0xff]
    %v1156 = vld [vmem:[#allocation7 + $0xe8] sm:$0xff]
    %v1157 = vld [vmem:[#allocation7 + $0xf0] sm:$0xff]
    %v1158 = vld [vmem:[#allocation7 + $0xf8] sm:$0xff]
    %v1159 = vld [vmem:[#allocation7 + $0x100] sm:$0xff]
    %v1160 = vld [vmem:[#allocation7 + $0x108] sm:$0xff]
    %v1161 = vld [vmem:[#allocation7 + $0x110] sm:$0xff]
    %v1162 = vld [vmem:[#allocation7 + $0x118] sm:$0xff]
    %v1163 = vld [vmem:[#allocation7 + $0x120] sm:$0xff]
    %v1164 = vld [vmem:[#allocation7 + $0x128] sm:$0xff]
    %v1165 = vld [vmem:[#allocation7 + $0x130] sm:$0xff]
    %v1166 = vld [vmem:[#allocation7 + $0x138] sm:$0xff]
    %v1167 = vld [vmem:[#allocation7 + $0x140] sm:$0xff]
    %v1168 = vld [vmem:[#allocation7 + $0x148] sm:$0xff]
    %v1169 = vld [vmem:[#allocation7 + $0x150] sm:$0xff]
    %v1170 = vld [vmem:[#allocation7 + $0x158] sm:$0xff]
    %v1171 = vld [vmem:[#allocation7 + $0x160] sm:$0xff]
    %v1172 = vld [vmem:[#allocation7 + $0x168] sm:$0xff]
    %v1173 = vld [vmem:[#allocation7 + $0x170] sm:$0xff]
    %v1174 = vld [vmem:[#allocation7 + $0x178] sm:$0xff]
    %v1175 = vld [vmem:[#allocation7 + $0x180] sm:$0xff]
    %v1176 = vld [vmem:[#allocation7 + $0x188] sm:$0xff]
    %v1177 = vld [vmem:[#allocation7 + $0x190] sm:$0xff]
    %v1178 = vld [vmem:[#allocation7 + $0x198] sm:$0xff]
    %v1179 = vld [vmem:[#allocation7 + $0x1a0] sm:$0xff]
    %v1180 = vld [vmem:[#allocation7 + $0x1a8] sm:$0xff]
    %v1181 = vld [vmem:[#allocation7 + $0x1b0] sm:$0xff]
    %v1182 = vld [vmem:[#allocation7 + $0x1b8] sm:$0xff]
    %v1183 = vld [vmem:[#allocation7 + $0x1c0] sm:$0xff]
    %v1184 = vld [vmem:[#allocation7 + $0x1c8] sm:$0xff]
    %v1185 = vld [vmem:[#allocation7 + $0x1d0] sm:$0xff]
    %v1186 = vld [vmem:[#allocation7 + $0x1d8] sm:$0xff]
    %v1187 = vld [vmem:[#allocation7 + $0x1e0] sm:$0xff]
    %v1188 = vld [vmem:[#allocation7 + $0x1e8] sm:$0xff]
    %v1189 = vld [vmem:[#allocation7 + $0x1f0] sm:$0xff]
    %v1190 = vld [vmem:[#allocation7 + $0x1f8] sm:$0xff]
    %v1191 = vld [vmem:[#allocation7 + $0x200] sm:$0xff]
    %v1192 = vld [vmem:[#allocation7 + $0x208] sm:$0xff]
    %v1193 = vld [vmem:[#allocation7 + $0x210] sm:$0xff]
    %v1194 = vld [vmem:[#allocation7 + $0x218] sm:$0xff]
    %v1195 = vld [vmem:[#allocation7 + $0x220] sm:$0xff]
    %v1196 = vld [vmem:[#allocation7 + $0x228] sm:$0xff]
    %v1197 = vld [vmem:[#allocation7 + $0x230] sm:$0xff]
    %v1198 = vld [vmem:[#allocation7 + $0x238] sm:$0xff]
    %v1199 = vld [vmem:[#allocation7 + $0x240] sm:$0xff]
    %v1200 = vld [vmem:[#allocation7 + $0x248] sm:$0xff]
    %v1201 = vld [vmem:[#allocation7 + $0x250] sm:$0xff]
    %v1202 = vld [vmem:[#allocation7 + $0x258] sm:$0xff]
    %v1203 = vld [vmem:[#allocation7 + $0x260] sm:$0xff]
    %v1204 = vld [vmem:[#allocation7 + $0x268] sm:$0xff]
    %v1205 = vld [vmem:[#allocation7 + $0x270] sm:$0xff]
    %v1206 = vld [vmem:[#allocation7 + $0x278] sm:$0xff]
    %v1207 = vld [vmem:[#allocation7 + $0x280] sm:$0xff]
    %v1208 = vld [vmem:[#allocation7 + $0x288] sm:$0xff]
    %v1209 = vld [vmem:[#allocation7 + $0x290] sm:$0xff]
    %v1210 = vld [vmem:[#allocation7 + $0x298] sm:$0xff]
    %v1211 = vld [vmem:[#allocation7 + $0x2a0] sm:$0xff]
    %v1212 = vld [vmem:[#allocation7 + $0x2a8] sm:$0xff]
    %v1213 = vld [vmem:[#allocation7 + $0x2b0] sm:$0xff]
    %v1214 = vld [vmem:[#allocation7 + $0x2b8] sm:$0xff]
    %v1215 = vld [vmem:[#allocation7 + $0x2c0] sm:$0xff]
    %v1216 = vld [vmem:[#allocation7 + $0x2c8] sm:$0xff]
    %v1217 = vld [vmem:[#allocation7 + $0x2d0] sm:$0xff]
    %v1218 = vld [vmem:[#allocation7 + $0x2d8] sm:$0xff]
    %v1219 = vld [vmem:[#allocation7 + $0x2e0] sm:$0xff]
    %v1220 = vld [vmem:[#allocation7 + $0x2e8] sm:$0xff]
    %v1221 = vld [vmem:[#allocation7 + $0x2f0] sm:$0xff]
    %v1222 = vld [vmem:[#allocation7 + $0x2f8] sm:$0xff]
    %v1223 = vld [vmem:[#allocation7 + $0x300] sm:$0xff]
    %v1224 = vld [vmem:[#allocation7 + $0x308] sm:$0xff]
    %v1225 = vld [vmem:[#allocation7 + $0x310] sm:$0xff]
    %v1226 = vld [vmem:[#allocation7 + $0x318] sm:$0xff]
    %v1227 = vld [vmem:[#allocation7 + $0x320] sm:$0xff]
    %v1228 = vld [vmem:[#allocation7 + $0x328] sm:$0xff]
    %v1229 = vld [vmem:[#allocation7 + $0x330] sm:$0xff]
    %v1230 = vld [vmem:[#allocation7 + $0x338] sm:$0xff]
    %v1231 = vld [vmem:[#allocation7 + $0x340] sm:$0xff]
    %v1232 = vld [vmem:[#allocation7 + $0x348] sm:$0xff]
    %v1233 = vld [vmem:[#allocation7 + $0x350] sm:$0xff]
    %v1234 = vld [vmem:[#allocation7 + $0x358] sm:$0xff]
    %v1235 = vld [vmem:[#allocation7 + $0x360] sm:$0xff]
    %v1236 = vld [vmem:[#allocation7 + $0x368] sm:$0xff]
    %v1237 = vld [vmem:[#allocation7 + $0x370] sm:$0xff]
    %v1238 = vld [vmem:[#allocation7 + $0x378] sm:$0xff]
    %v1239 = vld [vmem:[#allocation7 + $0x380] sm:$0xff]
    %v1240 = vld [vmem:[#allocation7 + $0x388] sm:$0xff]
    %v1241 = vld [vmem:[#allocation7 + $0x390] sm:$0xff]
    %v1242 = vld [vmem:[#allocation7 + $0x398] sm:$0xff]
    %v1243 = vld [vmem:[#allocation7 + $0x3a0] sm:$0xff]
    %v1244 = vld [vmem:[#allocation7 + $0x3a8] sm:$0xff]
    %v1245 = vld [vmem:[#allocation7 + $0x3b0] sm:$0xff]
    %v1246 = vld [vmem:[#allocation7 + $0x3b8] sm:$0xff]
    %v1247 = vld [vmem:[#allocation7 + $0x3c0] sm:$0xff]
    %v1248 = vld [vmem:[#allocation7 + $0x3c8] sm:$0xff]
    %v1249 = vld [vmem:[#allocation7 + $0x3d0] sm:$0xff]
    %v1250 = vld [vmem:[#allocation7 + $0x3d8] sm:$0xff]
    %v1251 = vld [vmem:[#allocation7 + $0x3e0] sm:$0xff]
    %v1252 = vld [vmem:[#allocation7 + $0x3e8] sm:$0xff]
    %v1253 = vld [vmem:[#allocation7 + $0x3f0] sm:$0xff]
    %v1254 = vld [vmem:[#allocation7 + $0x3f8] sm:$0xff]
    %v1255 = vld [vmem:[%s5] sm:$0xf]
    %v1257 = vlaneseq
    %v1258 = vshrl.u32 %v1257, 7
    %v1259 = vsub.s32 0, %v1258
    %v1260 = vrot.slane %v1255, %v1259
    %v1261 = vlaneseq
    %v1262 = vshrl.u32 %v1261, 7
    %v1263 = vsub.s32 1, %v1262
    %v1264 = vrot.slane %v1255, %v1263
    %v1265 = vlaneseq
    %v1266 = vshrl.u32 %v1265, 7
    %v1267 = vsub.s32 2, %v1266
    %v1268 = vrot.slane %v1255, %v1267
    %v1269 = vlaneseq
    %v1270 = vshrl.u32 %v1269, 7
    %v1271 = vsub.s32 3, %v1270
    %v1272 = vrot.slane %v1255, %v1271
    %v1405 = vunpack.c.l.b16 %v1127
    %v1406 = vunpack.c.h.b16 %v1127
    %v1407 = vunpack.c.l.b16 %v1128
    %v1408 = vunpack.c.h.b16 %v1128
    %v1409 = vunpack.c.l.b16 %v1129
    %v1410 = vunpack.c.h.b16 %v1129
    %v1411 = vunpack.c.l.b16 %v1130
    %v1412 = vunpack.c.h.b16 %v1130
    %v1413 = vunpack.c.l.b16 %v1131
    %v1414 = vunpack.c.h.b16 %v1131
    %v1415 = vunpack.c.l.b16 %v1132
    %v1416 = vunpack.c.h.b16 %v1132
    %v1417 = vunpack.c.l.b16 %v1133
    %v1418 = vunpack.c.h.b16 %v1133
    %v1419 = vunpack.c.l.b16 %v1134
    %v1420 = vunpack.c.h.b16 %v1134
    %v1421 = vunpack.c.l.b16 %v1135
    %v1422 = vunpack.c.h.b16 %v1135
    %v1423 = vunpack.c.l.b16 %v1136
    %v1424 = vunpack.c.h.b16 %v1136
    %v1425 = vunpack.c.l.b16 %v1137
    %v1426 = vunpack.c.h.b16 %v1137
    %v1427 = vunpack.c.l.b16 %v1138
    %v1428 = vunpack.c.h.b16 %v1138
    %v1429 = vunpack.c.l.b16 %v1139
    %v1430 = vunpack.c.h.b16 %v1139
    %v1431 = vunpack.c.l.b16 %v1140
    %v1432 = vunpack.c.h.b16 %v1140
    %v1433 = vunpack.c.l.b16 %v1141
    %v1434 = vunpack.c.h.b16 %v1141
    %v1435 = vunpack.c.l.b16 %v1142
    %v1436 = vunpack.c.h.b16 %v1142
    %v1437 = vunpack.c.l.b16 %v1143
    %v1438 = vunpack.c.h.b16 %v1143
    %v1439 = vunpack.c.l.b16 %v1144
    %v1440 = vunpack.c.h.b16 %v1144
    %v1441 = vunpack.c.l.b16 %v1145
    %v1442 = vunpack.c.h.b16 %v1145
    %v1443 = vunpack.c.l.b16 %v1146
    %v1444 = vunpack.c.h.b16 %v1146
    %v1445 = vunpack.c.l.b16 %v1147
    %v1446 = vunpack.c.h.b16 %v1147
    %v1447 = vunpack.c.l.b16 %v1148
    %v1448 = vunpack.c.h.b16 %v1148
    %v1449 = vunpack.c.l.b16 %v1149
    %v1450 = vunpack.c.h.b16 %v1149
    %v1451 = vunpack.c.l.b16 %v1150
    %v1452 = vunpack.c.h.b16 %v1150
    %v1453 = vunpack.c.l.b16 %v1151
    %v1454 = vunpack.c.h.b16 %v1151
    %v1455 = vunpack.c.l.b16 %v1152
    %v1456 = vunpack.c.h.b16 %v1152
    %v1457 = vunpack.c.l.b16 %v1153
    %v1458 = vunpack.c.h.b16 %v1153
    %v1459 = vunpack.c.l.b16 %v1154
    %v1460 = vunpack.c.h.b16 %v1154
    %v1461 = vunpack.c.l.b16 %v1155
    %v1462 = vunpack.c.h.b16 %v1155
    %v1463 = vunpack.c.l.b16 %v1156
    %v1464 = vunpack.c.h.b16 %v1156
    %v1465 = vunpack.c.l.b16 %v1157
    %v1466 = vunpack.c.h.b16 %v1157
    %v1467 = vunpack.c.l.b16 %v1158
    %v1468 = vunpack.c.h.b16 %v1158
    %v1469 = vunpack.c.l.b16 %v1159
    %v1470 = vunpack.c.h.b16 %v1159
    %v1471 = vunpack.c.l.b16 %v1160
    %v1472 = vunpack.c.h.b16 %v1160
    %v1473 = vunpack.c.l.b16 %v1161
    %v1474 = vunpack.c.h.b16 %v1161
    %v1475 = vunpack.c.l.b16 %v1162
    %v1476 = vunpack.c.h.b16 %v1162
    %v1477 = vunpack.c.l.b16 %v1163
    %v1478 = vunpack.c.h.b16 %v1163
    %v1479 = vunpack.c.l.b16 %v1164
    %v1480 = vunpack.c.h.b16 %v1164
    %v1481 = vunpack.c.l.b16 %v1165
    %v1482 = vunpack.c.h.b16 %v1165
    %v1483 = vunpack.c.l.b16 %v1166
    %v1484 = vunpack.c.h.b16 %v1166
    %v1485 = vunpack.c.l.b16 %v1167
    %v1486 = vunpack.c.h.b16 %v1167
    %v1487 = vunpack.c.l.b16 %v1168
    %v1488 = vunpack.c.h.b16 %v1168
    %v1489 = vunpack.c.l.b16 %v1169
    %v1490 = vunpack.c.h.b16 %v1169
    %v1491 = vunpack.c.l.b16 %v1170
    %v1492 = vunpack.c.h.b16 %v1170
    %v1493 = vunpack.c.l.b16 %v1171
    %v1494 = vunpack.c.h.b16 %v1171
    %v1495 = vunpack.c.l.b16 %v1172
    %v1496 = vunpack.c.h.b16 %v1172
    %v1497 = vunpack.c.l.b16 %v1173
    %v1498 = vunpack.c.h.b16 %v1173
    %v1499 = vunpack.c.l.b16 %v1174
    %v1500 = vunpack.c.h.b16 %v1174
    %v1501 = vunpack.c.l.b16 %v1175
    %v1502 = vunpack.c.h.b16 %v1175
    %v1503 = vunpack.c.l.b16 %v1176
    %v1504 = vunpack.c.h.b16 %v1176
    %v1505 = vunpack.c.l.b16 %v1177
    %v1506 = vunpack.c.h.b16 %v1177
    %v1507 = vunpack.c.l.b16 %v1178
    %v1508 = vunpack.c.h.b16 %v1178
    %v1509 = vunpack.c.l.b16 %v1179
    %v1510 = vunpack.c.h.b16 %v1179
    %v1511 = vunpack.c.l.b16 %v1180
    %v1512 = vunpack.c.h.b16 %v1180
    %v1513 = vunpack.c.l.b16 %v1181
    %v1514 = vunpack.c.h.b16 %v1181
    %v1515 = vunpack.c.l.b16 %v1182
    %v1516 = vunpack.c.h.b16 %v1182
    %v1517 = vunpack.c.l.b16 %v1183
    %v1518 = vunpack.c.h.b16 %v1183
    %v1519 = vunpack.c.l.b16 %v1184
    %v1520 = vunpack.c.h.b16 %v1184
    %v1521 = vunpack.c.l.b16 %v1185
    %v1522 = vunpack.c.h.b16 %v1185
    %v1523 = vunpack.c.l.b16 %v1186
    %v1524 = vunpack.c.h.b16 %v1186
    %v1525 = vunpack.c.l.b16 %v1187
    %v1526 = vunpack.c.h.b16 %v1187
    %v1527 = vunpack.c.l.b16 %v1188
    %v1528 = vunpack.c.h.b16 %v1188
    %v1529 = vunpack.c.l.b16 %v1189
    %v1530 = vunpack.c.h.b16 %v1189
    %v1531 = vunpack.c.l.b16 %v1190
    %v1532 = vunpack.c.h.b16 %v1190
    %v1533 = vunpack.c.l.b16 %v1191
    %v1534 = vunpack.c.h.b16 %v1191
    %v1535 = vunpack.c.l.b16 %v1192
    %v1536 = vunpack.c.h.b16 %v1192
    %v1537 = vunpack.c.l.b16 %v1193
    %v1538 = vunpack.c.h.b16 %v1193
    %v1539 = vunpack.c.l.b16 %v1194
    %v1540 = vunpack.c.h.b16 %v1194
    %v1541 = vunpack.c.l.b16 %v1195
    %v1542 = vunpack.c.h.b16 %v1195
    %v1543 = vunpack.c.l.b16 %v1196
    %v1544 = vunpack.c.h.b16 %v1196
    %v1545 = vunpack.c.l.b16 %v1197
    %v1546 = vunpack.c.h.b16 %v1197
    %v1547 = vunpack.c.l.b16 %v1198
    %v1548 = vunpack.c.h.b16 %v1198
    %v1549 = vunpack.c.l.b16 %v1199
    %v1550 = vunpack.c.h.b16 %v1199
    %v1551 = vunpack.c.l.b16 %v1200
    %v1552 = vunpack.c.h.b16 %v1200
    %v1553 = vunpack.c.l.b16 %v1201
    %v1554 = vunpack.c.h.b16 %v1201
    %v1555 = vunpack.c.l.b16 %v1202
    %v1556 = vunpack.c.h.b16 %v1202
    %v1557 = vunpack.c.l.b16 %v1203
    %v1558 = vunpack.c.h.b16 %v1203
    %v1559 = vunpack.c.l.b16 %v1204
    %v1560 = vunpack.c.h.b16 %v1204
    %v1561 = vunpack.c.l.b16 %v1205
    %v1562 = vunpack.c.h.b16 %v1205
    %v1563 = vunpack.c.l.b16 %v1206
    %v1564 = vunpack.c.h.b16 %v1206
    %v1565 = vunpack.c.l.b16 %v1207
    %v1566 = vunpack.c.h.b16 %v1207
    %v1567 = vunpack.c.l.b16 %v1208
    %v1568 = vunpack.c.h.b16 %v1208
    %v1569 = vunpack.c.l.b16 %v1209
    %v1570 = vunpack.c.h.b16 %v1209
    %v1571 = vunpack.c.l.b16 %v1210
    %v1572 = vunpack.c.h.b16 %v1210
    %v1573 = vunpack.c.l.b16 %v1211
    %v1574 = vunpack.c.h.b16 %v1211
    %v1575 = vunpack.c.l.b16 %v1212
    %v1576 = vunpack.c.h.b16 %v1212
    %v1577 = vunpack.c.l.b16 %v1213
    %v1578 = vunpack.c.h.b16 %v1213
    %v1579 = vunpack.c.l.b16 %v1214
    %v1580 = vunpack.c.h.b16 %v1214
    %v1581 = vunpack.c.l.b16 %v1215
    %v1582 = vunpack.c.h.b16 %v1215
    %v1583 = vunpack.c.l.b16 %v1216
    %v1584 = vunpack.c.h.b16 %v1216
    %v1585 = vunpack.c.l.b16 %v1217
    %v1586 = vunpack.c.h.b16 %v1217
    %v1587 = vunpack.c.l.b16 %v1218
    %v1588 = vunpack.c.h.b16 %v1218
    %v1589 = vunpack.c.l.b16 %v1219
    %v1590 = vunpack.c.h.b16 %v1219
    %v1591 = vunpack.c.l.b16 %v1220
    %v1592 = vunpack.c.h.b16 %v1220
    %v1593 = vunpack.c.l.b16 %v1221
    %v1594 = vunpack.c.h.b16 %v1221
    %v1595 = vunpack.c.l.b16 %v1222
    %v1596 = vunpack.c.h.b16 %v1222
    %v1597 = vunpack.c.l.b16 %v1223
    %v1598 = vunpack.c.h.b16 %v1223
    %v1599 = vunpack.c.l.b16 %v1224
    %v1600 = vunpack.c.h.b16 %v1224
    %v1601 = vunpack.c.l.b16 %v1225
    %v1602 = vunpack.c.h.b16 %v1225
    %v1603 = vunpack.c.l.b16 %v1226
    %v1604 = vunpack.c.h.b16 %v1226
    %v1605 = vunpack.c.l.b16 %v1227
    %v1606 = vunpack.c.h.b16 %v1227
    %v1607 = vunpack.c.l.b16 %v1228
    %v1608 = vunpack.c.h.b16 %v1228
    %v1609 = vunpack.c.l.b16 %v1229
    %v1610 = vunpack.c.h.b16 %v1229
    %v1611 = vunpack.c.l.b16 %v1230
    %v1612 = vunpack.c.h.b16 %v1230
    %v1613 = vunpack.c.l.b16 %v1231
    %v1614 = vunpack.c.h.b16 %v1231
    %v1615 = vunpack.c.l.b16 %v1232
    %v1616 = vunpack.c.h.b16 %v1232
    %v1617 = vunpack.c.l.b16 %v1233
    %v1618 = vunpack.c.h.b16 %v1233
    %v1619 = vunpack.c.l.b16 %v1234
    %v1620 = vunpack.c.h.b16 %v1234
    %v1621 = vunpack.c.l.b16 %v1235
    %v1622 = vunpack.c.h.b16 %v1235
    %v1623 = vunpack.c.l.b16 %v1236
    %v1624 = vunpack.c.h.b16 %v1236
    %v1625 = vunpack.c.l.b16 %v1237
    %v1626 = vunpack.c.h.b16 %v1237
    %v1627 = vunpack.c.l.b16 %v1238
    %v1628 = vunpack.c.h.b16 %v1238
    %v1629 = vunpack.c.l.b16 %v1239
    %v1630 = vunpack.c.h.b16 %v1239
    %v1631 = vunpack.c.l.b16 %v1240
    %v1632 = vunpack.c.h.b16 %v1240
    %v1633 = vunpack.c.l.b16 %v1241
    %v1634 = vunpack.c.h.b16 %v1241
    %v1635 = vunpack.c.l.b16 %v1242
    %v1636 = vunpack.c.h.b16 %v1242
    %v1637 = vunpack.c.l.b16 %v1243
    %v1638 = vunpack.c.h.b16 %v1243
    %v1639 = vunpack.c.l.b16 %v1244
    %v1640 = vunpack.c.h.b16 %v1244
    %v1641 = vunpack.c.l.b16 %v1245
    %v1642 = vunpack.c.h.b16 %v1245
    %v1643 = vunpack.c.l.b16 %v1246
    %v1644 = vunpack.c.h.b16 %v1246
    %v1645 = vunpack.c.l.b16 %v1247
    %v1646 = vunpack.c.h.b16 %v1247
    %v1647 = vunpack.c.l.b16 %v1248
    %v1648 = vunpack.c.h.b16 %v1248
    %v1649 = vunpack.c.l.b16 %v1249
    %v1650 = vunpack.c.h.b16 %v1249
    %v1651 = vunpack.c.l.b16 %v1250
    %v1652 = vunpack.c.h.b16 %v1250
    %v1653 = vunpack.c.l.b16 %v1251
    %v1654 = vunpack.c.h.b16 %v1251
    %v1655 = vunpack.c.l.b16 %v1252
    %v1656 = vunpack.c.h.b16 %v1252
    %v1657 = vunpack.c.l.b16 %v1253
    %v1658 = vunpack.c.h.b16 %v1253
    %v1659 = vunpack.c.l.b16 %v1254
    %v1660 = vunpack.c.h.b16 %v1254
    %v1661 = vpack.c.b16 %v1409, %v1405
    %v1662 = vpack.c.b16 %v1410, %v1406
    %v1663 = vpack.c.b16 %v1411, %v1407
    %v1664 = vpack.c.b16 %v1412, %v1408
    %v1665 = vpack.c.b16 %v1417, %v1413
    %v1666 = vpack.c.b16 %v1418, %v1414
    %v1667 = vpack.c.b16 %v1419, %v1415
    %v1668 = vpack.c.b16 %v1420, %v1416
    %v1669 = vpack.c.b16 %v1425, %v1421
    %v1670 = vpack.c.b16 %v1426, %v1422
    %v1671 = vpack.c.b16 %v1427, %v1423
    %v1672 = vpack.c.b16 %v1428, %v1424
    %v1673 = vpack.c.b16 %v1433, %v1429
    %v1674 = vpack.c.b16 %v1434, %v1430
    %v1675 = vpack.c.b16 %v1435, %v1431
    %v1676 = vpack.c.b16 %v1436, %v1432
    %v1677 = vpack.c.b16 %v1441, %v1437
    %v1678 = vpack.c.b16 %v1442, %v1438
    %v1679 = vpack.c.b16 %v1443, %v1439
    %v1680 = vpack.c.b16 %v1444, %v1440
    %v1681 = vpack.c.b16 %v1449, %v1445
    %v1682 = vpack.c.b16 %v1450, %v1446
    %v1683 = vpack.c.b16 %v1451, %v1447
    %v1684 = vpack.c.b16 %v1452, %v1448
    %v1685 = vpack.c.b16 %v1457, %v1453
    %v1686 = vpack.c.b16 %v1458, %v1454
    %v1687 = vpack.c.b16 %v1459, %v1455
    %v1688 = vpack.c.b16 %v1460, %v1456
    %v1689 = vpack.c.b16 %v1465, %v1461
    %v1690 = vpack.c.b16 %v1466, %v1462
    %v1691 = vpack.c.b16 %v1467, %v1463
    %v1692 = vpack.c.b16 %v1468, %v1464
    %v1693 = vpack.c.b16 %v1473, %v1469
    %v1694 = vpack.c.b16 %v1474, %v1470
    %v1695 = vpack.c.b16 %v1475, %v1471
    %v1696 = vpack.c.b16 %v1476, %v1472
    %v1697 = vpack.c.b16 %v1481, %v1477
    %v1698 = vpack.c.b16 %v1482, %v1478
    %v1699 = vpack.c.b16 %v1483, %v1479
    %v1700 = vpack.c.b16 %v1484, %v1480
    %v1701 = vpack.c.b16 %v1489, %v1485
    %v1702 = vpack.c.b16 %v1490, %v1486
    %v1703 = vpack.c.b16 %v1491, %v1487
    %v1704 = vpack.c.b16 %v1492, %v1488
    %v1705 = vpack.c.b16 %v1497, %v1493
    %v1706 = vpack.c.b16 %v1498, %v1494
    %v1707 = vpack.c.b16 %v1499, %v1495
    %v1708 = vpack.c.b16 %v1500, %v1496
    %v1709 = vpack.c.b16 %v1505, %v1501
    %v1710 = vpack.c.b16 %v1506, %v1502
    %v1711 = vpack.c.b16 %v1507, %v1503
    %v1712 = vpack.c.b16 %v1508, %v1504
    %v1713 = vpack.c.b16 %v1513, %v1509
    %v1714 = vpack.c.b16 %v1514, %v1510
    %v1715 = vpack.c.b16 %v1515, %v1511
    %v1716 = vpack.c.b16 %v1516, %v1512
    %v1717 = vpack.c.b16 %v1521, %v1517
    %v1718 = vpack.c.b16 %v1522, %v1518
    %v1719 = vpack.c.b16 %v1523, %v1519
    %v1720 = vpack.c.b16 %v1524, %v1520
    %v1721 = vpack.c.b16 %v1529, %v1525
    %v1722 = vpack.c.b16 %v1530, %v1526
    %v1723 = vpack.c.b16 %v1531, %v1527
    %v1724 = vpack.c.b16 %v1532, %v1528
    %v1725 = vpack.c.b16 %v1537, %v1533
    %v1726 = vpack.c.b16 %v1538, %v1534
    %v1727 = vpack.c.b16 %v1539, %v1535
    %v1728 = vpack.c.b16 %v1540, %v1536
    %v1729 = vpack.c.b16 %v1545, %v1541
    %v1730 = vpack.c.b16 %v1546, %v1542
    %v1731 = vpack.c.b16 %v1547, %v1543
    %v1732 = vpack.c.b16 %v1548, %v1544
    %v1733 = vpack.c.b16 %v1553, %v1549
    %v1734 = vpack.c.b16 %v1554, %v1550
    %v1735 = vpack.c.b16 %v1555, %v1551
    %v1736 = vpack.c.b16 %v1556, %v1552
    %v1737 = vpack.c.b16 %v1561, %v1557
    %v1738 = vpack.c.b16 %v1562, %v1558
    %v1739 = vpack.c.b16 %v1563, %v1559
    %v1740 = vpack.c.b16 %v1564, %v1560
    %v1741 = vpack.c.b16 %v1569, %v1565
    %v1742 = vpack.c.b16 %v1570, %v1566
    %v1743 = vpack.c.b16 %v1571, %v1567
    %v1744 = vpack.c.b16 %v1572, %v1568
    %v1745 = vpack.c.b16 %v1577, %v1573
    %v1746 = vpack.c.b16 %v1578, %v1574
    %v1747 = vpack.c.b16 %v1579, %v1575
    %v1748 = vpack.c.b16 %v1580, %v1576
    %v1749 = vpack.c.b16 %v1585, %v1581
    %v1750 = vpack.c.b16 %v1586, %v1582
    %v1751 = vpack.c.b16 %v1587, %v1583
    %v1752 = vpack.c.b16 %v1588, %v1584
    %v1753 = vpack.c.b16 %v1593, %v1589
    %v1754 = vpack.c.b16 %v1594, %v1590
    %v1755 = vpack.c.b16 %v1595, %v1591
    %v1756 = vpack.c.b16 %v1596, %v1592
    %v1757 = vpack.c.b16 %v1601, %v1597
    %v1758 = vpack.c.b16 %v1602, %v1598
    %v1759 = vpack.c.b16 %v1603, %v1599
    %v1760 = vpack.c.b16 %v1604, %v1600
    %v1761 = vpack.c.b16 %v1609, %v1605
    %v1762 = vpack.c.b16 %v1610, %v1606
    %v1763 = vpack.c.b16 %v1611, %v1607
    %v1764 = vpack.c.b16 %v1612, %v1608
    %v1765 = vpack.c.b16 %v1617, %v1613
    %v1766 = vpack.c.b16 %v1618, %v1614
    %v1767 = vpack.c.b16 %v1619, %v1615
    %v1768 = vpack.c.b16 %v1620, %v1616
    %v1769 = vpack.c.b16 %v1625, %v1621
    %v1770 = vpack.c.b16 %v1626, %v1622
    %v1771 = vpack.c.b16 %v1627, %v1623
    %v1772 = vpack.c.b16 %v1628, %v1624
    %v1773 = vpack.c.b16 %v1633, %v1629
    %v1774 = vpack.c.b16 %v1634, %v1630
    %v1775 = vpack.c.b16 %v1635, %v1631
    %v1776 = vpack.c.b16 %v1636, %v1632
    %v1777 = vpack.c.b16 %v1641, %v1637
    %v1778 = vpack.c.b16 %v1642, %v1638
    %v1779 = vpack.c.b16 %v1643, %v1639
    %v1780 = vpack.c.b16 %v1644, %v1640
    %v1781 = vpack.c.b16 %v1649, %v1645
    %v1782 = vpack.c.b16 %v1650, %v1646
    %v1783 = vpack.c.b16 %v1651, %v1647
    %v1784 = vpack.c.b16 %v1652, %v1648
    %v1785 = vpack.c.b16 %v1657, %v1653
    %v1786 = vpack.c.b16 %v1658, %v1654
    %v1787 = vpack.c.b16 %v1659, %v1655
    %v1788 = vpack.c.b16 %v1660, %v1656
    %1917 = vmatprep.subr.bf16.mxu0 %v1662
    %1918 = vmatpush1.bf16.msra.mxu0 %v1661
    %1919 = vmatprep.subr.bf16.mxu0 %v1666
    %1920 = vmatpush1.bf16.msra.mxu0 %v1665
    %1921 = vmatprep.subr.bf16.mxu0 %v1670
    %1922 = vmatpush1.bf16.msra.mxu0 %v1669
    %1923 = vmatprep.subr.bf16.mxu0 %v1674
    %1924 = vmatpush1.bf16.msra.mxu0 %v1673
    %1925 = vmatprep.subr.bf16.mxu0 %v1678
    %1926 = vmatpush1.bf16.msra.mxu0 %v1677
    %1927 = vmatprep.subr.bf16.mxu0 %v1682
    %1928 = vmatpush1.bf16.msra.mxu0 %v1681
    %1929 = vmatprep.subr.bf16.mxu0 %v1686
    %1930 = vmatpush1.bf16.msra.mxu0 %v1685
    %1931 = vmatprep.subr.bf16.mxu0 %v1690
    %1932 = vmatpush1.bf16.msra.mxu0 %v1689
    %1933 = vmatprep.subr.bf16.mxu0 %v1694
    %1934 = vmatpush1.bf16.msra.mxu0 %v1693
    %1935 = vmatprep.subr.bf16.mxu0 %v1698
    %1936 = vmatpush1.bf16.msra.mxu0 %v1697
    %1937 = vmatprep.subr.bf16.mxu0 %v1702
    %1938 = vmatpush1.bf16.msra.mxu0 %v1701
    %1939 = vmatprep.subr.bf16.mxu0 %v1706
    %1940 = vmatpush1.bf16.msra.mxu0 %v1705
    %1941 = vmatprep.subr.bf16.mxu0 %v1710
    %1942 = vmatpush1.bf16.msra.mxu0 %v1709
    %1943 = vmatprep.subr.bf16.mxu0 %v1714
    %1944 = vmatpush1.bf16.msra.mxu0 %v1713
    %1945 = vmatprep.subr.bf16.mxu0 %v1718
    %1946 = vmatpush1.bf16.msra.mxu0 %v1717
    %1947 = vmatprep.subr.bf16.mxu0 %v1722
    %1948 = vmatpush1.bf16.msra.mxu0 %v1721
    %1949 = vmatprep.mubr.bf16.mxu0 %v1120
    %1950 = vmatmul.mubr.bf16.gmra.mrb[0].mxu0 %v1119
    %v1951 = vpop.f32.mrb[0].mxu0
    %v1952 = vadd.f32 %v1260, %v1951
    %v1953 = vpop.f32.mrb[0].mxu0
    %v1954 = vadd.f32 %v1264, %v1953
    %v1955 = vpop.f32.mrb[0].mxu0
    %v1956 = vadd.f32 %v1260, %v1955
    %v1957 = vpop.f32.mrb[0].mxu0
    %v1958 = vadd.f32 %v1264, %v1957
    %1959 = vmatprep.mubr.bf16.mxu0 %v1124
    %1960 = vmatmul.mubr.bf16.gmra.mrb[0].mxu0 %v1123
    %v1961 = vpop.f32.mrb[0].mxu0
    %v1962 = vadd.f32 %v1260, %v1961
    %v1963 = vpop.f32.mrb[0].mxu0
    %v1964 = vadd.f32 %v1264, %v1963
    %v1965 = vpop.f32.mrb[0].mxu0
    %v1966 = vadd.f32 %v1260, %v1965
    %v1967 = vpop.f32.mrb[0].mxu0
    %v1968 = vadd.f32 %v1264, %v1967
    %1969 = vdwg.mxu0
    %1970 = vmatprep.subr.bf16.mxu0 %v1726
    %1971 = vmatpush1.bf16.msra.mxu0 %v1725
    %1972 = vmatprep.subr.bf16.mxu0 %v1730
    %1973 = vmatpush1.bf16.msra.mxu0 %v1729
    %1974 = vmatprep.subr.bf16.mxu0 %v1734
    %1975 = vmatpush1.bf16.msra.mxu0 %v1733
    %1976 = vmatprep.subr.bf16.mxu0 %v1738
    %1977 = vmatpush1.bf16.msra.mxu0 %v1737
    %1978 = vmatprep.subr.bf16.mxu0 %v1742
    %1979 = vmatpush1.bf16.msra.mxu0 %v1741
    %1980 = vmatprep.subr.bf16.mxu0 %v1746
    %1981 = vmatpush1.bf16.msra.mxu0 %v1745
    %1982 = vmatprep.subr.bf16.mxu0 %v1750
    %1983 = vmatpush1.bf16.msra.mxu0 %v1749
    %1984 = vmatprep.subr.bf16.mxu0 %v1754
    %1985 = vmatpush1.bf16.msra.mxu0 %v1753
    %1986 = vmatprep.subr.bf16.mxu0 %v1758
    %1987 = vmatpush1.bf16.msra.mxu0 %v1757
    %1988 = vmatprep.subr.bf16.mxu0 %v1762
    %1989 = vmatpush1.bf16.msra.mxu0 %v1761
    %1990 = vmatprep.subr.bf16.mxu0 %v1766
    %1991 = vmatpush1.bf16.msra.mxu0 %v1765
    %1992 = vmatprep.subr.bf16.mxu0 %v1770
    %1993 = vmatpush1.bf16.msra.mxu0 %v1769
    %1994 = vmatprep.subr.bf16.mxu0 %v1774
    %1995 = vmatpush1.bf16.msra.mxu0 %v1773
    %1996 = vmatprep.subr.bf16.mxu0 %v1778
    %1997 = vmatpush1.bf16.msra.mxu0 %v1777
    %1998 = vmatprep.subr.bf16.mxu0 %v1782
    %1999 = vmatpush1.bf16.msra.mxu0 %v1781
    %2000 = vmatprep.subr.bf16.mxu0 %v1786
    %2001 = vmatpush1.bf16.msra.mxu0 %v1785
    %2002 = vmatprep.mubr.bf16.mxu0 %v1122
    %2003 = vmatmul.mubr.bf16.gmra.mrb[0].mxu0 %v1121
    %v2004 = vpop.f32.mrb[0].mxu0
    %v2005 = vadd.f32 %v1952, %v2004
    %v2006 = vpop.f32.mrb[0].mxu0
    %v2007 = vadd.f32 %v1954, %v2006
    %v2008 = vpop.f32.mrb[0].mxu0
    %v2009 = vadd.f32 %v1956, %v2008
    %v2010 = vpop.f32.mrb[0].mxu0
    %v2011 = vadd.f32 %v1958, %v2010
    %2012 = vmatprep.mubr.bf16.mxu0 %v1126
    %2013 = vmatmul.mubr.bf16.gmra.mrb[0].mxu0 %v1125
    %v2014 = vpop.f32.mrb[0].mxu0
    %v2015 = vadd.f32 %v1962, %v2014
    %v2016 = vpop.f32.mrb[0].mxu0
    %v2017 = vadd.f32 %v1964, %v2016
    %v2018 = vpop.f32.mrb[0].mxu0
    %v2019 = vadd.f32 %v1966, %v2018
    %v2020 = vpop.f32.mrb[0].mxu0
    %v2021 = vadd.f32 %v1968, %v2020
    %2022 = vdwg.mxu0
    %2023 = vmatprep.subr.bf16.mxu0 %v1664
    %2024 = vmatpush1.bf16.msra.mxu0 %v1663
    %2025 = vmatprep.subr.bf16.mxu0 %v1668
    %2026 = vmatpush1.bf16.msra.mxu0 %v1667
    %2027 = vmatprep.subr.bf16.mxu0 %v1672
    %2028 = vmatpush1.bf16.msra.mxu0 %v1671
    %2029 = vmatprep.subr.bf16.mxu0 %v1676
    %2030 = vmatpush1.bf16.msra.mxu0 %v1675
    %2031 = vmatprep.subr.bf16.mxu0 %v1680
    %2032 = vmatpush1.bf16.msra.mxu0 %v1679
    %2033 = vmatprep.subr.bf16.mxu0 %v1684
    %2034 = vmatpush1.bf16.msra.mxu0 %v1683
    %2035 = vmatprep.subr.bf16.mxu0 %v1688
    %2036 = vmatpush1.bf16.msra.mxu0 %v1687
    %2037 = vmatprep.subr.bf16.mxu0 %v1692
    %2038 = vmatpush1.bf16.msra.mxu0 %v1691
    %2039 = vmatprep.subr.bf16.mxu0 %v1696
    %2040 = vmatpush1.bf16.msra.mxu0 %v1695
    %2041 = vmatprep.subr.bf16.mxu0 %v1700
    %2042 = vmatpush1.bf16.msra.mxu0 %v1699
    %2043 = vmatprep.subr.bf16.mxu0 %v1704
    %2044 = vmatpush1.bf16.msra.mxu0 %v1703
    %2045 = vmatprep.subr.bf16.mxu0 %v1708
    %2046 = vmatpush1.bf16.msra.mxu0 %v1707
    %2047 = vmatprep.subr.bf16.mxu0 %v1712
    %2048 = vmatpush1.bf16.msra.mxu0 %v1711
    %2049 = vmatprep.subr.bf16.mxu0 %v1716
    %2050 = vmatpush1.bf16.msra.mxu0 %v1715
    %2051 = vmatprep.subr.bf16.mxu0 %v1720
    %2052 = vmatpush1.bf16.msra.mxu0 %v1719
    %2053 = vmatprep.subr.bf16.mxu0 %v1724
    %2054 = vmatpush1.bf16.msra.mxu0 %v1723
    %2055 = vmatprep.mubr.bf16.mxu0 %v1120
    %2056 = vmatmul.mubr.bf16.gmra.mrb[0].mxu0 %v1119
    %v2057 = vpop.f32.mrb[0].mxu0
    %v2058 = vadd.f32 %v1268, %v2057
    %v2059 = vpop.f32.mrb[0].mxu0
    %v2060 = vadd.f32 %v1272, %v2059
    %v2061 = vpop.f32.mrb[0].mxu0
    %v2062 = vadd.f32 %v1268, %v2061
    %v2063 = vpop.f32.mrb[0].mxu0
    %v2064 = vadd.f32 %v1272, %v2063
    %2065 = vmatprep.mubr.bf16.mxu0 %v1124
    %2066 = vmatmul.mubr.bf16.gmra.mrb[0].mxu0 %v1123
    %v2067 = vpop.f32.mrb[0].mxu0
    %v2068 = vadd.f32 %v1268, %v2067
    %v2069 = vpop.f32.mrb[0].mxu0
    %v2070 = vadd.f32 %v1272, %v2069
    %v2071 = vpop.f32.mrb[0].mxu0
    %v2072 = vadd.f32 %v1268, %v2071
    %v2073 = vpop.f32.mrb[0].mxu0
    %v2074 = vadd.f32 %v1272, %v2073
    %2075 = vdwg.mxu0
    %2076 = vmatprep.subr.bf16.mxu0 %v1728
    %2077 = vmatpush1.bf16.msra.mxu0 %v1727
    %2078 = vmatprep.subr.bf16.mxu0 %v1732
    %2079 = vmatpush1.bf16.msra.mxu0 %v1731
    %2080 = vmatprep.subr.bf16.mxu0 %v1736
    %2081 = vmatpush1.bf16.msra.mxu0 %v1735
    %2082 = vmatprep.subr.bf16.mxu0 %v1740
    %2083 = vmatpush1.bf16.msra.mxu0 %v1739
    %2084 = vmatprep.subr.bf16.mxu0 %v1744
    %2085 = vmatpush1.bf16.msra.mxu0 %v1743
    %2086 = vmatprep.subr.bf16.mxu0 %v1748
    %2087 = vmatpush1.bf16.msra.mxu0 %v1747
    %2088 = vmatprep.subr.bf16.mxu0 %v1752
    %2089 = vmatpush1.bf16.msra.mxu0 %v1751
    %2090 = vmatprep.subr.bf16.mxu0 %v1756
    %2091 = vmatpush1.bf16.msra.mxu0 %v1755
    %2092 = vmatprep.subr.bf16.mxu0 %v1760
    %2093 = vmatpush1.bf16.msra.mxu0 %v1759
    %2094 = vmatprep.subr.bf16.mxu0 %v1764
    %2095 = vmatpush1.bf16.msra.mxu0 %v1763
    %2096 = vmatprep.subr.bf16.mxu0 %v1768
    %2097 = vmatpush1.bf16.msra.mxu0 %v1767
    %2098 = vmatprep.subr.bf16.mxu0 %v1772
    %2099 = vmatpush1.bf16.msra.mxu0 %v1771
    %2100 = vmatprep.subr.bf16.mxu0 %v1776
    %2101 = vmatpush1.bf16.msra.mxu0 %v1775
    %2102 = vmatprep.subr.bf16.mxu0 %v1780
    %2103 = vmatpush1.bf16.msra.mxu0 %v1779
    %2104 = vmatprep.subr.bf16.mxu0 %v1784
    %2105 = vmatpush1.bf16.msra.mxu0 %v1783
    %2106 = vmatprep.subr.bf16.mxu0 %v1788
    %2107 = vmatpush1.bf16.msra.mxu0 %v1787
    %2108 = vmatprep.mubr.bf16.mxu0 %v1122
    %2109 = vmatmul.mubr.bf16.gmra.mrb[0].mxu0 %v1121
    %v2110 = vpop.f32.mrb[0].mxu0
    %v2111 = vadd.f32 %v2058, %v2110
    %v2112 = vpop.f32.mrb[0].mxu0
    %v2113 = vadd.f32 %v2060, %v2112
    %v2114 = vpop.f32.mrb[0].mxu0
    %v2115 = vadd.f32 %v2062, %v2114
    %v2116 = vpop.f32.mrb[0].mxu0
    %v2117 = vadd.f32 %v2064, %v2116
    %2118 = vmatprep.mubr.bf16.mxu0 %v1126
    %2119 = vmatmul.mubr.bf16.gmra.mrb[0].mxu0 %v1125
    %v2120 = vpop.f32.mrb[0].mxu0
    %v2121 = vadd.f32 %v2068, %v2120
    %v2122 = vpop.f32.mrb[0].mxu0
    %v2123 = vadd.f32 %v2070, %v2122
    %v2124 = vpop.f32.mrb[0].mxu0
    %v2125 = vadd.f32 %v2072, %v2124
    %v2126 = vpop.f32.mrb[0].mxu0
    %v2127 = vadd.f32 %v2074, %v2126
    %2128 = vdwg.mxu0
    %v2129 = vxor.u32 %v2005, 2147483648
    %v2130 = vxor.u32 %v2007, 2147483648
    %v2131 = vxor.u32 %v2111, 2147483648
    %v2132 = vxor.u32 %v2113, 2147483648
    %v2133 = vxor.u32 %v2009, 2147483648
    %v2134 = vxor.u32 %v2011, 2147483648
    %v2135 = vxor.u32 %v2115, 2147483648
    %v2136 = vxor.u32 %v2117, 2147483648
    %v2137 = vxor.u32 %v2015, 2147483648
    %v2138 = vxor.u32 %v2017, 2147483648
    %v2139 = vxor.u32 %v2121, 2147483648
    %v2140 = vxor.u32 %v2123, 2147483648
    %v2141 = vxor.u32 %v2019, 2147483648
    %v2142 = vxor.u32 %v2021, 2147483648
    %v2143 = vxor.u32 %v2125, 2147483648
    %v2144 = vxor.u32 %v2127, 2147483648
    %v2145 = vmul.f32 %v2129, 1.442695
    %v2146 = vpow.pop %v2145
    %v2147 = vmul.f32 %v2130, 1.442695
    %v2148 = vpow.pop %v2147
    %v2149 = vmul.f32 %v2131, 1.442695
    %v2150 = vpow.pop %v2149
    %v2151 = vmul.f32 %v2132, 1.442695
    %v2152 = vpow.pop %v2151
    %v2153 = vmul.f32 %v2133, 1.442695
    %v2154 = vpow.pop %v2153
    %v2155 = vmul.f32 %v2134, 1.442695
    %v2156 = vpow.pop %v2155
    %v2157 = vmul.f32 %v2135, 1.442695
    %v2158 = vpow.pop %v2157
    %v2159 = vmul.f32 %v2136, 1.442695
    %v2160 = vpow.pop %v2159
    %v2161 = vmul.f32 %v2137, 1.442695
    %v2162 = vpow.pop %v2161
    %v2163 = vmul.f32 %v2138, 1.442695
    %v2164 = vpow.pop %v2163
    %v2165 = vmul.f32 %v2139, 1.442695
    %v2166 = vpow.pop %v2165
    %v2167 = vmul.f32 %v2140, 1.442695
    %v2168 = vpow.pop %v2167
    %v2169 = vmul.f32 %v2141, 1.442695
    %v2170 = vpow.pop %v2169
    %v2171 = vmul.f32 %v2142, 1.442695
    %v2172 = vpow.pop %v2171
    %v2173 = vmul.f32 %v2143, 1.442695
    %v2174 = vpow.pop %v2173
    %v2175 = vmul.f32 %v2144, 1.442695
    %v2176 = vpow.pop %v2175
    %v2177 = vadd.f32 %v2146, 1.0
    %v2178 = vadd.f32 %v2148, 1.0
    %v2179 = vadd.f32 %v2150, 1.0
    %v2180 = vadd.f32 %v2152, 1.0
    %v2181 = vadd.f32 %v2154, 1.0
    %v2182 = vadd.f32 %v2156, 1.0
    %v2183 = vadd.f32 %v2158, 1.0
    %v2184 = vadd.f32 %v2160, 1.0
    %v2185 = vadd.f32 %v2162, 1.0
    %v2186 = vadd.f32 %v2164, 1.0
    %v2187 = vadd.f32 %v2166, 1.0
    %v2188 = vadd.f32 %v2168, 1.0
    %v2189 = vadd.f32 %v2170, 1.0
    %v2190 = vadd.f32 %v2172, 1.0
    %v2191 = vadd.f32 %v2174, 1.0
    %v2192 = vadd.f32 %v2176, 1.0
    %v2193 = vrcp.pop %v2177
    %v2194 = vmul.f32 1.0, %v2193
    %v2195 = vrcp.pop %v2178
    %v2196 = vmul.f32 1.0, %v2195
    %v2197 = vrcp.pop %v2179
    %v2198 = vmul.f32 1.0, %v2197
    %v2199 = vrcp.pop %v2180
    %v2200 = vmul.f32 1.0, %v2199
    %v2201 = vrcp.pop %v2181
    %v2202 = vmul.f32 1.0, %v2201
    %v2203 = vrcp.pop %v2182
    %v2204 = vmul.f32 1.0, %v2203
    %v2205 = vrcp.pop %v2183
    %v2206 = vmul.f32 1.0, %v2205
    %v2207 = vrcp.pop %v2184
    %v2208 = vmul.f32 1.0, %v2207
    %v2209 = vrcp.pop %v2185
    %v2210 = vmul.f32 1.0, %v2209
    %v2211 = vrcp.pop %v2186
    %v2212 = vmul.f32 1.0, %v2211
    %v2213 = vrcp.pop %v2187
    %v2214 = vmul.f32 1.0, %v2213
    %v2215 = vrcp.pop %v2188
    %v2216 = vmul.f32 1.0, %v2215
    %v2217 = vrcp.pop %v2189
    %v2218 = vmul.f32 1.0, %v2217
    %v2219 = vrcp.pop %v2190
    %v2220 = vmul.f32 1.0, %v2219
    %v2221 = vrcp.pop %v2191
    %v2222 = vmul.f32 1.0, %v2221
    %v2223 = vrcp.pop %v2192
    %v2224 = vmul.f32 1.0, %v2223
    %v2225 = vmul.f32 %v2005, %v2194
    %v2226 = vmul.f32 %v2007, %v2196
    %v2227 = vmul.f32 %v2111, %v2198
    %v2228 = vmul.f32 %v2113, %v2200
    %v2229 = vmul.f32 %v2009, %v2202
    %v2230 = vmul.f32 %v2011, %v2204
    %v2231 = vmul.f32 %v2115, %v2206
    %v2232 = vmul.f32 %v2117, %v2208
    %v2233 = vmul.f32 %v2015, %v2210
    %v2234 = vmul.f32 %v2017, %v2212
    %v2235 = vmul.f32 %v2121, %v2214
    %v2236 = vmul.f32 %v2123, %v2216
    %v2237 = vmul.f32 %v2019, %v2218
    %v2238 = vmul.f32 %v2021, %v2220
    %v2239 = vmul.f32 %v2125, %v2222
    %v2240 = vmul.f32 %v2127, %v2224
    %v2241 = vld [vmem:[#allocation8] sm:$0xff]
    %v2242 = vld [vmem:[#allocation8 + $0x8] sm:$0xff]
    %v2243 = vld [vmem:[#allocation8 + $0x10] sm:$0xff]
    %v2244 = vld [vmem:[#allocation8 + $0x18] sm:$0xff]
    %v2245 = vld [vmem:[#allocation8 + $0x20] sm:$0x1]
    %v2246 = vld [vmem:[#allocation8 + $0x28] sm:$0x1]
    %v2247 = vld [vmem:[#allocation8 + $0x30] sm:$0x1]
    %v2248 = vld [vmem:[#allocation8 + $0x38] sm:$0x1]
    %v2249 = vrot.slane %v2225, 7
    %v2250 = vrot.slane %v2226, 7
    %v2251 = vrot.slane %v2227, 7
    %v2252 = vrot.slane %v2228, 7
    %v2253 = vrot.slane %v2229, 7
    %v2254 = vrot.slane %v2230, 7
    %v2255 = vrot.slane %v2231, 7
    %v2256 = vrot.slane %v2232, 7
    %v2257 = vrot.slane %v2233, 7
    %v2258 = vrot.slane %v2234, 7
    %v2259 = vrot.slane %v2235, 7
    %v2260 = vrot.slane %v2236, 7
    %v2261 = vrot.slane %v2237, 7
    %v2262 = vrot.slane %v2238, 7
    %v2263 = vrot.slane %v2239, 7
    %v2264 = vrot.slane %v2240, 7
    %v2265 = vsel %vm143, %v2257, %v2261
    %v2266 = vsel %vm143, %v2258, %v2262
    %v2267 = vsel %vm143, %v2259, %v2263
    %v2268 = vsel %vm143, %v2260, %v2264
    %v2269 = vsel %vm143, %v2253, %v2257
    %v2270 = vsel %vm143, %v2254, %v2258
    %v2271 = vsel %vm143, %v2255, %v2259
    %v2272 = vsel %vm143, %v2256, %v2260
    %v2273 = vsel %vm143, %v2249, %v2253
    %v2274 = vsel %vm143, %v2250, %v2254
    %v2275 = vsel %vm143, %v2251, %v2255
    %v2276 = vsel %vm143, %v2252, %v2256
    %v2277 = vsel %vm143, %v2261, %v2249
    %v2278 = vsel %vm143, %v2262, %v2250
    %v2279 = vsel %vm143, %v2263, %v2251
    %v2280 = vsel %vm143, %v2264, %v2252
    %v2281 = vmul.f32 %v2277, %v163
    %v2282 = vmul.f32 %v2278, %v163
    %v2283 = vmul.f32 %v2279, %v163
    %v2284 = vmul.f32 %v2280, %v163
    %v2285 = vmul.f32 %v2273, %v168
    %v2286 = vmul.f32 %v2274, %v168
    %v2287 = vmul.f32 %v2275, %v168
    %v2288 = vmul.f32 %v2276, %v168
    %v2289 = vmul.f32 %v2269, %v173
    %v2290 = vmul.f32 %v2270, %v173
    %v2291 = vmul.f32 %v2271, %v173
    %v2292 = vmul.f32 %v2272, %v173
    %v2293 = vmul.f32 %v2265, %v178
    %v2294 = vmul.f32 %v2266, %v178
    %v2295 = vmul.f32 %v2267, %v178
    %v2296 = vmul.f32 %v2268, %v178
    %2297 = vrot.lane.b32.xlu0 %v2281, 32
    %v2298 = vpop.permute.xlu0 %2297
    %2299 = vrot.lane.b32.xlu0 %v2285, 32
    %v2300 = vpop.permute.xlu0 %2299
    %2301 = vrot.lane.b32.xlu0 %v2289, 32
    %v2302 = vpop.permute.xlu0 %2301
    %2303 = vrot.lane.b32.xlu0 %v2293, 32
    %v2304 = vpop.permute.xlu0 %2303
    %2305 = vrot.lane.b32.xlu0 %v2282, 32
    %v2306 = vpop.permute.xlu0 %2305
    %2307 = vrot.lane.b32.xlu0 %v2286, 32
    %v2308 = vpop.permute.xlu0 %2307
    %2309 = vrot.lane.b32.xlu0 %v2290, 32
    %v2310 = vpop.permute.xlu0 %2309
    %2311 = vrot.lane.b32.xlu0 %v2294, 32
    %v2312 = vpop.permute.xlu0 %2311
    %2313 = vrot.lane.b32.xlu0 %v2283, 32
    %v2314 = vpop.permute.xlu0 %2313
    %2315 = vrot.lane.b32.xlu0 %v2287, 32
    %v2316 = vpop.permute.xlu0 %2315
    %2317 = vrot.lane.b32.xlu0 %v2291, 32
    %v2318 = vpop.permute.xlu0 %2317
    %2319 = vrot.lane.b32.xlu0 %v2295, 32
    %v2320 = vpop.permute.xlu0 %2319
    %2321 = vrot.lane.b32.xlu0 %v2284, 32
    %v2322 = vpop.permute.xlu0 %2321
    %2323 = vrot.lane.b32.xlu0 %v2288, 32
    %v2324 = vpop.permute.xlu0 %2323
    %2325 = vrot.lane.b32.xlu0 %v2292, 32
    %v2326 = vpop.permute.xlu0 %2325
    %2327 = vrot.lane.b32.xlu0 %v2296, 32
    %v2328 = vpop.permute.xlu0 %2327
    %v2329 = vsel %vm230, %v2314, %v2322
    %v2330 = vsel %vm230, %v2316, %v2324
    %v2331 = vsel %vm230, %v2318, %v2326
    %v2332 = vsel %vm230, %v2320, %v2328
    %v2333 = vsel %vm230, %v2306, %v2314
    %v2334 = vsel %vm230, %v2308, %v2316
    %v2335 = vsel %vm230, %v2310, %v2318
    %v2336 = vsel %vm230, %v2312, %v2320
    %v2337 = vsel %vm230, %v2298, %v2306
    %v2338 = vsel %vm230, %v2300, %v2308
    %v2339 = vsel %vm230, %v2302, %v2310
    %v2340 = vsel %vm230, %v2304, %v2312
    %v2341 = vsel %vm230, %v2322, %v2298
    %v2342 = vsel %vm230, %v2324, %v2300
    %v2343 = vsel %vm230, %v2326, %v2302
    %v2344 = vsel %vm230, %v2328, %v2304
    %v2345 = vlaneseq
    %v2346 = vshrl.u32 %v2345, 7
    %v2347 = vsub.s32 0, %v2346
    %v2348 = vrot.slane %v2241, %v2347
    %v2349 = vlaneseq
    %v2350 = vshrl.u32 %v2349, 7
    %v2351 = vsub.s32 0, %v2350
    %v2352 = vrot.slane %v2242, %v2351
    %v2353 = vlaneseq
    %v2354 = vshrl.u32 %v2353, 7
    %v2355 = vsub.s32 0, %v2354
    %v2356 = vrot.slane %v2243, %v2355
    %v2357 = vlaneseq
    %v2358 = vshrl.u32 %v2357, 7
    %v2359 = vsub.s32 0, %v2358
    %v2360 = vrot.slane %v2244, %v2359
    %v2361 = vmul.f32 %v2341, %v2348
    %v2362 = vmul.f32 %v2337, %v2352
    %v2363 = vmul.f32 %v2333, %v2356
    %v2364 = vmul.f32 %v2329, %v2360
    %v2365 = vmul.f32 %v2342, %v2348
    %v2366 = vmul.f32 %v2338, %v2352
    %v2367 = vmul.f32 %v2334, %v2356
    %v2368 = vmul.f32 %v2330, %v2360
    %v2369 = vmul.f32 %v2343, %v2348
    %v2370 = vmul.f32 %v2339, %v2352
    %v2371 = vmul.f32 %v2335, %v2356
    %v2372 = vmul.f32 %v2331, %v2360
    %v2373 = vmul.f32 %v2344, %v2348
    %v2374 = vmul.f32 %v2340, %v2352
    %v2375 = vmul.f32 %v2336, %v2356
    %v2376 = vmul.f32 %v2332, %v2360
    %v2377 = vlaneseq
    %v2378 = vshrl.u32 %v2377, 7
    %v2379 = vsub.s32 1, %v2378
    %v2380 = vrot.slane %v2241, %v2379
    %v2381 = vlaneseq
    %v2382 = vshrl.u32 %v2381, 7
    %v2383 = vsub.s32 1, %v2382
    %v2384 = vrot.slane %v2242, %v2383
    %v2385 = vlaneseq
    %v2386 = vshrl.u32 %v2385, 7
    %v2387 = vsub.s32 1, %v2386
    %v2388 = vrot.slane %v2243, %v2387
    %v2389 = vlaneseq
    %v2390 = vshrl.u32 %v2389, 7
    %v2391 = vsub.s32 1, %v2390
    %v2392 = vrot.slane %v2244, %v2391
    %v2393 = vmul.f32 %v2281, %v2380
    %v2394 = vmul.f32 %v2282, %v2384
    %v2395 = vmul.f32 %v2283, %v2388
    %v2396 = vmul.f32 %v2284, %v2392
    %v2397 = vmul.f32 %v2285, %v2380
    %v2398 = vmul.f32 %v2286, %v2384
    %v2399 = vmul.f32 %v2287, %v2388
    %v2400 = vmul.f32 %v2288, %v2392
    %v2401 = vmul.f32 %v2289, %v2380
    %v2402 = vmul.f32 %v2290, %v2384
    %v2403 = vmul.f32 %v2291, %v2388
    %v2404 = vmul.f32 %v2292, %v2392
    %v2405 = vmul.f32 %v2293, %v2380
    %v2406 = vmul.f32 %v2294, %v2384
    %v2407 = vmul.f32 %v2295, %v2388
    %v2408 = vmul.f32 %v2296, %v2392
    %v2409 = vadd.f32 %v2361, %v2393
    %v2410 = vadd.f32 %v2362, %v2394
    %v2411 = vadd.f32 %v2363, %v2395
    %v2412 = vadd.f32 %v2364, %v2396
    %v2413 = vadd.f32 %v2365, %v2397
    %v2414 = vadd.f32 %v2366, %v2398
    %v2415 = vadd.f32 %v2367, %v2399
    %v2416 = vadd.f32 %v2368, %v2400
    %v2417 = vadd.f32 %v2369, %v2401
    %v2418 = vadd.f32 %v2370, %v2402
    %v2419 = vadd.f32 %v2371, %v2403
    %v2420 = vadd.f32 %v2372, %v2404
    %v2421 = vadd.f32 %v2373, %v2405
    %v2422 = vadd.f32 %v2374, %v2406
    %v2423 = vadd.f32 %v2375, %v2407
    %v2424 = vadd.f32 %v2376, %v2408
    %2425 = vrot.lane.b32.xlu0 %v2281, 96
    %v2426 = vpop.permute.xlu0 %2425
    %2427 = vrot.lane.b32.xlu0 %v2285, 96
    %v2428 = vpop.permute.xlu0 %2427
    %2429 = vrot.lane.b32.xlu0 %v2289, 96
    %v2430 = vpop.permute.xlu0 %2429
    %2431 = vrot.lane.b32.xlu0 %v2293, 96
    %v2432 = vpop.permute.xlu0 %2431
    %2433 = vrot.lane.b32.xlu0 %v2282, 96
    %v2434 = vpop.permute.xlu0 %2433
    %2435 = vrot.lane.b32.xlu0 %v2286, 96
    %v2436 = vpop.permute.xlu0 %2435
    %2437 = vrot.lane.b32.xlu0 %v2290, 96
    %v2438 = vpop.permute.xlu0 %2437
    %2439 = vrot.lane.b32.xlu0 %v2294, 96
    %v2440 = vpop.permute.xlu0 %2439
    %2441 = vrot.lane.b32.xlu0 %v2283, 96
    %v2442 = vpop.permute.xlu0 %2441
    %2443 = vrot.lane.b32.xlu0 %v2287, 96
    %v2444 = vpop.permute.xlu0 %2443
    %2445 = vrot.lane.b32.xlu0 %v2291, 96
    %v2446 = vpop.permute.xlu0 %2445
    %2447 = vrot.lane.b32.xlu0 %v2295, 96
    %v2448 = vpop.permute.xlu0 %2447
    %2449 = vrot.lane.b32.xlu0 %v2284, 96
    %v2450 = vpop.permute.xlu0 %2449
    %2451 = vrot.lane.b32.xlu0 %v2288, 96
    %v2452 = vpop.permute.xlu0 %2451
    %2453 = vrot.lane.b32.xlu0 %v2292, 96
    %v2454 = vpop.permute.xlu0 %2453
    %2455 = vrot.lane.b32.xlu0 %v2296, 96
    %v2456 = vpop.permute.xlu0 %2455
    %v2457 = vsel %vm359, %v2442, %v2450
    %v2458 = vsel %vm359, %v2444, %v2452
    %v2459 = vsel %vm359, %v2446, %v2454
    %v2460 = vsel %vm359, %v2448, %v2456
    %v2461 = vsel %vm359, %v2434, %v2442
    %v2462 = vsel %vm359, %v2436, %v2444
    %v2463 = vsel %vm359, %v2438, %v2446
    %v2464 = vsel %vm359, %v2440, %v2448
    %v2465 = vsel %vm359, %v2426, %v2434
    %v2466 = vsel %vm359, %v2428, %v2436
    %v2467 = vsel %vm359, %v2430, %v2438
    %v2468 = vsel %vm359, %v2432, %v2440
    %v2469 = vsel %vm359, %v2450, %v2426
    %v2470 = vsel %vm359, %v2452, %v2428
    %v2471 = vsel %vm359, %v2454, %v2430
    %v2472 = vsel %vm359, %v2456, %v2432
    %v2473 = vlaneseq
    %v2474 = vshrl.u32 %v2473, 7
    %v2475 = vsub.s32 2, %v2474
    %v2476 = vrot.slane %v2241, %v2475
    %v2477 = vlaneseq
    %v2478 = vshrl.u32 %v2477, 7
    %v2479 = vsub.s32 2, %v2478
    %v2480 = vrot.slane %v2242, %v2479
    %v2481 = vlaneseq
    %v2482 = vshrl.u32 %v2481, 7
    %v2483 = vsub.s32 2, %v2482
    %v2484 = vrot.slane %v2243, %v2483
    %v2485 = vlaneseq
    %v2486 = vshrl.u32 %v2485, 7
    %v2487 = vsub.s32 2, %v2486
    %v2488 = vrot.slane %v2244, %v2487
    %v2489 = vmul.f32 %v2465, %v2476
    %v2490 = vmul.f32 %v2461, %v2480
    %v2491 = vmul.f32 %v2457, %v2484
    %v2492 = vmul.f32 %v2469, %v2488
    %v2493 = vmul.f32 %v2466, %v2476
    %v2494 = vmul.f32 %v2462, %v2480
    %v2495 = vmul.f32 %v2458, %v2484
    %v2496 = vmul.f32 %v2470, %v2488
    %v2497 = vmul.f32 %v2467, %v2476
    %v2498 = vmul.f32 %v2463, %v2480
    %v2499 = vmul.f32 %v2459, %v2484
    %v2500 = vmul.f32 %v2471, %v2488
    %v2501 = vmul.f32 %v2468, %v2476
    %v2502 = vmul.f32 %v2464, %v2480
    %v2503 = vmul.f32 %v2460, %v2484
    %v2504 = vmul.f32 %v2472, %v2488
    %v2505 = vadd.f32 %v2409, %v2489
    %v2506 = vadd.f32 %v2410, %v2490
    %v2507 = vadd.f32 %v2411, %v2491
    %v2508 = vadd.f32 %v2412, %v2492
    %v2509 = vadd.f32 %v2413, %v2493
    %v2510 = vadd.f32 %v2414, %v2494
    %v2511 = vadd.f32 %v2415, %v2495
    %v2512 = vadd.f32 %v2416, %v2496
    %v2513 = vadd.f32 %v2417, %v2497
    %v2514 = vadd.f32 %v2418, %v2498
    %v2515 = vadd.f32 %v2419, %v2499
    %v2516 = vadd.f32 %v2420, %v2500
    %v2517 = vadd.f32 %v2421, %v2501
    %v2518 = vadd.f32 %v2422, %v2502
    %v2519 = vadd.f32 %v2423, %v2503
    %v2520 = vadd.f32 %v2424, %v2504
    %2521 = vrot.lane.b32.xlu0 %v2225, 32
    %v2522 = vpop.permute.xlu0 %2521
    %2523 = vrot.lane.b32.xlu0 %v2229, 32
    %v2524 = vpop.permute.xlu0 %2523
    %2525 = vrot.lane.b32.xlu0 %v2233, 32
    %v2526 = vpop.permute.xlu0 %2525
    %2527 = vrot.lane.b32.xlu0 %v2237, 32
    %v2528 = vpop.permute.xlu0 %2527
    %2529 = vrot.lane.b32.xlu0 %v2226, 32
    %v2530 = vpop.permute.xlu0 %2529
    %2531 = vrot.lane.b32.xlu0 %v2230, 32
    %v2532 = vpop.permute.xlu0 %2531
    %2533 = vrot.lane.b32.xlu0 %v2234, 32
    %v2534 = vpop.permute.xlu0 %2533
    %2535 = vrot.lane.b32.xlu0 %v2238, 32
    %v2536 = vpop.permute.xlu0 %2535
    %2537 = vrot.lane.b32.xlu0 %v2227, 32
    %v2538 = vpop.permute.xlu0 %2537
    %2539 = vrot.lane.b32.xlu0 %v2231, 32
    %v2540 = vpop.permute.xlu0 %2539
    %2541 = vrot.lane.b32.xlu0 %v2235, 32
    %v2542 = vpop.permute.xlu0 %2541
    %2543 = vrot.lane.b32.xlu0 %v2239, 32
    %v2544 = vpop.permute.xlu0 %2543
    %2545 = vrot.lane.b32.xlu0 %v2228, 32
    %v2546 = vpop.permute.xlu0 %2545
    %2547 = vrot.lane.b32.xlu0 %v2232, 32
    %v2548 = vpop.permute.xlu0 %2547
    %2549 = vrot.lane.b32.xlu0 %v2236, 32
    %v2550 = vpop.permute.xlu0 %2549
    %2551 = vrot.lane.b32.xlu0 %v2240, 32
    %v2552 = vpop.permute.xlu0 %2551
    %v2553 = vsel %vm230, %v2538, %v2546
    %v2554 = vsel %vm230, %v2540, %v2548
    %v2555 = vsel %vm230, %v2542, %v2550
    %v2556 = vsel %vm230, %v2544, %v2552
    %v2557 = vsel %vm230, %v2530, %v2538
    %v2558 = vsel %vm230, %v2532, %v2540
    %v2559 = vsel %vm230, %v2534, %v2542
    %v2560 = vsel %vm230, %v2536, %v2544
    %v2561 = vsel %vm230, %v2522, %v2530
    %v2562 = vsel %vm230, %v2524, %v2532
    %v2563 = vsel %vm230, %v2526, %v2534
    %v2564 = vsel %vm230, %v2528, %v2536
    %v2565 = vsel %vm230, %v2546, %v2522
    %v2566 = vsel %vm230, %v2548, %v2524
    %v2567 = vsel %vm230, %v2550, %v2526
    %v2568 = vsel %vm230, %v2552, %v2528
    %v2569 = vlaneseq
    %v2570 = vshrl.u32 %v2569, 7
    %v2571 = vsub.s32 3, %v2570
    %v2572 = vrot.slane %v2241, %v2571
    %v2573 = vlaneseq
    %v2574 = vshrl.u32 %v2573, 7
    %v2575 = vsub.s32 3, %v2574
    %v2576 = vrot.slane %v2242, %v2575
    %v2577 = vlaneseq
    %v2578 = vshrl.u32 %v2577, 7
    %v2579 = vsub.s32 3, %v2578
    %v2580 = vrot.slane %v2243, %v2579
    %v2581 = vlaneseq
    %v2582 = vshrl.u32 %v2581, 7
    %v2583 = vsub.s32 3, %v2582
    %v2584 = vrot.slane %v2244, %v2583
    %v2585 = vmul.f32 %v2565, %v2572
    %v2586 = vmul.f32 %v2561, %v2576
    %v2587 = vmul.f32 %v2557, %v2580
    %v2588 = vmul.f32 %v2553, %v2584
    %v2589 = vmul.f32 %v2566, %v2572
    %v2590 = vmul.f32 %v2562, %v2576
    %v2591 = vmul.f32 %v2558, %v2580
    %v2592 = vmul.f32 %v2554, %v2584
    %v2593 = vmul.f32 %v2567, %v2572
    %v2594 = vmul.f32 %v2563, %v2576
    %v2595 = vmul.f32 %v2559, %v2580
    %v2596 = vmul.f32 %v2555, %v2584
    %v2597 = vmul.f32 %v2568, %v2572
    %v2598 = vmul.f32 %v2564, %v2576
    %v2599 = vmul.f32 %v2560, %v2580
    %v2600 = vmul.f32 %v2556, %v2584
    %v2601 = vadd.f32 %v2505, %v2585
    %v2602 = vadd.f32 %v2506, %v2586
    %v2603 = vadd.f32 %v2507, %v2587
    %v2604 = vadd.f32 %v2508, %v2588
    %v2605 = vadd.f32 %v2509, %v2589
    %v2606 = vadd.f32 %v2510, %v2590
    %v2607 = vadd.f32 %v2511, %v2591
    %v2608 = vadd.f32 %v2512, %v2592
    %v2609 = vadd.f32 %v2513, %v2593
    %v2610 = vadd.f32 %v2514, %v2594
    %v2611 = vadd.f32 %v2515, %v2595
    %v2612 = vadd.f32 %v2516, %v2596
    %v2613 = vadd.f32 %v2517, %v2597
    %v2614 = vadd.f32 %v2518, %v2598
    %v2615 = vadd.f32 %v2519, %v2599
    %v2616 = vadd.f32 %v2520, %v2600
    %v2617 = vlaneseq
    %v2618 = vshrl.u32 %v2617, 7
    %v2619 = vsub.s32 4, %v2618
    %v2620 = vrot.slane %v2241, %v2619
    %v2621 = vlaneseq
    %v2622 = vshrl.u32 %v2621, 7
    %v2623 = vsub.s32 4, %v2622
    %v2624 = vrot.slane %v2242, %v2623
    %v2625 = vlaneseq
    %v2626 = vshrl.u32 %v2625, 7
    %v2627 = vsub.s32 4, %v2626
    %v2628 = vrot.slane %v2243, %v2627
    %v2629 = vlaneseq
    %v2630 = vshrl.u32 %v2629, 7
    %v2631 = vsub.s32 4, %v2630
    %v2632 = vrot.slane %v2244, %v2631
    %v2633 = vmul.f32 %v2225, %v2620
    %v2634 = vmul.f32 %v2226, %v2624
    %v2635 = vmul.f32 %v2227, %v2628
    %v2636 = vmul.f32 %v2228, %v2632
    %v2637 = vmul.f32 %v2229, %v2620
    %v2638 = vmul.f32 %v2230, %v2624
    %v2639 = vmul.f32 %v2231, %v2628
    %v2640 = vmul.f32 %v2232, %v2632
    %v2641 = vmul.f32 %v2233, %v2620
    %v2642 = vmul.f32 %v2234, %v2624
    %v2643 = vmul.f32 %v2235, %v2628
    %v2644 = vmul.f32 %v2236, %v2632
    %v2645 = vmul.f32 %v2237, %v2620
    %v2646 = vmul.f32 %v2238, %v2624
    %v2647 = vmul.f32 %v2239, %v2628
    %v2648 = vmul.f32 %v2240, %v2632
    %v2649 = vadd.f32 %v2601, %v2633
    %v2650 = vadd.f32 %v2602, %v2634
    %v2651 = vadd.f32 %v2603, %v2635
    %v2652 = vadd.f32 %v2604, %v2636
    %v2653 = vadd.f32 %v2605, %v2637
    %v2654 = vadd.f32 %v2606, %v2638
    %v2655 = vadd.f32 %v2607, %v2639
    %v2656 = vadd.f32 %v2608, %v2640
    %v2657 = vadd.f32 %v2609, %v2641
    %v2658 = vadd.f32 %v2610, %v2642
    %v2659 = vadd.f32 %v2611, %v2643
    %v2660 = vadd.f32 %v2612, %v2644
    %v2661 = vadd.f32 %v2613, %v2645
    %v2662 = vadd.f32 %v2614, %v2646
    %v2663 = vadd.f32 %v2615, %v2647
    %v2664 = vadd.f32 %v2616, %v2648
    %2665 = vrot.lane.b32.xlu0 %v2225, 96
    %v2666 = vpop.permute.xlu0 %2665
    %2667 = vrot.lane.b32.xlu0 %v2229, 96
    %v2668 = vpop.permute.xlu0 %2667
    %2669 = vrot.lane.b32.xlu0 %v2233, 96
    %v2670 = vpop.permute.xlu0 %2669
    %2671 = vrot.lane.b32.xlu0 %v2237, 96
    %v2672 = vpop.permute.xlu0 %2671
    %2673 = vrot.lane.b32.xlu0 %v2226, 96
    %v2674 = vpop.permute.xlu0 %2673
    %2675 = vrot.lane.b32.xlu0 %v2230, 96
    %v2676 = vpop.permute.xlu0 %2675
    %2677 = vrot.lane.b32.xlu0 %v2234, 96
    %v2678 = vpop.permute.xlu0 %2677
    %2679 = vrot.lane.b32.xlu0 %v2238, 96
    %v2680 = vpop.permute.xlu0 %2679
    %2681 = vrot.lane.b32.xlu0 %v2227, 96
    %v2682 = vpop.permute.xlu0 %2681
    %2683 = vrot.lane.b32.xlu0 %v2231, 96
    %v2684 = vpop.permute.xlu0 %2683
    %2685 = vrot.lane.b32.xlu0 %v2235, 96
    %v2686 = vpop.permute.xlu0 %2685
    %2687 = vrot.lane.b32.xlu0 %v2239, 96
    %v2688 = vpop.permute.xlu0 %2687
    %2689 = vrot.lane.b32.xlu0 %v2228, 96
    %v2690 = vpop.permute.xlu0 %2689
    %2691 = vrot.lane.b32.xlu0 %v2232, 96
    %v2692 = vpop.permute.xlu0 %2691
    %2693 = vrot.lane.b32.xlu0 %v2236, 96
    %v2694 = vpop.permute.xlu0 %2693
    %2695 = vrot.lane.b32.xlu0 %v2240, 96
    %v2696 = vpop.permute.xlu0 %2695
    %v2697 = vsel %vm359, %v2682, %v2690
    %v2698 = vsel %vm359, %v2684, %v2692
    %v2699 = vsel %vm359, %v2686, %v2694
    %v2700 = vsel %vm359, %v2688, %v2696
    %v2701 = vsel %vm359, %v2674, %v2682
    %v2702 = vsel %vm359, %v2676, %v2684
    %v2703 = vsel %vm359, %v2678, %v2686
    %v2704 = vsel %vm359, %v2680, %v2688
    %v2705 = vsel %vm359, %v2666, %v2674
    %v2706 = vsel %vm359, %v2668, %v2676
    %v2707 = vsel %vm359, %v2670, %v2678
    %v2708 = vsel %vm359, %v2672, %v2680
    %v2709 = vsel %vm359, %v2690, %v2666
    %v2710 = vsel %vm359, %v2692, %v2668
    %v2711 = vsel %vm359, %v2694, %v2670
    %v2712 = vsel %vm359, %v2696, %v2672
    %v2713 = vlaneseq
    %v2714 = vshrl.u32 %v2713, 7
    %v2715 = vsub.s32 5, %v2714
    %v2716 = vrot.slane %v2241, %v2715
    %v2717 = vlaneseq
    %v2718 = vshrl.u32 %v2717, 7
    %v2719 = vsub.s32 5, %v2718
    %v2720 = vrot.slane %v2242, %v2719
    %v2721 = vlaneseq
    %v2722 = vshrl.u32 %v2721, 7
    %v2723 = vsub.s32 5, %v2722
    %v2724 = vrot.slane %v2243, %v2723
    %v2725 = vlaneseq
    %v2726 = vshrl.u32 %v2725, 7
    %v2727 = vsub.s32 5, %v2726
    %v2728 = vrot.slane %v2244, %v2727
    %v2729 = vmul.f32 %v2705, %v2716
    %v2730 = vmul.f32 %v2701, %v2720
    %v2731 = vmul.f32 %v2697, %v2724
    %v2732 = vmul.f32 %v2709, %v2728
    %v2733 = vmul.f32 %v2706, %v2716
    %v2734 = vmul.f32 %v2702, %v2720
    %v2735 = vmul.f32 %v2698, %v2724
    %v2736 = vmul.f32 %v2710, %v2728
    %v2737 = vmul.f32 %v2707, %v2716
    %v2738 = vmul.f32 %v2703, %v2720
    %v2739 = vmul.f32 %v2699, %v2724
    %v2740 = vmul.f32 %v2711, %v2728
    %v2741 = vmul.f32 %v2708, %v2716
    %v2742 = vmul.f32 %v2704, %v2720
    %v2743 = vmul.f32 %v2700, %v2724
    %v2744 = vmul.f32 %v2712, %v2728
    %v2745 = vadd.f32 %v2649, %v2729
    %v2746 = vadd.f32 %v2650, %v2730
    %v2747 = vadd.f32 %v2651, %v2731
    %v2748 = vadd.f32 %v2652, %v2732
    %v2749 = vadd.f32 %v2653, %v2733
    %v2750 = vadd.f32 %v2654, %v2734
    %v2751 = vadd.f32 %v2655, %v2735
    %v2752 = vadd.f32 %v2656, %v2736
    %v2753 = vadd.f32 %v2657, %v2737
    %v2754 = vadd.f32 %v2658, %v2738
    %v2755 = vadd.f32 %v2659, %v2739
    %v2756 = vadd.f32 %v2660, %v2740
    %v2757 = vadd.f32 %v2661, %v2741
    %v2758 = vadd.f32 %v2662, %v2742
    %v2759 = vadd.f32 %v2663, %v2743
    %v2760 = vadd.f32 %v2664, %v2744
    %v2761 = vrot.slane %v2225, 1
    %v2762 = vrot.slane %v2226, 1
    %v2763 = vrot.slane %v2227, 1
    %v2764 = vrot.slane %v2228, 1
    %v2765 = vrot.slane %v2229, 1
    %v2766 = vrot.slane %v2230, 1
    %v2767 = vrot.slane %v2231, 1
    %v2768 = vrot.slane %v2232, 1
    %v2769 = vrot.slane %v2233, 1
    %v2770 = vrot.slane %v2234, 1
    %v2771 = vrot.slane %v2235, 1
    %v2772 = vrot.slane %v2236, 1
    %v2773 = vrot.slane %v2237, 1
    %v2774 = vrot.slane %v2238, 1
    %v2775 = vrot.slane %v2239, 1
    %v2776 = vrot.slane %v2240, 1
    %v2777 = vsel %vm680, %v2769, %v2773
    %v2778 = vsel %vm680, %v2770, %v2774
    %v2779 = vsel %vm680, %v2771, %v2775
    %v2780 = vsel %vm680, %v2772, %v2776
    %v2781 = vsel %vm680, %v2765, %v2769
    %v2782 = vsel %vm680, %v2766, %v2770
    %v2783 = vsel %vm680, %v2767, %v2771
    %v2784 = vsel %vm680, %v2768, %v2772
    %v2785 = vsel %vm680, %v2761, %v2765
    %v2786 = vsel %vm680, %v2762, %v2766
    %v2787 = vsel %vm680, %v2763, %v2767
    %v2788 = vsel %vm680, %v2764, %v2768
    %v2789 = vsel %vm680, %v2773, %v2761
    %v2790 = vsel %vm680, %v2774, %v2762
    %v2791 = vsel %vm680, %v2775, %v2763
    %v2792 = vsel %vm680, %v2776, %v2764
    %v2793 = vmul.f32 %v2785, %v699
    %v2794 = vmul.f32 %v2786, %v699
    %v2795 = vmul.f32 %v2787, %v699
    %v2796 = vmul.f32 %v2788, %v699
    %v2797 = vmul.f32 %v2781, %v703
    %v2798 = vmul.f32 %v2782, %v703
    %v2799 = vmul.f32 %v2783, %v703
    %v2800 = vmul.f32 %v2784, %v703
    %v2801 = vmul.f32 %v2777, %v707
    %v2802 = vmul.f32 %v2778, %v707
    %v2803 = vmul.f32 %v2779, %v707
    %v2804 = vmul.f32 %v2780, %v707
    %v2805 = vmul.f32 %v2789, %v711
    %v2806 = vmul.f32 %v2790, %v711
    %v2807 = vmul.f32 %v2791, %v711
    %v2808 = vmul.f32 %v2792, %v711
    %2809 = vrot.lane.b32.xlu0 %v2793, 32
    %v2810 = vpop.permute.xlu0 %2809
    %2811 = vrot.lane.b32.xlu0 %v2797, 32
    %v2812 = vpop.permute.xlu0 %2811
    %2813 = vrot.lane.b32.xlu0 %v2801, 32
    %v2814 = vpop.permute.xlu0 %2813
    %2815 = vrot.lane.b32.xlu0 %v2805, 32
    %v2816 = vpop.permute.xlu0 %2815
    %2817 = vrot.lane.b32.xlu0 %v2794, 32
    %v2818 = vpop.permute.xlu0 %2817
    %2819 = vrot.lane.b32.xlu0 %v2798, 32
    %v2820 = vpop.permute.xlu0 %2819
    %2821 = vrot.lane.b32.xlu0 %v2802, 32
    %v2822 = vpop.permute.xlu0 %2821
    %2823 = vrot.lane.b32.xlu0 %v2806, 32
    %v2824 = vpop.permute.xlu0 %2823
    %2825 = vrot.lane.b32.xlu0 %v2795, 32
    %v2826 = vpop.permute.xlu0 %2825
    %2827 = vrot.lane.b32.xlu0 %v2799, 32
    %v2828 = vpop.permute.xlu0 %2827
    %2829 = vrot.lane.b32.xlu0 %v2803, 32
    %v2830 = vpop.permute.xlu0 %2829
    %2831 = vrot.lane.b32.xlu0 %v2807, 32
    %v2832 = vpop.permute.xlu0 %2831
    %2833 = vrot.lane.b32.xlu0 %v2796, 32
    %v2834 = vpop.permute.xlu0 %2833
    %2835 = vrot.lane.b32.xlu0 %v2800, 32
    %v2836 = vpop.permute.xlu0 %2835
    %2837 = vrot.lane.b32.xlu0 %v2804, 32
    %v2838 = vpop.permute.xlu0 %2837
    %2839 = vrot.lane.b32.xlu0 %v2808, 32
    %v2840 = vpop.permute.xlu0 %2839
    %v2841 = vsel %vm230, %v2826, %v2834
    %v2842 = vsel %vm230, %v2828, %v2836
    %v2843 = vsel %vm230, %v2830, %v2838
    %v2844 = vsel %vm230, %v2832, %v2840
    %v2845 = vsel %vm230, %v2818, %v2826
    %v2846 = vsel %vm230, %v2820, %v2828
    %v2847 = vsel %vm230, %v2822, %v2830
    %v2848 = vsel %vm230, %v2824, %v2832
    %v2849 = vsel %vm230, %v2810, %v2818
    %v2850 = vsel %vm230, %v2812, %v2820
    %v2851 = vsel %vm230, %v2814, %v2822
    %v2852 = vsel %vm230, %v2816, %v2824
    %v2853 = vsel %vm230, %v2834, %v2810
    %v2854 = vsel %vm230, %v2836, %v2812
    %v2855 = vsel %vm230, %v2838, %v2814
    %v2856 = vsel %vm230, %v2840, %v2816
    %v2857 = vlaneseq
    %v2858 = vshrl.u32 %v2857, 7
    %v2859 = vsub.s32 6, %v2858
    %v2860 = vrot.slane %v2241, %v2859
    %v2861 = vlaneseq
    %v2862 = vshrl.u32 %v2861, 7
    %v2863 = vsub.s32 6, %v2862
    %v2864 = vrot.slane %v2242, %v2863
    %v2865 = vlaneseq
    %v2866 = vshrl.u32 %v2865, 7
    %v2867 = vsub.s32 6, %v2866
    %v2868 = vrot.slane %v2243, %v2867
    %v2869 = vlaneseq
    %v2870 = vshrl.u32 %v2869, 7
    %v2871 = vsub.s32 6, %v2870
    %v2872 = vrot.slane %v2244, %v2871
    %v2873 = vmul.f32 %v2853, %v2860
    %v2874 = vmul.f32 %v2849, %v2864
    %v2875 = vmul.f32 %v2845, %v2868
    %v2876 = vmul.f32 %v2841, %v2872
    %v2877 = vmul.f32 %v2854, %v2860
    %v2878 = vmul.f32 %v2850, %v2864
    %v2879 = vmul.f32 %v2846, %v2868
    %v2880 = vmul.f32 %v2842, %v2872
    %v2881 = vmul.f32 %v2855, %v2860
    %v2882 = vmul.f32 %v2851, %v2864
    %v2883 = vmul.f32 %v2847, %v2868
    %v2884 = vmul.f32 %v2843, %v2872
    %v2885 = vmul.f32 %v2856, %v2860
    %v2886 = vmul.f32 %v2852, %v2864
    %v2887 = vmul.f32 %v2848, %v2868
    %v2888 = vmul.f32 %v2844, %v2872
    %v2889 = vadd.f32 %v2745, %v2873
    %v2890 = vadd.f32 %v2746, %v2874
    %v2891 = vadd.f32 %v2747, %v2875
    %v2892 = vadd.f32 %v2748, %v2876
    %v2893 = vadd.f32 %v2749, %v2877
    %v2894 = vadd.f32 %v2750, %v2878
    %v2895 = vadd.f32 %v2751, %v2879
    %v2896 = vadd.f32 %v2752, %v2880
    %v2897 = vadd.f32 %v2753, %v2881
    %v2898 = vadd.f32 %v2754, %v2882
    %v2899 = vadd.f32 %v2755, %v2883
    %v2900 = vadd.f32 %v2756, %v2884
    %v2901 = vadd.f32 %v2757, %v2885
    %v2902 = vadd.f32 %v2758, %v2886
    %v2903 = vadd.f32 %v2759, %v2887
    %v2904 = vadd.f32 %v2760, %v2888
    %v2905 = vlaneseq
    %v2906 = vshrl.u32 %v2905, 7
    %v2907 = vsub.s32 7, %v2906
    %v2908 = vrot.slane %v2241, %v2907
    %v2909 = vlaneseq
    %v2910 = vshrl.u32 %v2909, 7
    %v2911 = vsub.s32 7, %v2910
    %v2912 = vrot.slane %v2242, %v2911
    %v2913 = vlaneseq
    %v2914 = vshrl.u32 %v2913, 7
    %v2915 = vsub.s32 7, %v2914
    %v2916 = vrot.slane %v2243, %v2915
    %v2917 = vlaneseq
    %v2918 = vshrl.u32 %v2917, 7
    %v2919 = vsub.s32 7, %v2918
    %v2920 = vrot.slane %v2244, %v2919
    %v2921 = vmul.f32 %v2793, %v2908
    %v2922 = vmul.f32 %v2794, %v2912
    %v2923 = vmul.f32 %v2795, %v2916
    %v2924 = vmul.f32 %v2796, %v2920
    %v2925 = vmul.f32 %v2797, %v2908
    %v2926 = vmul.f32 %v2798, %v2912
    %v2927 = vmul.f32 %v2799, %v2916
    %v2928 = vmul.f32 %v2800, %v2920
    %v2929 = vmul.f32 %v2801, %v2908
    %v2930 = vmul.f32 %v2802, %v2912
    %v2931 = vmul.f32 %v2803, %v2916
    %v2932 = vmul.f32 %v2804, %v2920
    %v2933 = vmul.f32 %v2805, %v2908
    %v2934 = vmul.f32 %v2806, %v2912
    %v2935 = vmul.f32 %v2807, %v2916
    %v2936 = vmul.f32 %v2808, %v2920
    %v2937 = vadd.f32 %v2889, %v2921
    %v2938 = vadd.f32 %v2890, %v2922
    %v2939 = vadd.f32 %v2891, %v2923
    %v2940 = vadd.f32 %v2892, %v2924
    %v2941 = vadd.f32 %v2893, %v2925
    %v2942 = vadd.f32 %v2894, %v2926
    %v2943 = vadd.f32 %v2895, %v2927
    %v2944 = vadd.f32 %v2896, %v2928
    %v2945 = vadd.f32 %v2897, %v2929
    %v2946 = vadd.f32 %v2898, %v2930
    %v2947 = vadd.f32 %v2899, %v2931
    %v2948 = vadd.f32 %v2900, %v2932
    %v2949 = vadd.f32 %v2901, %v2933
    %v2950 = vadd.f32 %v2902, %v2934
    %v2951 = vadd.f32 %v2903, %v2935
    %v2952 = vadd.f32 %v2904, %v2936
    %2953 = vrot.lane.b32.xlu0 %v2793, 96
    %v2954 = vpop.permute.xlu0 %2953
    %2955 = vrot.lane.b32.xlu0 %v2797, 96
    %v2956 = vpop.permute.xlu0 %2955
    %2957 = vrot.lane.b32.xlu0 %v2801, 96
    %v2958 = vpop.permute.xlu0 %2957
    %2959 = vrot.lane.b32.xlu0 %v2805, 96
    %v2960 = vpop.permute.xlu0 %2959
    %2961 = vrot.lane.b32.xlu0 %v2794, 96
    %v2962 = vpop.permute.xlu0 %2961
    %2963 = vrot.lane.b32.xlu0 %v2798, 96
    %v2964 = vpop.permute.xlu0 %2963
    %2965 = vrot.lane.b32.xlu0 %v2802, 96
    %v2966 = vpop.permute.xlu0 %2965
    %2967 = vrot.lane.b32.xlu0 %v2806, 96
    %v2968 = vpop.permute.xlu0 %2967
    %2969 = vrot.lane.b32.xlu0 %v2795, 96
    %v2970 = vpop.permute.xlu0 %2969
    %2971 = vrot.lane.b32.xlu0 %v2799, 96
    %v2972 = vpop.permute.xlu0 %2971
    %2973 = vrot.lane.b32.xlu0 %v2803, 96
    %v2974 = vpop.permute.xlu0 %2973
    %2975 = vrot.lane.b32.xlu0 %v2807, 96
    %v2976 = vpop.permute.xlu0 %2975
    %2977 = vrot.lane.b32.xlu0 %v2796, 96
    %v2978 = vpop.permute.xlu0 %2977
    %2979 = vrot.lane.b32.xlu0 %v2800, 96
    %v2980 = vpop.permute.xlu0 %2979
    %2981 = vrot.lane.b32.xlu0 %v2804, 96
    %v2982 = vpop.permute.xlu0 %2981
    %2983 = vrot.lane.b32.xlu0 %v2808, 96
    %v2984 = vpop.permute.xlu0 %2983
    %v2985 = vsel %vm359, %v2970, %v2978
    %v2986 = vsel %vm359, %v2972, %v2980
    %v2987 = vsel %vm359, %v2974, %v2982
    %v2988 = vsel %vm359, %v2976, %v2984
    %v2989 = vsel %vm359, %v2962, %v2970
    %v2990 = vsel %vm359, %v2964, %v2972
    %v2991 = vsel %vm359, %v2966, %v2974
    %v2992 = vsel %vm359, %v2968, %v2976
    %v2993 = vsel %vm359, %v2954, %v2962
    %v2994 = vsel %vm359, %v2956, %v2964
    %v2995 = vsel %vm359, %v2958, %v2966
    %v2996 = vsel %vm359, %v2960, %v2968
    %v2997 = vsel %vm359, %v2978, %v2954
    %v2998 = vsel %vm359, %v2980, %v2956
    %v2999 = vsel %vm359, %v2982, %v2958
    %v3000 = vsel %vm359, %v2984, %v2960
    %v3001 = vlaneseq
    %v3002 = vshrl.u32 %v3001, 7
    %v3003 = vsub.s32 0, %v3002
    %v3004 = vrot.slane %v2245, %v3003
    %v3005 = vlaneseq
    %v3006 = vshrl.u32 %v3005, 7
    %v3007 = vsub.s32 0, %v3006
    %v3008 = vrot.slane %v2246, %v3007
    %v3009 = vlaneseq
    %v3010 = vshrl.u32 %v3009, 7
    %v3011 = vsub.s32 0, %v3010
    %v3012 = vrot.slane %v2247, %v3011
    %v3013 = vlaneseq
    %v3014 = vshrl.u32 %v3013, 7
    %v3015 = vsub.s32 0, %v3014
    %v3016 = vrot.slane %v2248, %v3015
    %v3017 = vmul.f32 %v2993, %v3004
    %v3018 = vmul.f32 %v2989, %v3008
    %v3019 = vmul.f32 %v2985, %v3012
    %v3020 = vmul.f32 %v2997, %v3016
    %v3021 = vmul.f32 %v2994, %v3004
    %v3022 = vmul.f32 %v2990, %v3008
    %v3023 = vmul.f32 %v2986, %v3012
    %v3024 = vmul.f32 %v2998, %v3016
    %v3025 = vmul.f32 %v2995, %v3004
    %v3026 = vmul.f32 %v2991, %v3008
    %v3027 = vmul.f32 %v2987, %v3012
    %v3028 = vmul.f32 %v2999, %v3016
    %v3029 = vmul.f32 %v2996, %v3004
    %v3030 = vmul.f32 %v2992, %v3008
    %v3031 = vmul.f32 %v2988, %v3012
    %v3032 = vmul.f32 %v3000, %v3016
    %v3033 = vadd.f32 %v2937, %v3017
    %v3034 = vadd.f32 %v2938, %v3018
    %v3035 = vadd.f32 %v2939, %v3019
    %v3036 = vadd.f32 %v2940, %v3020
    %v3037 = vadd.f32 %v2941, %v3021
    %v3038 = vadd.f32 %v2942, %v3022
    %v3039 = vadd.f32 %v2943, %v3023
    %v3040 = vadd.f32 %v2944, %v3024
    %v3041 = vadd.f32 %v2945, %v3025
    %v3042 = vadd.f32 %v2946, %v3026
    %v3043 = vadd.f32 %v2947, %v3027
    %v3044 = vadd.f32 %v2948, %v3028
    %v3045 = vadd.f32 %v2949, %v3029
    %v3046 = vadd.f32 %v2950, %v3030
    %v3047 = vadd.f32 %v2951, %v3031
    %v3048 = vadd.f32 %v2952, %v3032
    %v3049 = vld [vmem:[%s7] sm:$0xf]
    %v3051 = vlaneseq
    %v3052 = vshrl.u32 %v3051, 7
    %v3053 = vsub.s32 0, %v3052
    %v3054 = vrot.slane %v3049, %v3053
    %v3055 = vlaneseq
    %v3056 = vshrl.u32 %v3055, 7
    %v3057 = vsub.s32 1, %v3056
    %v3058 = vrot.slane %v3049, %v3057
    %v3059 = vlaneseq
    %v3060 = vshrl.u32 %v3059, 7
    %v3061 = vsub.s32 2, %v3060
    %v3062 = vrot.slane %v3049, %v3061
    %v3063 = vlaneseq
    %v3064 = vshrl.u32 %v3063, 7
    %v3065 = vsub.s32 3, %v3064
    %v3066 = vrot.slane %v3049, %v3065
    %v3071 = vadd.f32 %v3033, %v3054
    %v3072 = vadd.f32 %v3034, %v3058
    %v3073 = vadd.f32 %v3035, %v3062
    %v3074 = vadd.f32 %v3036, %v3066
    %v3075 = vadd.f32 %v3037, %v3054
    %v3076 = vadd.f32 %v3038, %v3058
    %v3077 = vadd.f32 %v3039, %v3062
    %v3078 = vadd.f32 %v3040, %v3066
    %v3079 = vadd.f32 %v3041, %v3054
    %v3080 = vadd.f32 %v3042, %v3058
    %v3081 = vadd.f32 %v3043, %v3062
    %v3082 = vadd.f32 %v3044, %v3066
    %v3083 = vadd.f32 %v3045, %v3054
    %v3084 = vadd.f32 %v3046, %v3058
    %v3085 = vadd.f32 %v3047, %v3062
    %v3086 = vadd.f32 %v3048, %v3066
    %v3087 = vadd.f32 %v3071, %v3075
    %v3088 = vrot.slane %v3087, 4
    %v3089 = vadd.f32 %v3087, %v3088
    %v3090 = vrot.slane %v3089, 2
    %v3091 = vadd.f32 %v3089, %v3090
    %v3092 = vrot.slane %v3091, 1
    %v3093 = vadd.f32 %v3091, %v3092
    %v3094 = vadd.f32 %v3072, %v3076
    %v3095 = vrot.slane %v3094, 4
    %v3096 = vadd.f32 %v3094, %v3095
    %v3097 = vrot.slane %v3096, 2
    %v3098 = vadd.f32 %v3096, %v3097
    %v3099 = vrot.slane %v3098, 1
    %v3100 = vadd.f32 %v3098, %v3099
    %v3101 = vadd.f32 %v3073, %v3077
    %v3102 = vrot.slane %v3101, 4
    %v3103 = vadd.f32 %v3101, %v3102
    %v3104 = vrot.slane %v3103, 2
    %v3105 = vadd.f32 %v3103, %v3104
    %v3106 = vrot.slane %v3105, 1
    %v3107 = vadd.f32 %v3105, %v3106
    %v3108 = vadd.f32 %v3074, %v3078
    %v3109 = vrot.slane %v3108, 4
    %v3110 = vadd.f32 %v3108, %v3109
    %v3111 = vrot.slane %v3110, 2
    %v3112 = vadd.f32 %v3110, %v3111
    %v3113 = vrot.slane %v3112, 1
    %v3114 = vadd.f32 %v3112, %v3113
    %v3115 = vadd.f32 %v3079, %v3083
    %v3116 = vrot.slane %v3115, 4
    %v3117 = vadd.f32 %v3115, %v3116
    %v3118 = vrot.slane %v3117, 2
    %v3119 = vadd.f32 %v3117, %v3118
    %v3120 = vrot.slane %v3119, 1
    %v3121 = vadd.f32 %v3119, %v3120
    %v3122 = vadd.f32 %v3080, %v3084
    %v3123 = vrot.slane %v3122, 4
    %v3124 = vadd.f32 %v3122, %v3123
    %v3125 = vrot.slane %v3124, 2
    %v3126 = vadd.f32 %v3124, %v3125
    %v3127 = vrot.slane %v3126, 1
    %v3128 = vadd.f32 %v3126, %v3127
    %v3129 = vadd.f32 %v3081, %v3085
    %v3130 = vrot.slane %v3129, 4
    %v3131 = vadd.f32 %v3129, %v3130
    %v3132 = vrot.slane %v3131, 2
    %v3133 = vadd.f32 %v3131, %v3132
    %v3134 = vrot.slane %v3133, 1
    %v3135 = vadd.f32 %v3133, %v3134
    %v3136 = vadd.f32 %v3082, %v3086
    %v3137 = vrot.slane %v3136, 4
    %v3138 = vadd.f32 %v3136, %v3137
    %v3139 = vrot.slane %v3138, 2
    %v3140 = vadd.f32 %v3138, %v3139
    %v3141 = vrot.slane %v3140, 1
    %v3142 = vadd.f32 %v3140, %v3141
    %v3143 = vld [vmem:[%s8] sm:$0xff]
    %v3144 = vld [vmem:[%s9] sm:$0x3]
    %v3145 = vld [vmem:[%s10] sm:$0xff]
    %v3147 = vlaneseq
    %v3148 = vshrl.u32 %v3147, 7
    %v3149 = vsub.s32 0, %v3148
    %v3150 = vrot.slane %v3143, %v3149
    %v3151 = vlaneseq
    %v3152 = vshrl.u32 %v3151, 7
    %v3153 = vsub.s32 2, %v3152
    %v3154 = vrot.slane %v3143, %v3153
    %v3155 = vlaneseq
    %v3156 = vshrl.u32 %v3155, 7
    %v3157 = vsub.s32 4, %v3156
    %v3158 = vrot.slane %v3143, %v3157
    %v3159 = vlaneseq
    %v3160 = vshrl.u32 %v3159, 7
    %v3161 = vsub.s32 6, %v3160
    %v3162 = vrot.slane %v3143, %v3161
    %v3167 = vlaneseq
    %v3168 = vshrl.u32 %v3167, 7
    %v3169 = vsub.s32 0, %v3168
    %v3170 = vrot.slane %v3150, %v3169
    %v3171 = vlaneseq
    %v3172 = vshrl.u32 %v3171, 7
    %v3173 = vsub.s32 0, %v3172
    %v3174 = vrot.slane %v3154, %v3173
    %v3175 = vlaneseq
    %v3176 = vshrl.u32 %v3175, 7
    %v3177 = vsub.s32 0, %v3176
    %v3178 = vrot.slane %v3158, %v3177
    %v3179 = vlaneseq
    %v3180 = vshrl.u32 %v3179, 7
    %v3181 = vsub.s32 0, %v3180
    %v3182 = vrot.slane %v3162, %v3181
    %v3183 = vmul.f32 %v3093, %v3170
    %v3184 = vmul.f32 %v3100, %v3174
    %v3185 = vmul.f32 %v3107, %v3178
    %v3186 = vmul.f32 %v3114, %v3182
    %v3187 = vmul.f32 %v3121, %v3170
    %v3188 = vmul.f32 %v3128, %v3174
    %v3189 = vmul.f32 %v3135, %v3178
    %v3190 = vmul.f32 %v3142, %v3182
    %v3199 = vrot.slane %v3187, 7
    %vm3200 = vcmask 1041409
    %v3201 = vsel %vm3200, %v3199, %v3183
    %v3202 = vrot.slane %v3188, 7
    %v3203 = vsel %vm3200, %v3202, %v3184
    %v3204 = vrot.slane %v3189, 7
    %v3205 = vsel %vm3200, %v3204, %v3185
    %v3206 = vrot.slane %v3190, 7
    %v3207 = vsel %vm3200, %v3206, %v3186
    %vm3212 = vcmask 1041408
    %v3213 = vsel %vm3212, %v3201, 0.0
    %v3214 = vsel %vm3212, %v3203, 0.0
    %v3215 = vadd.f32 %v3213, %v3214
    %v3216 = vsel %vm3212, %v3205, 0.0
    %v3217 = vadd.f32 %v3215, %v3216
    %v3218 = vsel %vm3212, %v3207, 0.0
    %v3219 = vadd.f32 %v3217, %v3218
    %3220 = vadd.xlane.f32.xlu0 %v3219
    %v3221 = vpop.xlane.xlu0 %3220
    %v3222 = vlaneseq
    %v3223 = vshrl.u32 %v3222, 7
    %v3224 = vsub.s32 0, %v3223
    %v3225 = vrot.slane %v3144, %v3224
    %v3226 = vadd.f32 %v3221, %v3225
    %v3227 = vxor.u32 %v3226, 2147483648
    %v3228 = vmul.f32 %v3227, 1.442695
    %v3229 = vpow.pop %v3228
    %v3230 = vadd.f32 %v3229, 1.0
    %v3231 = vrcp.pop %v3230
    %v3232 = vmul.f32 1.0, %v3231
    %v3233 = vmul.f32 %v3226, %v3232
    %3235 = vset.pattern.permute.xlu0 0
    %3236 = vperm.xlu0 %3235, %v3233
    %v3237 = vpop.permute.xlu0 %3236
    %v3240 = vlaneseq
    %v3241 = vshrl.u32 %v3240, 7
    %v3242 = vsub.s32 0, %v3241
    %v3243 = vrot.slane %v3145, %v3242
    %v3244 = vlaneseq
    %v3245 = vshrl.u32 %v3244, 7
    %v3246 = vsub.s32 2, %v3245
    %v3247 = vrot.slane %v3145, %v3246
    %v3248 = vlaneseq
    %v3249 = vshrl.u32 %v3248, 7
    %v3250 = vsub.s32 4, %v3249
    %v3251 = vrot.slane %v3145, %v3250
    %v3252 = vlaneseq
    %v3253 = vshrl.u32 %v3252, 7
    %v3254 = vsub.s32 6, %v3253
    %v3255 = vrot.slane %v3145, %v3254
    %v3260 = vlaneseq
    %v3261 = vshrl.u32 %v3260, 7
    %v3262 = vsub.s32 0, %v3261
    %v3263 = vrot.slane %v3243, %v3262
    %v3264 = vlaneseq
    %v3265 = vshrl.u32 %v3264, 7
    %v3266 = vsub.s32 0, %v3265
    %v3267 = vrot.slane %v3247, %v3266
    %v3268 = vlaneseq
    %v3269 = vshrl.u32 %v3268, 7
    %v3270 = vsub.s32 0, %v3269
    %v3271 = vrot.slane %v3251, %v3270
    %v3272 = vlaneseq
    %v3273 = vshrl.u32 %v3272, 7
    %v3274 = vsub.s32 0, %v3273
    %v3275 = vrot.slane %v3255, %v3274
    %v3276 = vmul.f32 %v3237, %v3263
    %v3277 = vmul.f32 %v3237, %v3267
    %v3278 = vmul.f32 %v3237, %v3271
    %v3279 = vmul.f32 %v3237, %v3275
    %v3280 = vlaneseq
    %v3281 = vshrl.u32 %v3280, 7
    %v3282 = vsub.s32 1, %v3281
    %v3283 = vrot.slane %v3143, %v3282
    %v3284 = vlaneseq
    %v3285 = vshrl.u32 %v3284, 7
    %v3286 = vsub.s32 3, %v3285
    %v3287 = vrot.slane %v3143, %v3286
    %v3288 = vlaneseq
    %v3289 = vshrl.u32 %v3288, 7
    %v3290 = vsub.s32 5, %v3289
    %v3291 = vrot.slane %v3143, %v3290
    %v3292 = vlaneseq
    %v3293 = vshrl.u32 %v3292, 7
    %v3294 = vsub.s32 7, %v3293
    %v3295 = vrot.slane %v3143, %v3294
    %v3300 = vlaneseq
    %v3301 = vshrl.u32 %v3300, 7
    %v3302 = vsub.s32 1, %v3301
    %v3303 = vrot.slane %v3283, %v3302
    %v3304 = vlaneseq
    %v3305 = vshrl.u32 %v3304, 7
    %v3306 = vsub.s32 1, %v3305
    %v3307 = vrot.slane %v3287, %v3306
    %v3308 = vlaneseq
    %v3309 = vshrl.u32 %v3308, 7
    %v3310 = vsub.s32 1, %v3309
    %v3311 = vrot.slane %v3291, %v3310
    %v3312 = vlaneseq
    %v3313 = vshrl.u32 %v3312, 7
    %v3314 = vsub.s32 1, %v3313
    %v3315 = vrot.slane %v3295, %v3314
    %v3316 = vmul.f32 %v3093, %v3303
    %v3317 = vmul.f32 %v3100, %v3307
    %v3318 = vmul.f32 %v3107, %v3311
    %v3319 = vmul.f32 %v3114, %v3315
    %v3320 = vmul.f32 %v3121, %v3303
    %v3321 = vmul.f32 %v3128, %v3307
    %v3322 = vmul.f32 %v3135, %v3311
    %v3323 = vmul.f32 %v3142, %v3315
    %v3332 = vrot.slane %v3320, 7
    %v3333 = vsel %vm3200, %v3332, %v3316
    %v3334 = vrot.slane %v3321, 7
    %v3335 = vsel %vm3200, %v3334, %v3317
    %v3336 = vrot.slane %v3322, 7
    %v3337 = vsel %vm3200, %v3336, %v3318
    %v3338 = vrot.slane %v3323, 7
    %v3339 = vsel %vm3200, %v3338, %v3319
    %v3344 = vsel %vm3212, %v3333, 0.0
    %v3345 = vsel %vm3212, %v3335, 0.0
    %v3346 = vadd.f32 %v3344, %v3345
    %v3347 = vsel %vm3212, %v3337, 0.0
    %v3348 = vadd.f32 %v3346, %v3347
    %v3349 = vsel %vm3212, %v3339, 0.0
    %v3350 = vadd.f32 %v3348, %v3349
    %3351 = vadd.xlane.f32.xlu0 %v3350
    %v3352 = vpop.xlane.xlu0 %3351
    %v3353 = vlaneseq
    %v3354 = vshrl.u32 %v3353, 7
    %v3355 = vsub.s32 1, %v3354
    %v3356 = vrot.slane %v3144, %v3355
    %v3357 = vadd.f32 %v3352, %v3356
    %v3358 = vxor.u32 %v3357, 2147483648
    %v3359 = vmul.f32 %v3358, 1.442695
    %v3360 = vpow.pop %v3359
    %v3361 = vadd.f32 %v3360, 1.0
    %v3362 = vrcp.pop %v3361
    %v3363 = vmul.f32 1.0, %v3362
    %v3364 = vmul.f32 %v3357, %v3363
    %3366 = vset.pattern.permute.xlu0 0
    %3367 = vperm.xlu0 %3366, %v3364
    %v3368 = vpop.permute.xlu0 %3367
    %v3370 = vlaneseq
    %v3371 = vshrl.u32 %v3370, 7
    %v3372 = vsub.s32 1, %v3371
    %v3373 = vrot.slane %v3145, %v3372
    %v3374 = vlaneseq
    %v3375 = vshrl.u32 %v3374, 7
    %v3376 = vsub.s32 3, %v3375
    %v3377 = vrot.slane %v3145, %v3376
    %v3378 = vlaneseq
    %v3379 = vshrl.u32 %v3378, 7
    %v3380 = vsub.s32 5, %v3379
    %v3381 = vrot.slane %v3145, %v3380
    %v3382 = vlaneseq
    %v3383 = vshrl.u32 %v3382, 7
    %v3384 = vsub.s32 7, %v3383
    %v3385 = vrot.slane %v3145, %v3384
    %v3390 = vlaneseq
    %v3391 = vshrl.u32 %v3390, 7
    %v3392 = vsub.s32 1, %v3391
    %v3393 = vrot.slane %v3373, %v3392
    %v3394 = vlaneseq
    %v3395 = vshrl.u32 %v3394, 7
    %v3396 = vsub.s32 1, %v3395
    %v3397 = vrot.slane %v3377, %v3396
    %v3398 = vlaneseq
    %v3399 = vshrl.u32 %v3398, 7
    %v3400 = vsub.s32 1, %v3399
    %v3401 = vrot.slane %v3381, %v3400
    %v3402 = vlaneseq
    %v3403 = vshrl.u32 %v3402, 7
    %v3404 = vsub.s32 1, %v3403
    %v3405 = vrot.slane %v3385, %v3404
    %v3406 = vmul.f32 %v3368, %v3393
    %v3407 = vmul.f32 %v3368, %v3397
    %v3408 = vmul.f32 %v3368, %v3401
    %v3409 = vmul.f32 %v3368, %v3405
    %v3410 = vadd.f32 %v3276, %v3406
    %v3411 = vadd.f32 %v3277, %v3407
    %v3412 = vadd.f32 %v3278, %v3408
    %v3413 = vadd.f32 %v3279, %v3409
    %v3414 = vld [vmem:[%s11] sm:$0xf]
    %v3416 = vlaneseq
    %v3417 = vshrl.u32 %v3416, 7
    %v3418 = vsub.s32 0, %v3417
    %v3419 = vrot.slane %v3414, %v3418
    %v3420 = vlaneseq
    %v3421 = vshrl.u32 %v3420, 7
    %v3422 = vsub.s32 1, %v3421
    %v3423 = vrot.slane %v3414, %v3422
    %v3424 = vlaneseq
    %v3425 = vshrl.u32 %v3424, 7
    %v3426 = vsub.s32 2, %v3425
    %v3427 = vrot.slane %v3414, %v3426
    %v3428 = vlaneseq
    %v3429 = vshrl.u32 %v3428, 7
    %v3430 = vsub.s32 3, %v3429
    %v3431 = vrot.slane %v3414, %v3430
    %v3436 = vadd.f32 %v3410, %v3419
    %v3437 = vadd.f32 %v3411, %v3423
    %v3438 = vadd.f32 %v3412, %v3427
    %v3439 = vadd.f32 %v3413, %v3431
    %v3440 = vxor.u32 %v3436, 2147483648
    %v3441 = vxor.u32 %v3437, 2147483648
    %v3442 = vxor.u32 %v3438, 2147483648
    %v3443 = vxor.u32 %v3439, 2147483648
    %v3444 = vmul.f32 %v3440, 1.442695
    %v3445 = vpow.pop %v3444
    %v3446 = vmul.f32 %v3441, 1.442695
    %v3447 = vpow.pop %v3446
    %v3448 = vmul.f32 %v3442, 1.442695
    %v3449 = vpow.pop %v3448
    %v3450 = vmul.f32 %v3443, 1.442695
    %v3451 = vpow.pop %v3450
    %v3452 = vadd.f32 %v3445, 1.0
    %v3453 = vadd.f32 %v3447, 1.0
    %v3454 = vadd.f32 %v3449, 1.0
    %v3455 = vadd.f32 %v3451, 1.0
    %v3456 = vrcp.pop %v3452
    %v3457 = vmul.f32 1.0, %v3456
    %v3458 = vrcp.pop %v3453
    %v3459 = vmul.f32 1.0, %v3458
    %v3460 = vrcp.pop %v3454
    %v3461 = vmul.f32 1.0, %v3460
    %v3462 = vrcp.pop %v3455
    %v3463 = vmul.f32 1.0, %v3462
    %v3468 = vcombine.low %v3457, %v3459
    %v3469 = vcombine.low %v3461, %v3463
    %v3471 = vunpack.c.l.s4 1966171168
    %v3472 = vunpack.c.0.s8 %v3471
    %v3473 = vlaneseq
    %v3474 = vshrl.u32 %v3473, 7
    %v3475 = vsub.s32 %v3472, %v3474
    %v3476 = vrot.slane %v3468, %v3475
    %v3478 = vunpack.c.l.s4 1966171168
    %v3479 = vunpack.c.0.s8 %v3478
    %v3480 = vlaneseq
    %v3481 = vshrl.u32 %v3480, 7
    %v3482 = vsub.s32 %v3479, %v3481
    %v3483 = vrot.slane %v3469, %v3482
    %v3484 = vcombine.low %v3476, %v3483
    %v3485 = vcombine.high %v3476, %v3483
    %v3487 = vunpack.c.l.s4 1966171168
    %v3488 = vunpack.c.0.s8 %v3487
    %v3489 = vlaneseq
    %v3490 = vshrl.u32 %v3489, 7
    %v3491 = vsub.s32 %v3488, %v3490
    %v3492 = vrot.slane %v3484, %v3491
    %v3494 = vunpack.c.l.s4 1966171168
    %v3495 = vunpack.c.0.s8 %v3494
    %v3496 = vlaneseq
    %v3497 = vshrl.u32 %v3496, 7
    %v3498 = vsub.s32 %v3495, %v3497
    %v3499 = vrot.slane %v3485, %v3498
    %v3500 = vlaneseq
    %v3501 = vshrl.u32 %v3500, 7
    %v3502 = vsub.s32 0, %v3501
    %v3503 = vrot.slane %v3492, %v3502
    %v3504 = vlaneseq
    %v3505 = vshrl.u32 %v3504, 7
    %v3506 = vsub.s32 1, %v3505
    %v3507 = vrot.slane %v3492, %v3506
    %v3508 = vlaneseq
    %v3509 = vshrl.u32 %v3508, 7
    %v3510 = vsub.s32 2, %v3509
    %v3511 = vrot.slane %v3492, %v3510
    %v3512 = vlaneseq
    %v3513 = vshrl.u32 %v3512, 7
    %v3514 = vsub.s32 3, %v3513
    %v3515 = vrot.slane %v3492, %v3514
    %v3516 = vlaneseq
    %v3517 = vshrl.u32 %v3516, 7
    %v3518 = vsub.s32 0, %v3517
    %v3519 = vrot.slane %v3499, %v3518
    %v3520 = vlaneseq
    %v3521 = vshrl.u32 %v3520, 7
    %v3522 = vsub.s32 1, %v3521
    %v3523 = vrot.slane %v3499, %v3522
    %v3524 = vlaneseq
    %v3525 = vshrl.u32 %v3524, 7
    %v3526 = vsub.s32 2, %v3525
    %v3527 = vrot.slane %v3499, %v3526
    %v3528 = vlaneseq
    %v3529 = vshrl.u32 %v3528, 7
    %v3530 = vsub.s32 3, %v3529
    %v3531 = vrot.slane %v3499, %v3530
    %v3540 = vmul.f32 %v3071, %v3503
    %v3541 = vmul.f32 %v3072, %v3507
    %v3542 = vmul.f32 %v3073, %v3511
    %v3543 = vmul.f32 %v3074, %v3515
    %v3544 = vmul.f32 %v3075, %v3503
    %v3545 = vmul.f32 %v3076, %v3507
    %v3546 = vmul.f32 %v3077, %v3511
    %v3547 = vmul.f32 %v3078, %v3515
    %v3548 = vmul.f32 %v3079, %v3519
    %v3549 = vmul.f32 %v3080, %v3523
    %v3550 = vmul.f32 %v3081, %v3527
    %v3551 = vmul.f32 %v3082, %v3531
    %v3552 = vmul.f32 %v3083, %v3519
    %v3553 = vmul.f32 %v3084, %v3523
    %v3554 = vmul.f32 %v3085, %v3527
    %v3555 = vmul.f32 %v3086, %v3531
    %v3556 = vadd.f32 %v3540, %v97
    %v3557 = vadd.f32 %v3541, %v98
    %v3558 = vadd.f32 %v3542, %v99
    %v3559 = vadd.f32 %v3543, %v100
    %v3560 = vadd.f32 %v3544, %v101
    %v3561 = vadd.f32 %v3545, %v102
    %v3562 = vadd.f32 %v3546, %v103
    %v3563 = vadd.f32 %v3547, %v104
    %v3564 = vadd.f32 %v3548, %v105
    %v3565 = vadd.f32 %v3549, %v106
    %v3566 = vadd.f32 %v3550, %v107
    %v3567 = vadd.f32 %v3551, %v108
    %v3568 = vadd.f32 %v3552, %v109
    %v3569 = vadd.f32 %v3553, %v110
    %v3570 = vadd.f32 %v3554, %v111
    %v3571 = vadd.f32 %v3555, %v112
    %3572 = vst [vmem:[#allocation10] sm:$0xff] %v3556
    %3573 = vst [vmem:[#allocation10 + $0x8] sm:$0xff] %v3557
    %3574 = vst [vmem:[#allocation10 + $0x10] sm:$0xff] %v3558
    %3575 = vst [vmem:[#allocation10 + $0x18] sm:$0xff] %v3559
    %3576 = vst [vmem:[#allocation10 + $0x20] sm:$0xff] %v3560
    %3577 = vst [vmem:[#allocation10 + $0x28] sm:$0xff] %v3561
    %3578 = vst [vmem:[#allocation10 + $0x30] sm:$0xff] %v3562
    %3579 = vst [vmem:[#allocation10 + $0x38] sm:$0xff] %v3563
    %3580 = vst [vmem:[#allocation10 + $0x40] sm:$0xff] %v3564
    %3581 = vst [vmem:[#allocation10 + $0x48] sm:$0xff] %v3565
    %3582 = vst [vmem:[#allocation10 + $0x50] sm:$0xff] %v3566
    %3583 = vst [vmem:[#allocation10 + $0x58] sm:$0xff] %v3567
    %3584 = vst [vmem:[#allocation10 + $0x60] sm:$0xff] %v3568
    %3585 = vst [vmem:[#allocation10 + $0x68] sm:$0xff] %v3569
    %3586 = vst [vmem:[#allocation10 + $0x70] sm:$0xff] %v3570
    %3587 = vst [vmem:[#allocation10 + $0x78] sm:$0xff] %v3571
    // Predicated region
    $region66: #{tpu_custom_call.1} parent=1 // pred_check
      _
    $region67: #{tpu_custom_call.1} parent=1 // pred_check_branch
      %3589 = sbr.rel (0) target = $region69
    $region68: #{tpu_custom_call.1} parent=1 // pred_region
      %s3591 = ssub.s32 2048, 2048
      %3592 = vsyncadd [#allocation4], %s3591
      %s3593 = sshll.u32 [#allocation10], 4
      %s3594 = int_to_ptr.vmem [resolvable:$true] %s3593
      %3599 = dma.vmem_to_hbm [thread:$0]  %s3594, 2048, %s12, [#allocation4], 512, 512, 32
    $region69: #{tpu_custom_call.1} parent=1 // pred_fallthru
      _
    // Predicated region
    $region70: #{tpu_custom_call.1} parent=1 // pred_check
      _
    $region71: #{tpu_custom_call.1} parent=1 // pred_check_branch
      %3601 = sbr.rel (0) target = $region73
    $region72: #{tpu_custom_call.1} parent=1 // pred_region
      %3602 = dma.done [#allocation4], 2048
    $region73: #{tpu_custom_call.1} parent=1 // pred_fallthru
      _
    %3603 = vsyncpa [#allocation3], 1
    %3604 = vsyncpa [#allocation6], 1
    %3605 = vsyncpa [#allocation9], 1
    %3606 = vsyncpa [#allocation4], 1

</llo_original>
